<compile_context>
chip_gen: v7x
topology: tpu7x:2x2x1
jax: 0.10.0
libtpu: 0.0.40
codegen_flags: <defaults>
</compile_context>

<pallas_src>
import functools

import jax
import jax.numpy as jnp
from jax import lax
from jax.experimental import pallas as pl
from jax.experimental.pallas import tpu as pltpu


def _resblock_kernel(qp_ref, x_ref, w1_ref, w2_ref, out_ref,
                     xq_ref, hpad_ref, col_ref, *, qmax, cdt):
    # qp_ref  : SMEM (6,)  [s1, inv1, s2, inv2, s3, inv3]  (s = qmax/alpha, inv = alpha/qmax)
    # x_ref   : VMEM (tile_h+4, W+2, Cp)   pre-padded input window (2-row halo, 1-col pad)
    # w*_ref  : VMEM (9*Cp, Cp)            im2col-flattened 3x3 weights (w2 pre-scaled by res_scale)
    # out_ref : VMEM (tile_h, W, Cp)
    # xq_ref  : VMEM (tile_h+4, W+2, Cp)   quant_act1(x) window (conv1 input + residual)
    # hpad_ref: VMEM (tile_h+2, W+2, Cp)   quantized relu(conv1) with 1-col zero pad
    # col_ref : VMEM (tile_h+2, W, 9*Cp)   im2col patch buffer, reused by both convs
    th, w, cp = out_ref.shape
    r1 = th + 2                       # conv1 output rows needed (incl. conv2 halo rows)

    s1 = qp_ref[0]; i1 = qp_ref[1]
    s2 = qp_ref[2]; i2 = qp_ref[3]
    s3 = qp_ref[4]; i3 = qp_ref[5]

    # residual = quant_act1(x) on the whole halo window (quant(0) == 0 keeps the padding zero).
    xq_ref[...] = jnp.round(jnp.clip(x_ref[...] * s1, -qmax, qmax)) * i1

    taps = [(dy, dx) for dy in range(3) for dx in range(3)]

    # ---- conv1 (3x3, pad=1): single im2col matmul, K = 9*Cp ----
    for t, (dy, dx) in enumerate(taps):
        col_ref[:, :, t * cp:(t + 1) * cp] = xq_ref[dy:dy + r1, dx:dx + w, :].astype(cdt)
    h = jnp.dot(col_ref[...].reshape(r1 * w, 9 * cp), w1_ref[...],
                preferred_element_type=jnp.float32).reshape(r1, w, cp)
    h = jnp.maximum(h, 0.0)                                    # act = ReLU
    h = jnp.round(jnp.clip(h * s2, -qmax, qmax)) * i2          # quant_act2

    # Zero-padded h for conv2: interior in cols [1, w]; only the 1-col border is zeroed.
    hpad_ref[:, 1:w + 1, :] = h
    hpad_ref[:, 0:1, :] = jnp.zeros((r1, 1, cp), jnp.float32)
    hpad_ref[:, w + 1:w + 2, :] = jnp.zeros((r1, 1, cp), jnp.float32)

    # h rows that fall outside the image are conv2's zero padding (first / last row tile only).
    j = pl.program_id(1)

    @pl.when(j == 0)
    def _():
        hpad_ref[0:1, :, :] = jnp.zeros((1, w + 2, cp), jnp.float32)

    @pl.when(j == pl.num_programs(1) - 1)
    def _():
        hpad_ref[r1 - 1:r1, :, :] = jnp.zeros((1, w + 2, cp), jnp.float32)

    # ---- conv2 (3x3, pad=1): single im2col matmul, K = 9*Cp (col_ref reused) ----
    for t, (dy, dx) in enumerate(taps):
        col_ref[0:th, :, t * cp:(t + 1) * cp] = hpad_ref[dy:dy + th, dx:dx + w, :].astype(cdt)
    body = jnp.dot(col_ref[0:th, :, :].reshape(th * w, 9 * cp), w2_ref[...],
                   preferred_element_type=jnp.float32).reshape(th, w, cp)

    # res_scale is folded into w2 in the wrapper; res = quant_act3(body) + residual.
    res = jnp.round(jnp.clip(body * s3, -qmax, qmax)) * i3
    out_ref[...] = res + xq_ref[2:th + 2, 1:w + 1, :]


def resblock_pams_forward(x_nchw, w1_oihw, w2_oihw, alphas, *,
                          k_bits=8, res_scale=1.0, loss_kdf=False, f=None,
                          tile_h=8, compute_dtype=jnp.float32):
    """Forward of ResBlock_PAMS. Input/weights in PyTorch layouts (NCHW / OIHW).

    compute_dtype=jnp.bfloat16 can be used on v6e/v7x for ~2x MXU throughput (activations are
    already on an 8-bit PAMS grid); default float32 keeps exact parity with the f32 module.
    """
    N, C, H, W = x_nchw.shape
    qmax = 2.0 ** (k_bits - 1) - 1.0

    # Row tile (halo handled by the wrapper); fall back to a full-height tile if H is ragged.
    th = tile_h if (H % tile_h == 0) else H
    num_tiles = H // th

    # Channels-last layout with the channel (lane) axis padded to a multiple of 128 so all
    # vector ops / stores / MXU tiles are lane-dense and lane-aligned.
    cp = ((C + 127) // 128) * 128
    x_nhwc = jnp.transpose(x_nchw, (0, 2, 3, 1)).astype(jnp.float32)
    x_pad = jnp.pad(x_nhwc, ((0, 0), (2, 2), (1, 1), (0, cp - C)))

    # Pre-extract overlapping row windows (tile_h + 4 rows each) so the kernel BlockSpec is a
    # plain non-overlapping block; only 4 halo rows per tile are duplicated in HBM.
    windows = jnp.concatenate(
        [x_pad[:, j * th:j * th + th + 4][:, None] for j in range(num_tiles)], axis=1)
    windows = windows.reshape(N * num_tiles, th + 4, W + 2, cp)

    # Weights: OIHW -> HWIO -> channel-pad -> (9*Cp, Cp) im2col matrices; res_scale folded into w2.
    def pack_weight(w_oihw, scale=1.0):
        w_hwio = jnp.transpose(w_oihw, (2, 3, 1, 0)).astype(jnp.float32) * scale
        w_hwio = jnp.pad(w_hwio, ((0, 0), (0, 0), (0, cp - C), (0, cp - C)))
        return w_hwio.reshape(9 * cp, cp).astype(compute_dtype)

    w1_mat = pack_weight(w1_oihw)
    w2_mat = pack_weight(w2_oihw, scale=res_scale)

    alphas = jnp.asarray(alphas, jnp.float32)
    qparams = jnp.stack([qmax / alphas[0], alphas[0] / qmax,
                         qmax / alphas[1], alphas[1] / qmax,
                         qmax / alphas[2], alphas[2] / qmax])

    kernel = functools.partial(_resblock_kernel, qmax=qmax, cdt=compute_dtype)

    out = pl.pallas_call(
        kernel,
        out_shape=jax.ShapeDtypeStruct((N, H, W, cp), jnp.float32),
        grid=(N, num_tiles),
        in_specs=[
            pl.BlockSpec(memory_space=pltpu.MemorySpace.SMEM),                 # quant scales
            pl.BlockSpec((None, th + 4, W + 2, cp),
                         lambda n, j: (n * num_tiles + j, 0, 0, 0)),           # halo windows
            pl.BlockSpec((9 * cp, cp), lambda n, j: (0, 0)),                   # w1 (resident)
            pl.BlockSpec((9 * cp, cp), lambda n, j: (0, 0)),                   # w2 (resident)
        ],
        out_specs=pl.BlockSpec((None, th, W, cp), lambda n, j: (n, j, 0, 0)),
        scratch_shapes=[
            pltpu.VMEM((th + 4, W + 2, cp), jnp.float32),      # quant_act1(x) window
            pltpu.VMEM((th + 2, W + 2, cp), jnp.float32),      # padded quantized relu(conv1)
            pltpu.VMEM((th + 2, W, 9 * cp), compute_dtype),    # im2col buffer (reused by both convs)
        ],
        compiler_params=pltpu.CompilerParams(
            dimension_semantics=("parallel", "parallel"),      # shard across both v7x TCs
            vmem_limit_bytes=64 * 1024 * 1024),
    )(qparams, windows, w1_mat, w2_mat)

    res_nchw = jnp.transpose(out[..., :C], (0, 3, 1, 2))
    # loss_kdf defaults to False -> f = None (matches the PyTorch forward).
    # TODO(synk): loss_kdf=True branch (feature stack via torch.cat) is host-side glue, not a kernel.
    return [res_nchw, None if not loss_kdf else f]


def _reference(x_nchw, w1_oihw, w2_oihw, alphas, k_bits, res_scale):
    qmax = 2.0 ** (k_bits - 1) - 1.0

    def q(v, a):
        # Same precomputed-scale formulation as the kernel (qmax/alpha, alpha/qmax).
        return jnp.round(jnp.clip(v * (qmax / a), -qmax, qmax)) * (a / qmax)

    residual = q(x_nchw, alphas[0])
    h = lax.conv_general_dilated(residual, w1_oihw, (1, 1), 'SAME',
                                 dimension_numbers=('NCHW', 'OIHW', 'NCHW'),
                                 precision=lax.Precision.HIGHEST)
    h = jnp.maximum(h, 0.0)
    h = q(h, alphas[1])
    body = lax.conv_general_dilated(h, w2_oihw, (1, 1), 'SAME',
                                    dimension_numbers=('NCHW', 'OIHW', 'NCHW'),
                                    precision=lax.Precision.HIGHEST)
    return q(body * res_scale, alphas[2]) + residual


if __name__ == "__main__":
    key = jax.random.PRNGKey(0)
    kx, k1, k2 = jax.random.split(key, 3)

    N, C, H, W = 2, 4, 16, 16           # n_feats = 4, kernel_size = 3
    k_bits = 8
    res_scale = 1.0

    x = jax.random.normal(kx, (N, C, H, W), dtype=jnp.float32)
    # conv weights (bias=False): PyTorch layout [Cout, Cin, kH, kW]
    w1 = 0.1 * jax.random.normal(k1, (C, C, 3, 3), dtype=jnp.float32)
    w2 = 0.1 * jax.random.normal(k2, (C, C, 3, 3), dtype=jnp.float32)
    # deterministic alpha parameters of quant_act1/2/3
    alphas = jnp.array([1.5, 1.2, 1.0], dtype=jnp.float32)

    res, f = resblock_pams_forward(x, w1, w2, alphas,
                                   k_bits=k_bits, res_scale=res_scale)
    res = jax.block_until_ready(res)

    ref = _reference(x, w1, w2, alphas, k_bits, res_scale)

    assert res.shape == (N, C, H, W)
    assert f is None

    # The output lives on a quantization grid: two correct implementations may differ by one
    # quant step (alpha/qmax) on isolated elements where round() sits exactly on a boundary
    # (Pallas im2col MXU matmul vs lax.conv accumulate in different orders). Require almost all
    # elements to match tightly and bound any outlier by a couple of quant steps.
    qmax = 2.0 ** (k_bits - 1) - 1.0
    step = float(jnp.max(alphas)) / qmax
    diff = jnp.abs(res - ref)
    tight_frac = float(jnp.mean((diff <= 1e-4).astype(jnp.float32)))
    max_diff = float(jnp.max(diff))
    mean_diff = float(jnp.mean(diff))
    assert tight_frac >= 0.99, f"tight-match fraction too low: {tight_frac}"
    assert max_diff <= 3.0 * step + 1e-4, f"max |diff| {max_diff} exceeds quant-step bound"
    assert mean_diff <= 1e-4, f"mean |diff| too large: {mean_diff}"

    print("KERNEL_OK")
</pallas_src>

<mosaic_0001>
module attributes {stable_mosaic.version = 11 : i64} {
  func.func @_resblock_kernel(%arg0: i32, %arg1: i32, %arg2: memref<6xf32, #tpu.memory_space<smem>>, %arg3: memref<1x12x18x128xf32, #tpu.memory_space<vmem>>, %arg4: memref<1152x128xf32, #tpu.memory_space<vmem>>, %arg5: memref<1152x128xf32, #tpu.memory_space<vmem>>, %arg6: memref<1x8x16x128xf32, #tpu.memory_space<vmem>>, %arg7: memref<12x18x128xf32, #tpu.memory_space<vmem>>, %arg8: memref<10x18x128xf32, #tpu.memory_space<vmem>>, %arg9: memref<10x16x1152xf32, #tpu.memory_space<vmem>>) attributes {dimension_semantics = [#tpu.dimension_semantics<parallel>, #tpu.dimension_semantics<parallel>], iteration_bounds = array<i64: 2, 2>, scalar_prefetch = 0 : i64, scratch_operands = 3 : i64, tpu.core_type = #tpu.core_type<tc>, window_params = [{transform_indices = @transform_0, window_bounds = array<i64: 6>}, {transform_indices = @transform_1, window_bounds = array<i64: 1, 12, 18, 128>}, {pipeline_mode = #tpu.pipeline_mode<synchronous>, transform_indices = @transform_2, window_bounds = array<i64: 1152, 128>}, {pipeline_mode = #tpu.pipeline_mode<synchronous>, transform_indices = @transform_3, window_bounds = array<i64: 1152, 128>}, {transform_indices = @transform_4, window_bounds = array<i64: 1, 8, 16, 128>}]} {
    %c0 = arith.constant 0 : index
    %0 = memref.load %arg2[%c0] : memref<6xf32, #tpu.memory_space<smem>>
    %c1 = arith.constant 1 : index
    %1 = memref.load %arg2[%c1] : memref<6xf32, #tpu.memory_space<smem>>
    %c2 = arith.constant 2 : index
    %2 = memref.load %arg2[%c2] : memref<6xf32, #tpu.memory_space<smem>>
    %c3 = arith.constant 3 : index
    %3 = memref.load %arg2[%c3] : memref<6xf32, #tpu.memory_space<smem>>
    %c4 = arith.constant 4 : index
    %4 = memref.load %arg2[%c4] : memref<6xf32, #tpu.memory_space<smem>>
    %c5 = arith.constant 5 : index
    %5 = memref.load %arg2[%c5] : memref<6xf32, #tpu.memory_space<smem>>
    %c0_0 = arith.constant 0 : index
    %c0_1 = arith.constant 0 : index
    %c0_2 = arith.constant 0 : index
    %c0_3 = arith.constant 0 : index
    %6 = vector.load %arg3[%c0_0, %c0_1, %c0_2, %c0_3] : memref<1x12x18x128xf32, #tpu.memory_space<vmem>>, vector<1x12x18x128xf32>
    %7 = vector.shape_cast %6 : vector<1x12x18x128xf32> to vector<12x18x128xf32>
    %8 = vector.broadcast %0 : f32 to vector<12x18x128xf32>
    %9 = arith.mulf %7, %8 : vector<12x18x128xf32>
    %cst = arith.constant -1.270000e+02 : f32
    %cst_4 = arith.constant 1.270000e+02 : f32
    %10 = vector.broadcast %cst : f32 to vector<12x18x128xf32>
    %11 = arith.maximumf %10, %9 : vector<12x18x128xf32>
    %12 = vector.broadcast %cst_4 : f32 to vector<12x18x128xf32>
    %13 = arith.minimumf %12, %11 : vector<12x18x128xf32>
    %14 = math.roundeven %13 : vector<12x18x128xf32>
    %15 = vector.broadcast %1 : f32 to vector<12x18x128xf32>
    %16 = arith.mulf %14, %15 : vector<12x18x128xf32>
    %c0_5 = arith.constant 0 : index
    %c0_6 = arith.constant 0 : index
    %c0_7 = arith.constant 0 : index
    %17 = vector.load %arg7[%c0_5, %c0_6, %c0_7] : memref<12x18x128xf32, #tpu.memory_space<vmem>>, vector<12x18x128xf32>
    tpu.vector_store %arg7[%c0_5, %c0_6, %c0_7], %16 {strides = array<i32>} : memref<12x18x128xf32, #tpu.memory_space<vmem>>, vector<12x18x128xf32>,
    %c0_8 = arith.constant 0 : index
    %c0_9 = arith.constant 0 : index
    %c0_10 = arith.constant 0 : index
    %18 = vector.load %arg7[%c0_8, %c0_9, %c0_10] : memref<12x18x128xf32, #tpu.memory_space<vmem>>, vector<10x16x128xf32>
    %c0_11 = arith.constant 0 : index
    %c0_12 = arith.constant 0 : index
    %c0_13 = arith.constant 0 : index
    %19 = vector.load %arg9[%c0_11, %c0_12, %c0_13] : memref<10x16x1152xf32, #tpu.memory_space<vmem>>, vector<10x16x128xf32>
    tpu.vector_store %arg9[%c0_11, %c0_12, %c0_13], %18 {strides = array<i32>} : memref<10x16x1152xf32, #tpu.memory_space<vmem>>, vector<10x16x128xf32>,
    %c0_14 = arith.constant 0 : index
    %c1_15 = arith.constant 1 : index
    %c0_16 = arith.constant 0 : index
    %20 = vector.load %arg7[%c0_14, %c1_15, %c0_16] : memref<12x18x128xf32, #tpu.memory_space<vmem>>, vector<10x16x128xf32>
    %c0_17 = arith.constant 0 : index
    %c0_18 = arith.constant 0 : index
    %c128 = arith.constant 128 : index
    %21 = vector.load %arg9[%c0_17, %c0_18, %c128] : memref<10x16x1152xf32, #tpu.memory_space<vmem>>, vector<10x16x128xf32>
    tpu.vector_store %arg9[%c0_17, %c0_18, %c128], %20 {strides = array<i32>} : memref<10x16x1152xf32, #tpu.memory_space<vmem>>, vector<10x16x128xf32>,
    %c0_19 = arith.constant 0 : index
    %c2_20 = arith.constant 2 : index
    %c0_21 = arith.constant 0 : index
    %22 = vector.load %arg7[%c0_19, %c2_20, %c0_21] : memref<12x18x128xf32, #tpu.memory_space<vmem>>, vector<10x16x128xf32>
    %c0_22 = arith.constant 0 : index
    %c0_23 = arith.constant 0 : index
    %c256 = arith.constant 256 : index
    %23 = vector.load %arg9[%c0_22, %c0_23, %c256] : memref<10x16x1152xf32, #tpu.memory_space<vmem>>, vector<10x16x128xf32>
    tpu.vector_store %arg9[%c0_22, %c0_23, %c256], %22 {strides = array<i32>} : memref<10x16x1152xf32, #tpu.memory_space<vmem>>, vector<10x16x128xf32>,
    %c1_24 = arith.constant 1 : index
    %c0_25 = arith.constant 0 : index
    %c0_26 = arith.constant 0 : index
    %24 = vector.load %arg7[%c1_24, %c0_25, %c0_26] : memref<12x18x128xf32, #tpu.memory_space<vmem>>, vector<10x16x128xf32>
    %c0_27 = arith.constant 0 : index
    %c0_28 = arith.constant 0 : index
    %c384 = arith.constant 384 : index
    %25 = vector.load %arg9[%c0_27, %c0_28, %c384] : memref<10x16x1152xf32, #tpu.memory_space<vmem>>, vector<10x16x128xf32>
    tpu.vector_store %arg9[%c0_27, %c0_28, %c384], %24 {strides = array<i32>} : memref<10x16x1152xf32, #tpu.memory_space<vmem>>, vector<10x16x128xf32>,
    %c1_29 = arith.constant 1 : index
    %c1_30 = arith.constant 1 : index
    %c0_31 = arith.constant 0 : index
    %26 = vector.load %arg7[%c1_29, %c1_30, %c0_31] : memref<12x18x128xf32, #tpu.memory_space<vmem>>, vector<10x16x128xf32>
    %c0_32 = arith.constant 0 : index
    %c0_33 = arith.constant 0 : index
    %c512 = arith.constant 512 : index
    %27 = vector.load %arg9[%c0_32, %c0_33, %c512] : memref<10x16x1152xf32, #tpu.memory_space<vmem>>, vector<10x16x128xf32>
    tpu.vector_store %arg9[%c0_32, %c0_33, %c512], %26 {strides = array<i32>} : memref<10x16x1152xf32, #tpu.memory_space<vmem>>, vector<10x16x128xf32>,
    %c1_34 = arith.constant 1 : index
    %c2_35 = arith.constant 2 : index
    %c0_36 = arith.constant 0 : index
    %28 = vector.load %arg7[%c1_34, %c2_35, %c0_36] : memref<12x18x128xf32, #tpu.memory_space<vmem>>, vector<10x16x128xf32>
    %c0_37 = arith.constant 0 : index
    %c0_38 = arith.constant 0 : index
    %c640 = arith.constant 640 : index
    %29 = vector.load %arg9[%c0_37, %c0_38, %c640] : memref<10x16x1152xf32, #tpu.memory_space<vmem>>, vector<10x16x128xf32>
    tpu.vector_store %arg9[%c0_37, %c0_38, %c640], %28 {strides = array<i32>} : memref<10x16x1152xf32, #tpu.memory_space<vmem>>, vector<10x16x128xf32>,
    %c2_39 = arith.constant 2 : index
    %c0_40 = arith.constant 0 : index
    %c0_41 = arith.constant 0 : index
    %30 = vector.load %arg7[%c2_39, %c0_40, %c0_41] : memref<12x18x128xf32, #tpu.memory_space<vmem>>, vector<10x16x128xf32>
    %c0_42 = arith.constant 0 : index
    %c0_43 = arith.constant 0 : index
    %c768 = arith.constant 768 : index
    %31 = vector.load %arg9[%c0_42, %c0_43, %c768] : memref<10x16x1152xf32, #tpu.memory_space<vmem>>, vector<10x16x128xf32>
    tpu.vector_store %arg9[%c0_42, %c0_43, %c768], %30 {strides = array<i32>} : memref<10x16x1152xf32, #tpu.memory_space<vmem>>, vector<10x16x128xf32>,
    %c2_44 = arith.constant 2 : index
    %c1_45 = arith.constant 1 : index
    %c0_46 = arith.constant 0 : index
    %32 = vector.load %arg7[%c2_44, %c1_45, %c0_46] : memref<12x18x128xf32, #tpu.memory_space<vmem>>, vector<10x16x128xf32>
    %c0_47 = arith.constant 0 : index
    %c0_48 = arith.constant 0 : index
    %c896 = arith.constant 896 : index
    %33 = vector.load %arg9[%c0_47, %c0_48, %c896] : memref<10x16x1152xf32, #tpu.memory_space<vmem>>, vector<10x16x128xf32>
    tpu.vector_store %arg9[%c0_47, %c0_48, %c896], %32 {strides = array<i32>} : memref<10x16x1152xf32, #tpu.memory_space<vmem>>, vector<10x16x128xf32>,
    %c2_49 = arith.constant 2 : index
    %c2_50 = arith.constant 2 : index
    %c0_51 = arith.constant 0 : index
    %34 = vector.load %arg7[%c2_49, %c2_50, %c0_51] : memref<12x18x128xf32, #tpu.memory_space<vmem>>, vector<10x16x128xf32>
    %c0_52 = arith.constant 0 : index
    %c0_53 = arith.constant 0 : index
    %c1024 = arith.constant 1024 : index
    %35 = vector.load %arg9[%c0_52, %c0_53, %c1024] : memref<10x16x1152xf32, #tpu.memory_space<vmem>>, vector<10x16x128xf32>
    tpu.vector_store %arg9[%c0_52, %c0_53, %c1024], %34 {strides = array<i32>} : memref<10x16x1152xf32, #tpu.memory_space<vmem>>, vector<10x16x128xf32>,
    %c0_54 = arith.constant 0 : index
    %c0_55 = arith.constant 0 : index
    %c0_56 = arith.constant 0 : index
    %36 = vector.load %arg9[%c0_54, %c0_55, %c0_56] : memref<10x16x1152xf32, #tpu.memory_space<vmem>>, vector<10x16x1152xf32>
    %37 = vector.shape_cast %36 : vector<10x16x1152xf32> to vector<160x1152xf32>
    %c0_57 = arith.constant 0 : index
    %c0_58 = arith.constant 0 : index
    %38 = vector.load %arg4[%c0_57, %c0_58] : memref<1152x128xf32, #tpu.memory_space<vmem>>, vector<1152x128xf32>
    %cst_59 = arith.constant dense<0.000000e+00> : vector<160x128xf32>
    %39 = tpu.matmul %37, %38, %cst_59 {dimension_numbers = #tpu.dot_dimension_numbers<[1], [0], [0], [1], [0, 0, 1, 1], [], []>} : vector<160x1152xf32>, vector<1152x128xf32>, vector<160x128xf32> -> vector<160x128xf32>
    %40 = vector.shape_cast %39 : vector<160x128xf32> to vector<10x16x128xf32>
    %cst_60 = arith.constant 0.000000e+00 : f32
    %41 = vector.broadcast %cst_60 : f32 to vector<10x16x128xf32>
    %42 = arith.maximumf %40, %41 : vector<10x16x128xf32>
    %43 = vector.broadcast %2 : f32 to vector<10x16x128xf32>
    %44 = arith.mulf %42, %43 : vector<10x16x128xf32>
    %cst_61 = arith.constant -1.270000e+02 : f32
    %cst_62 = arith.constant 1.270000e+02 : f32
    %45 = vector.broadcast %cst_61 : f32 to vector<10x16x128xf32>
    %46 = arith.maximumf %45, %44 : vector<10x16x128xf32>
    %47 = vector.broadcast %cst_62 : f32 to vector<10x16x128xf32>
    %48 = arith.minimumf %47, %46 : vector<10x16x128xf32>
    %49 = math.roundeven %48 : vector<10x16x128xf32>
    %50 = vector.broadcast %3 : f32 to vector<10x16x128xf32>
    %51 = arith.mulf %49, %50 : vector<10x16x128xf32>
    %c0_63 = arith.constant 0 : index
    %c1_64 = arith.constant 1 : index
    %c0_65 = arith.constant 0 : index
    %52 = vector.load %arg8[%c0_63, %c1_64, %c0_65] : memref<10x18x128xf32, #tpu.memory_space<vmem>>, vector<10x16x128xf32>
    tpu.vector_store %arg8[%c0_63, %c1_64, %c0_65], %51 {strides = array<i32>} : memref<10x18x128xf32, #tpu.memory_space<vmem>>, vector<10x16x128xf32>,
    %cst_66 = arith.constant 0.000000e+00 : f32
    %53 = vector.broadcast %cst_66 : f32 to vector<10x1x128xf32>
    %c0_67 = arith.constant 0 : index
    %c0_68 = arith.constant 0 : index
    %c0_69 = arith.constant 0 : index
    %54 = vector.load %arg8[%c0_67, %c0_68, %c0_69] : memref<10x18x128xf32, #tpu.memory_space<vmem>>, vector<10x1x128xf32>
    tpu.vector_store %arg8[%c0_67, %c0_68, %c0_69], %53 {strides = array<i32>} : memref<10x18x128xf32, #tpu.memory_space<vmem>>, vector<10x1x128xf32>,
    %cst_70 = arith.constant 0.000000e+00 : f32
    %55 = vector.broadcast %cst_70 : f32 to vector<10x1x128xf32>
    %c0_71 = arith.constant 0 : index
    %c17 = arith.constant 17 : index
    %c0_72 = arith.constant 0 : index
    %56 = vector.load %arg8[%c0_71, %c17, %c0_72] : memref<10x18x128xf32, #tpu.memory_space<vmem>>, vector<10x1x128xf32>
    tpu.vector_store %arg8[%c0_71, %c17, %c0_72], %55 {strides = array<i32>} : memref<10x18x128xf32, #tpu.memory_space<vmem>>, vector<10x1x128xf32>,
    %c0_i32 = arith.constant 0 : i32
    %57 = arith.cmpi eq, %arg1, %c0_i32 : i32
    %58 = arith.extui %57 : i1 to i32
    %c0_i32_73 = arith.constant 0 : i32
    %59 = arith.cmpi ne, %58, %c0_i32_73 : i32
    scf.if %59 {
      %cst_144 = arith.constant 0.000000e+00 : f32
      %100 = vector.broadcast %cst_144 : f32 to vector<1x18x128xf32>
      %c0_145 = arith.constant 0 : index
      %c0_146 = arith.constant 0 : index
      %c0_147 = arith.constant 0 : index
      %101 = vector.load %arg8[%c0_145, %c0_146, %c0_147] : memref<10x18x128xf32, #tpu.memory_space<vmem>>, vector<1x18x128xf32>
      tpu.vector_store %arg8[%c0_145, %c0_146, %c0_147], %100 {strides = array<i32>} : memref<10x18x128xf32, #tpu.memory_space<vmem>>, vector<1x18x128xf32>,
    } else {
    }
    %c1_i32 = arith.constant 1 : i32
    %60 = arith.cmpi eq, %arg1, %c1_i32 : i32
    %61 = arith.extui %60 : i1 to i32
    %c0_i32_74 = arith.constant 0 : i32
    %62 = arith.cmpi ne, %61, %c0_i32_74 : i32
    scf.if %62 {
      %cst_144 = arith.constant 0.000000e+00 : f32
      %100 = vector.broadcast %cst_144 : f32 to vector<1x18x128xf32>
      %c9 = arith.constant 9 : index
      %c0_145 = arith.constant 0 : index
      %c0_146 = arith.constant 0 : index
      %101 = vector.load %arg8[%c9, %c0_145, %c0_146] : memref<10x18x128xf32, #tpu.memory_space<vmem>>, vector<1x18x128xf32>
      tpu.vector_store %arg8[%c9, %c0_145, %c0_146], %100 {strides = array<i32>} : memref<10x18x128xf32, #tpu.memory_space<vmem>>, vector<1x18x128xf32>,
    } else {
    }
    %c0_75 = arith.constant 0 : index
    %c0_76 = arith.constant 0 : index
    %c0_77 = arith.constant 0 : index
    %63 = vector.load %arg8[%c0_75, %c0_76, %c0_77] : memref<10x18x128xf32, #tpu.memory_space<vmem>>, vector<8x16x128xf32>
    %c0_78 = arith.constant 0 : index
    %c0_79 = arith.constant 0 : index
    %c0_80 = arith.constant 0 : index
    %64 = vector.load %arg9[%c0_78, %c0_79, %c0_80] : memref<10x16x1152xf32, #tpu.memory_space<vmem>>, vector<8x16x128xf32>
    tpu.vector_store %arg9[%c0_78, %c0_79, %c0_80], %63 {strides = array<i32>} : memref<10x16x1152xf32, #tpu.memory_space<vmem>>, vector<8x16x128xf32>,
    %c0_81 = arith.constant 0 : index
    %c1_82 = arith.constant 1 : index
    %c0_83 = arith.constant 0 : index
    %65 = vector.load %arg8[%c0_81, %c1_82, %c0_83] : memref<10x18x128xf32, #tpu.memory_space<vmem>>, vector<8x16x128xf32>
    %c0_84 = arith.constant 0 : index
    %c0_85 = arith.constant 0 : index
    %c128_86 = arith.constant 128 : index
    %66 = vector.load %arg9[%c0_84, %c0_85, %c128_86] : memref<10x16x1152xf32, #tpu.memory_space<vmem>>, vector<8x16x128xf32>
    tpu.vector_store %arg9[%c0_84, %c0_85, %c128_86], %65 {strides = array<i32>} : memref<10x16x1152xf32, #tpu.memory_space<vmem>>, vector<8x16x128xf32>,
    %c0_87 = arith.constant 0 : index
    %c2_88 = arith.constant 2 : index
    %c0_89 = arith.constant 0 : index
    %67 = vector.load %arg8[%c0_87, %c2_88, %c0_89] : memref<10x18x128xf32, #tpu.memory_space<vmem>>, vector<8x16x128xf32>
    %c0_90 = arith.constant 0 : index
    %c0_91 = arith.constant 0 : index
    %c256_92 = arith.constant 256 : index
    %68 = vector.load %arg9[%c0_90, %c0_91, %c256_92] : memref<10x16x1152xf32, #tpu.memory_space<vmem>>, vector<8x16x128xf32>
    tpu.vector_store %arg9[%c0_90, %c0_91, %c256_92], %67 {strides = array<i32>} : memref<10x16x1152xf32, #tpu.memory_space<vmem>>, vector<8x16x128xf32>,
    %c1_93 = arith.constant 1 : index
    %c0_94 = arith.constant 0 : index
    %c0_95 = arith.constant 0 : index
    %69 = vector.load %arg8[%c1_93, %c0_94, %c0_95] : memref<10x18x128xf32, #tpu.memory_space<vmem>>, vector<8x16x128xf32>
    %c0_96 = arith.constant 0 : index
    %c0_97 = arith.constant 0 : index
    %c384_98 = arith.constant 384 : index
    %70 = vector.load %arg9[%c0_96, %c0_97, %c384_98] : memref<10x16x1152xf32, #tpu.memory_space<vmem>>, vector<8x16x128xf32>
    tpu.vector_store %arg9[%c0_96, %c0_97, %c384_98], %69 {strides = array<i32>} : memref<10x16x1152xf32, #tpu.memory_space<vmem>>, vector<8x16x128xf32>,
    %c1_99 = arith.constant 1 : index
    %c1_100 = arith.constant 1 : index
    %c0_101 = arith.constant 0 : index
    %71 = vector.load %arg8[%c1_99, %c1_100, %c0_101] : memref<10x18x128xf32, #tpu.memory_space<vmem>>, vector<8x16x128xf32>
    %c0_102 = arith.constant 0 : index
    %c0_103 = arith.constant 0 : index
    %c512_104 = arith.constant 512 : index
    %72 = vector.load %arg9[%c0_102, %c0_103, %c512_104] : memref<10x16x1152xf32, #tpu.memory_space<vmem>>, vector<8x16x128xf32>
    tpu.vector_store %arg9[%c0_102, %c0_103, %c512_104], %71 {strides = array<i32>} : memref<10x16x1152xf32, #tpu.memory_space<vmem>>, vector<8x16x128xf32>,
    %c1_105 = arith.constant 1 : index
    %c2_106 = arith.constant 2 : index
    %c0_107 = arith.constant 0 : index
    %73 = vector.load %arg8[%c1_105, %c2_106, %c0_107] : memref<10x18x128xf32, #tpu.memory_space<vmem>>, vector<8x16x128xf32>
    %c0_108 = arith.constant 0 : index
    %c0_109 = arith.constant 0 : index
    %c640_110 = arith.constant 640 : index
    %74 = vector.load %arg9[%c0_108, %c0_109, %c640_110] : memref<10x16x1152xf32, #tpu.memory_space<vmem>>, vector<8x16x128xf32>
    tpu.vector_store %arg9[%c0_108, %c0_109, %c640_110], %73 {strides = array<i32>} : memref<10x16x1152xf32, #tpu.memory_space<vmem>>, vector<8x16x128xf32>,
    %c2_111 = arith.constant 2 : index
    %c0_112 = arith.constant 0 : index
    %c0_113 = arith.constant 0 : index
    %75 = vector.load %arg8[%c2_111, %c0_112, %c0_113] : memref<10x18x128xf32, #tpu.memory_space<vmem>>, vector<8x16x128xf32>
    %c0_114 = arith.constant 0 : index
    %c0_115 = arith.constant 0 : index
    %c768_116 = arith.constant 768 : index
    %76 = vector.load %arg9[%c0_114, %c0_115, %c768_116] : memref<10x16x1152xf32, #tpu.memory_space<vmem>>, vector<8x16x128xf32>
    tpu.vector_store %arg9[%c0_114, %c0_115, %c768_116], %75 {strides = array<i32>} : memref<10x16x1152xf32, #tpu.memory_space<vmem>>, vector<8x16x128xf32>,
    %c2_117 = arith.constant 2 : index
    %c1_118 = arith.constant 1 : index
    %c0_119 = arith.constant 0 : index
    %77 = vector.load %arg8[%c2_117, %c1_118, %c0_119] : memref<10x18x128xf32, #tpu.memory_space<vmem>>, vector<8x16x128xf32>
    %c0_120 = arith.constant 0 : index
    %c0_121 = arith.constant 0 : index
    %c896_122 = arith.constant 896 : index
    %78 = vector.load %arg9[%c0_120, %c0_121, %c896_122] : memref<10x16x1152xf32, #tpu.memory_space<vmem>>, vector<8x16x128xf32>
    tpu.vector_store %arg9[%c0_120, %c0_121, %c896_122], %77 {strides = array<i32>} : memref<10x16x1152xf32, #tpu.memory_space<vmem>>, vector<8x16x128xf32>,
    %c2_123 = arith.constant 2 : index
    %c2_124 = arith.constant 2 : index
    %c0_125 = arith.constant 0 : index
    %79 = vector.load %arg8[%c2_123, %c2_124, %c0_125] : memref<10x18x128xf32, #tpu.memory_space<vmem>>, vector<8x16x128xf32>
    %c0_126 = arith.constant 0 : index
    %c0_127 = arith.constant 0 : index
    %c1024_128 = arith.constant 1024 : index
    %80 = vector.load %arg9[%c0_126, %c0_127, %c1024_128] : memref<10x16x1152xf32, #tpu.memory_space<vmem>>, vector<8x16x128xf32>
    tpu.vector_store %arg9[%c0_126, %c0_127, %c1024_128], %79 {strides = array<i32>} : memref<10x16x1152xf32, #tpu.memory_space<vmem>>, vector<8x16x128xf32>,
    %c0_129 = arith.constant 0 : index
    %c0_130 = arith.constant 0 : index
    %c0_131 = arith.constant 0 : index
    %81 = vector.load %arg9[%c0_129, %c0_130, %c0_131] : memref<10x16x1152xf32, #tpu.memory_space<vmem>>, vector<8x16x1152xf32>
    %82 = vector.shape_cast %81 : vector<8x16x1152xf32> to vector<128x1152xf32>
    %c0_132 = arith.constant 0 : index
    %c0_133 = arith.constant 0 : index
    %83 = vector.load %arg5[%c0_132, %c0_133] : memref<1152x128xf32, #tpu.memory_space<vmem>>, vector<1152x128xf32>
    %cst_134 = arith.constant dense<0.000000e+00> : vector<128x128xf32>
    %84 = tpu.matmul %82, %83, %cst_134 {dimension_numbers = #tpu.dot_dimension_numbers<[1], [0], [0], [1], [0, 0, 1, 1], [], []>} : vector<128x1152xf32>, vector<1152x128xf32>, vector<128x128xf32> -> vector<128x128xf32>
    %85 = vector.shape_cast %84 : vector<128x128xf32> to vector<8x16x128xf32>
    %86 = vector.broadcast %4 : f32 to vector<8x16x128xf32>
    %87 = arith.mulf %85, %86 : vector<8x16x128xf32>
    %cst_135 = arith.constant -1.270000e+02 : f32
    %cst_136 = arith.constant 1.270000e+02 : f32
    %88 = vector.broadcast %cst_135 : f32 to vector<8x16x128xf32>
    %89 = arith.maximumf %88, %87 : vector<8x16x128xf32>
    %90 = vector.broadcast %cst_136 : f32 to vector<8x16x128xf32>
    %91 = arith.minimumf %90, %89 : vector<8x16x128xf32>
    %92 = math.roundeven %91 : vector<8x16x128xf32>
    %93 = vector.broadcast %5 : f32 to vector<8x16x128xf32>
    %94 = arith.mulf %92, %93 : vector<8x16x128xf32>
    %c2_137 = arith.constant 2 : index
    %c1_138 = arith.constant 1 : index
    %c0_139 = arith.constant 0 : index
    %95 = vector.load %arg7[%c2_137, %c1_138, %c0_139] : memref<12x18x128xf32, #tpu.memory_space<vmem>>, vector<8x16x128xf32>
    %96 = arith.addf %94, %95 : vector<8x16x128xf32>
    %c0_140 = arith.constant 0 : index
    %c0_141 = arith.constant 0 : index
    %c0_142 = arith.constant 0 : index
    %c0_143 = arith.constant 0 : index
    %97 = vector.load %arg6[%c0_140, %c0_141, %c0_142, %c0_143] : memref<1x8x16x128xf32, #tpu.memory_space<vmem>>, vector<1x8x16x128xf32>
    %98 = vector.shape_cast %97 : vector<1x8x16x128xf32> to vector<8x16x128xf32>
    %99 = vector.shape_cast %96 : vector<8x16x128xf32> to vector<1x8x16x128xf32>
    tpu.vector_store %arg6[%c0_140, %c0_141, %c0_142, %c0_143], %99 {strides = array<i32>} : memref<1x8x16x128xf32, #tpu.memory_space<vmem>>, vector<1x8x16x128xf32>,
    return
  }
  func.func @transform_0(%arg0: i32, %arg1: i32) -> i32 {
    %c0_i32 = arith.constant 0 : i32
    %c0_i32_0 = arith.constant 0 : i32
    return %c0_i32 : i32
  }
  func.func @transform_1(%arg0: i32, %arg1: i32) -> (i32, i32, i32, i32) {
    %c2_i32 = arith.constant 2 : i32
    %0 = arith.muli %arg0, %c2_i32 : i32
    %1 = arith.addi %0, %arg1 : i32
    %c0_i32 = arith.constant 0 : i32
    %c0_i32_0 = arith.constant 0 : i32
    %c0_i32_1 = arith.constant 0 : i32
    %c0_i32_2 = arith.constant 0 : i32
    return %1, %c0_i32, %c0_i32_0, %c0_i32_1 : i32, i32, i32, i32
  }
  func.func @transform_2(%arg0: i32, %arg1: i32) -> (i32, i32) {
    %c0_i32 = arith.constant 0 : i32
    %c0_i32_0 = arith.constant 0 : i32
    %c0_i32_1 = arith.constant 0 : i32
    return %c0_i32, %c0_i32_0 : i32, i32
  }
  func.func @transform_3(%arg0: i32, %arg1: i32) -> (i32, i32) {
    %c0_i32 = arith.constant 0 : i32
    %c0_i32_0 = arith.constant 0 : i32
    %c0_i32_1 = arith.constant 0 : i32
    return %c0_i32, %c0_i32_0 : i32, i32
  }
  func.func @transform_4(%arg0: i32, %arg1: i32) -> (i32, i32, i32, i32) {
    %c0_i32 = arith.constant 0 : i32
    %c0_i32_0 = arith.constant 0 : i32
    %c0_i32_1 = arith.constant 0 : i32
    return %arg0, %arg1, %c0_i32, %c0_i32_0 : i32, i32, i32, i32
  }
}

</mosaic_0001>

<llo_original>
// kernel: tpu_custom_call.1
$region0: #{tpu_custom_call.1}
  #allocation0 [shape = 'u32[]', space=smem, size = 0x4, offset = 0x4, fixed_abs, tag = 'smem constant byte address 0x4 - core index']
  #allocation1 [shape = 'u32[144,128]{1,0:T(1,128)}', space=vmem, size = 0x12000, scoped, tag = 'internal scratch']
  #allocation2 [shape = 'f32[12,18,128]{2,1,0:T(8,128)}', space=vmem, size = 0x24000, scoped, tag = 'scratch operand']
  #allocation3 [shape = 'f32[10,18,128]{2,1,0:T(8,128)}', space=vmem, size = 0x1e000, scoped, tag = 'scratch operand']
  #allocation4 [shape = 'f32[10,16,1152]{2,1,0:T(8,128)}', space=vmem, size = 0xb4000, scoped, tag = 'scratch operand']
  %s0 = inlined_call_operand.hbm [shape: f32[6], index: 0, kind: input, shape index: {}]
  %s1 = inlined_call_operand.hbm [shape: f32[4,12,18,128], index: 1, kind: input, shape index: {}]
  %s2 = inlined_call_operand.hbm [shape: f32[1152,128], index: 2, kind: input, shape index: {}]
  %s3 = inlined_call_operand.hbm [shape: f32[1152,128], index: 3, kind: input, shape index: {}]
  %s4 = inlined_call_operand.hbm [shape: f32[2,16,16,128], index: 4, kind: output, shape index: {}]
  %s5 = sld [smem:[#allocation0]]
  $region73: #{tpu_custom_call.1} parent=0
    _
  %s7 = ssub.s32 1, %s5
  %s8 = scalar_select 0, %s7, %s5
  $region1: #{tpu_custom_call.1} parent=0
    #allocation5 [shape = 'u8[512]{0}', space=smem, size = 0x200, scoped, tag = 'input window, operand 0, single buffered']
    #allocation6 [shape = 's32[2]{0}', space=sflag, size = 0x8, scoped, tag = 'scoped memory for tpu_custom_call.1']
    #allocation7 [shape = 's32[2]{0}', space=sflag, size = 0x8, scoped, tag = 'scoped memory for tpu_custom_call.1']
    #allocation8 [shape = 's32[2]{0}', space=sflag, size = 0x8, scoped, tag = 'scoped memory for tpu_custom_call.1']
    #allocation9 [shape = 'u8[294912]{0}', space=vmem, size = 0x48000, scoped, tag = 'input window, operand 1']
    #allocation10 [shape = 'u8[589824]{0}', space=vmem, size = 0x90000, scoped, tag = 'input window, operand 2, single buffered']
    #allocation11 [shape = 's32[1]{0}', space=sflag, size = 0x4, scoped, tag = 'scoped memory for tpu_custom_call.1']
    #allocation12 [shape = 'u8[589824]{0}', space=vmem, size = 0x90000, scoped, tag = 'input window, operand 3, single buffered']
    #allocation13 [shape = 'u8[131072]{0}', space=vmem, size = 0x20000, scoped, tag = 'output window, operand 0']
    %9 = vsyncpa [#allocation8], 0
    %10 = vsyncpa [#allocation6], 0
    %s11 = scalar_lea.sflag [#allocation6], 1
    %12 = vsyncpa %s11, 0
    %13 = vsyncpa [#allocation11], 0
    %14 = vsyncpa [#allocation7], 0
    %s15 = scalar_lea.sflag [#allocation7], 1
    %16 = vsyncpa %s15, 0
    loop: start=0, step=1, limit=6
    $region2: #{tpu_custom_call.1} parent=1 // loop_pre_header
      _
    $region3: #{tpu_custom_call.1} parent=1 // loop_header
      %s18 = sphi 0, %s22
      %p19 = scmp.ge.s32.totalorder %s18, 6
      %s25 = sphi 0, %s37
      %s26 = sphi 0, %s33
      %s27 = sphi 0, %s25
      %s28 = sphi 0, %s26
      %s29 = sphi 0, %s27
      %s30 = sphi 0, %s28
      %s38 = sphi 0, %s38
      %s40 = sphi 0, %s38
      %s41 = sphi 0, %s40
      %s55 = sphi 0, %s41
      %s65 = sphi 0, %s67
      %s68 = sphi 0, %s65
      %s69 = sphi 0, %s68
      %s85 = sphi 0, %s69
      %s89 = sphi 0, %s89
      %s91 = sphi 0, %s89
      %s92 = sphi 0, %s91
      %s106 = sphi 0, %s92
      %s110 = sphi 0, %s110
      %s112 = sphi 0, %s110
      %s113 = sphi 0, %s112
      %s127 = sphi 0, %s113
      %s135 = sphi 0, %s137
      %s138 = sphi 0, %s135
      %s139 = sphi 0, %s138
      %s155 = sphi 0, %s139
    $region4: #{tpu_custom_call.1} parent=1 // loop_header_branch
      %21 = sbr.rel (%p19) target = $region8
    $region5: #{tpu_custom_call.1} parent=1 // loop_body
      %s23 = ssub.s32 %s18, 1
      %s24 = ssub.s32 %s18, 2
      %s31 = sadd.s32 1, %s26
      %p32 = scmp.ge.s32.totalorder %s31, 2
      %s33 = scalar_select %p32, 0, %s31
      %s34 = sadd.s32 1, %s25
      %s35 = scalar_select %p32, %s34, %s25
      %p36 = scmp.ge.s32.totalorder %s35, 2
      %s37 = scalar_select %p36, 0, %s35
      %s39 = sadd.s32 %s38, 1
      %p42 = scmp.eq.s32.totalorder %s18, 3
      %p43 = scmp.ne.s32.totalorder %s38, %s40
      %p44 = scmp.eq.s32.totalorder %s18, 0
      %p45 = por %p43, %p44
      %p46 = scmp.ne.s32.totalorder %s38, %s40
      %p47 = scmp.eq.s32.totalorder %s23, 3
      %p48 = por %p46, %p47
      %p49 = scmp.ne.s32.totalorder %s40, %s41
      %p50 = scmp.eq.s32.totalorder %s23, 0
      %p51 = por %p49, %p50
      %p52 = scmp.ne.s32.totalorder %s40, %s41
      %p53 = scmp.eq.s32.totalorder %s24, 3
      %p54 = por %p52, %p53
      %p56 = scmp.ne.s32.totalorder %s41, %s55
      %p57 = scmp.eq.s32.totalorder %s24, 0
      %p58 = por %p56, %p57
      %s59 = smul.u32 %s25, 2
      %s60 = sadd.s32 %s59, %s26
      %s61 = smul.u32 %s37, 2
      %s62 = sadd.s32 %s61, %s33
      %s63 = ssub.s32 %s60, %s62
      %p64 = scmp.eq.s32.totalorder %s63, 0
      %s66 = sadd.s32 %s65, 1
      %s67 = scalar_select %p64, %s65, %s66
      %p70 = pneg %p64
      %p71 = scmp.eq.s32.totalorder %s18, 3
      %p72 = por %p70, %p71
      %p73 = scmp.ne.s32.totalorder %s65, %s68
      %p74 = scmp.eq.s32.totalorder %s18, 0
      %p75 = por %p73, %p74
      %p76 = scmp.ne.s32.totalorder %s65, %s68
      %p77 = scmp.eq.s32.totalorder %s23, 3
      %p78 = por %p76, %p77
      %p79 = scmp.ne.s32.totalorder %s68, %s69
      %p80 = scmp.eq.s32.totalorder %s23, 0
      %p81 = por %p79, %p80
      %p82 = scmp.ne.s32.totalorder %s68, %s69
      %p83 = scmp.eq.s32.totalorder %s24, 3
      %p84 = por %p82, %p83
      %p86 = scmp.ne.s32.totalorder %s69, %s85
      %p87 = scmp.eq.s32.totalorder %s24, 0
      %p88 = por %p86, %p87
      %s90 = sadd.s32 %s89, 1
      %p93 = scmp.eq.s32.totalorder %s18, 3
      %p94 = scmp.ne.s32.totalorder %s89, %s91
      %p95 = scmp.eq.s32.totalorder %s18, 0
      %p96 = por %p94, %p95
      %p97 = scmp.ne.s32.totalorder %s89, %s91
      %p98 = scmp.eq.s32.totalorder %s23, 3
      %p99 = por %p97, %p98
      %p100 = scmp.ne.s32.totalorder %s91, %s92
      %p101 = scmp.eq.s32.totalorder %s23, 0
      %p102 = por %p100, %p101
      %p103 = scmp.ne.s32.totalorder %s91, %s92
      %p104 = scmp.eq.s32.totalorder %s24, 3
      %p105 = por %p103, %p104
      %p107 = scmp.ne.s32.totalorder %s92, %s106
      %p108 = scmp.eq.s32.totalorder %s24, 0
      %p109 = por %p107, %p108
      %s111 = sadd.s32 %s110, 1
      %p114 = scmp.eq.s32.totalorder %s18, 3
      %p115 = scmp.ne.s32.totalorder %s110, %s112
      %p116 = scmp.eq.s32.totalorder %s18, 0
      %p117 = por %p115, %p116
      %p118 = scmp.ne.s32.totalorder %s110, %s112
      %p119 = scmp.eq.s32.totalorder %s23, 3
      %p120 = por %p118, %p119
      %p121 = scmp.ne.s32.totalorder %s112, %s113
      %p122 = scmp.eq.s32.totalorder %s23, 0
      %p123 = por %p121, %p122
      %p124 = scmp.ne.s32.totalorder %s112, %s113
      %p125 = scmp.eq.s32.totalorder %s24, 3
      %p126 = por %p124, %p125
      %p128 = scmp.ne.s32.totalorder %s113, %s127
      %p129 = scmp.eq.s32.totalorder %s24, 0
      %p130 = por %p128, %p129
      %s131 = ssub.s32 %s25, %s37
      %s132 = ssub.s32 %s26, %s33
      %s133 = sor.u32 %s131, %s132
      %p134 = scmp.eq.s32.totalorder %s133, 0
      %s136 = sadd.s32 %s135, 1
      %s137 = scalar_select %p134, %s135, %s136
      %p140 = pneg %p134
      %p141 = scmp.eq.s32.totalorder %s18, 3
      %p142 = por %p140, %p141
      %p143 = scmp.ne.s32.totalorder %s135, %s138
      %p144 = scmp.eq.s32.totalorder %s18, 0
      %p145 = por %p143, %p144
      %p146 = scmp.ne.s32.totalorder %s135, %s138
      %p147 = scmp.eq.s32.totalorder %s23, 3
      %p148 = por %p146, %p147
      %p149 = scmp.ne.s32.totalorder %s138, %s139
      %p150 = scmp.eq.s32.totalorder %s23, 0
      %p151 = por %p149, %p150
      %p152 = scmp.ne.s32.totalorder %s138, %s139
      %p153 = scmp.eq.s32.totalorder %s24, 3
      %p154 = por %p152, %p153
      %p156 = scmp.ne.s32.totalorder %s139, %s155
      %p157 = scmp.eq.s32.totalorder %s24, 0
      %p158 = por %p156, %p157
      %p159 = scmp.le.s32.totalorder 1, %s18
      %p160 = scmp.lt.s32.totalorder %s18, 5
      %p161 = pnand %p159, %p160
      %p162 = pneg %p161
      // Predicated region
      $region9: #{tpu_custom_call.1} parent=5 // pred_check
        _
      $region10: #{tpu_custom_call.1} parent=5 // pred_check_branch
        %164 = sbr.rel (%p161) target = $region12
      $region11: #{tpu_custom_call.1} parent=5 // pred_region
        %s165 = ssub.s32 %s18, 1
        // Predicated region
        $region13: #{tpu_custom_call.1} parent=11 // pred_check
          %p166 = pneg %p51
        $region14: #{tpu_custom_call.1} parent=11 // pred_check_branch
          %168 = sbr.rel (%p166) target = $region16
        $region15: #{tpu_custom_call.1} parent=11 // pred_region
          %s170 = ssub.s32 16, 16
          %171 = vsyncadd [#allocation8], %s170
          %174 = dma.hbm_to_smem %s0, 16, [#allocation5], [#allocation8]
        $region16: #{tpu_custom_call.1} parent=11 // pred_fallthru
          _
        // Predicated region
        $region17: #{tpu_custom_call.1} parent=11 // pred_check
          %p175 = pneg %p102
        $region18: #{tpu_custom_call.1} parent=11 // pred_check_branch
          %177 = sbr.rel (%p175) target = $region20
        $region19: #{tpu_custom_call.1} parent=11 // pred_region
          %s179 = ssub.s32 18432, 18432
          %180 = vsyncadd [#allocation11], %s179
          %s181 = sshll.u32 [#allocation10], 4
          %s182 = int_to_ptr.vmem [resolvable:$true] %s181
          %187 = dma.hbm_to_vmem [thread:$0]  %s2, 18432, %s182, [#allocation11], 128, 128, 8
        $region20: #{tpu_custom_call.1} parent=11 // pred_fallthru
          _
        // Predicated region
        $region21: #{tpu_custom_call.1} parent=11 // pred_check
          %p188 = pneg %p123
        $region22: #{tpu_custom_call.1} parent=11 // pred_check_branch
          %190 = sbr.rel (%p188) target = $region24
        $region23: #{tpu_custom_call.1} parent=11 // pred_region
          %s192 = ssub.s32 18432, 18432
          %193 = vsyncadd [#allocation11], %s192
          %s194 = sshll.u32 [#allocation12], 4
          %s195 = int_to_ptr.vmem [resolvable:$true] %s194
          %200 = dma.hbm_to_vmem [thread:$0]  %s3, 18432, %s195, [#allocation11], 128, 128, 8
        $region24: #{tpu_custom_call.1} parent=11 // pred_fallthru
          _
      $region12: #{tpu_custom_call.1} parent=5 // pred_fallthru
        _
      %p201 = scmp.lt.s32.totalorder %s18, 4
      // Predicated region
      $region25: #{tpu_custom_call.1} parent=5 // pred_check
        %p202 = pneg %p201
      $region26: #{tpu_custom_call.1} parent=5 // pred_check_branch
        %204 = sbr.rel (%p202) target = $region28
      $region27: #{tpu_custom_call.1} parent=5 // pred_region
        // Predicated region
        $region29: #{tpu_custom_call.1} parent=27 // pred_check
          %p205 = pneg %p75
        $region30: #{tpu_custom_call.1} parent=27 // pred_check_branch
          %207 = sbr.rel (%p205) target = $region32
        $region31: #{tpu_custom_call.1} parent=27 // pred_region
          %s208 = sand.u32 %s65, 1
          %s209 = scalar_lea.sflag [#allocation6], %s208
          %s210 = sand.u32 %s65, 1
          %s211 = smul.addr %s210, 288
          %s212 = scalar_lea.vmem [#allocation9], %s211
          %s213 = smul.u32 %s25, 2
          %s214 = sadd.s32 %s213, %s26
          %s216 = ssub.s32 4608, 4608
          %217 = vsyncadd %s209, %s216
          %s218 = smul.addr %s214, 36
          %s219 = smul.addr %s218, 128
          %s220 = scalar_lea.hbm %s1, %s219
          %s221 = sshll.u32 %s212, 4
          %s222 = int_to_ptr.vmem [resolvable:$true] %s221
          %227 = dma.hbm_to_vmem [thread:$0]  %s220, 4608, %s222, %s209, 128, 128, 8
        $region32: #{tpu_custom_call.1} parent=27 // pred_fallthru
          _
      $region28: #{tpu_custom_call.1} parent=5 // pred_fallthru
        _
      %p228 = scmp.le.s32.totalorder 1, %s18
      %p229 = scmp.lt.s32.totalorder %s18, 5
      %p230 = pnand %p228, %p229
      %p231 = pneg %p230
      // Predicated region
      $region33: #{tpu_custom_call.1} parent=5 // pred_check
        _
      $region34: #{tpu_custom_call.1} parent=5 // pred_check_branch
        %233 = sbr.rel (%p230) target = $region36
      $region35: #{tpu_custom_call.1} parent=5 // pred_region
        %s234 = ssub.s32 %s18, 1
        // Predicated region
        $region37: #{tpu_custom_call.1} parent=35 // pred_check
          %p235 = pneg %p51
        $region38: #{tpu_custom_call.1} parent=35 // pred_check_branch
          %237 = sbr.rel (%p235) target = $region40
        $region39: #{tpu_custom_call.1} parent=35 // pred_region
          %238 = dma.done [#allocation8], 16
        $region40: #{tpu_custom_call.1} parent=35 // pred_fallthru
          _
        %s239 = sand.u32 %s68, 1
        %s240 = scalar_lea.sflag [#allocation6], %s239
        %s241 = sand.u32 %s68, 1
        %s242 = smul.addr %s241, 288
        %s243 = scalar_lea.vmem [#allocation9], %s242
        // Predicated region
        $region41: #{tpu_custom_call.1} parent=35 // pred_check
          %p244 = pneg %p81
        $region42: #{tpu_custom_call.1} parent=35 // pred_check_branch
          %246 = sbr.rel (%p244) target = $region44
        $region43: #{tpu_custom_call.1} parent=35 // pred_region
          %247 = dma.done %s240, 4608
        $region44: #{tpu_custom_call.1} parent=35 // pred_fallthru
          _
        // Predicated region
        $region45: #{tpu_custom_call.1} parent=35 // pred_check
          %p248 = pneg %p102
        $region46: #{tpu_custom_call.1} parent=35 // pred_check_branch
          %250 = sbr.rel (%p248) target = $region48
        $region47: #{tpu_custom_call.1} parent=35 // pred_region
          %251 = dma.done [#allocation11], 18432
        $region48: #{tpu_custom_call.1} parent=35 // pred_fallthru
          _
        // Predicated region
        $region49: #{tpu_custom_call.1} parent=35 // pred_check
          %p252 = pneg %p123
        $region50: #{tpu_custom_call.1} parent=35 // pred_check_branch
          %254 = sbr.rel (%p252) target = $region52
        $region51: #{tpu_custom_call.1} parent=35 // pred_region
          %255 = dma.done [#allocation11], 18432
        $region52: #{tpu_custom_call.1} parent=35 // pred_fallthru
          _
        %256 = sfence
        %p257 = pneg %p51
        %p258 = pneg %p48
        %s259 = sand.u32 %s68, 1
        %s260 = scalar_lea.sflag [#allocation6], %s259
        %s261 = sand.u32 %s68, 1
        %s262 = smul.addr %s261, 288
        %s263 = scalar_lea.vmem [#allocation9], %s262
        %p264 = pneg %p81
        %p265 = pneg %p78
        %p266 = pneg %p102
        %p267 = pneg %p99
        %p268 = pneg %p123
        %p269 = pneg %p120
        %p270 = pneg %p151
        %p271 = pneg %p148
        %s272 = sand.u32 %s138, 1
        %s273 = scalar_lea.sflag [#allocation7], %s272
        %s274 = sand.u32 %s138, 1
        %s275 = smul.addr %s274, 128
        %s276 = scalar_lea.vmem [#allocation13], %s275
        %s277 = smul.u32 %s27, 2
        %s278 = sadd.s32 %s277, %s28
        %s279 = smul.u32 8, %s28
        %s280 = sld [smem:[#allocation5]]
        %s281 = sld [smem:[#allocation5 + $0x1]]
        %s282 = sld [smem:[#allocation5 + $0x2]]
        %s283 = sld [smem:[#allocation5 + $0x3]]
        %s284 = sld [smem:[#allocation5 + $0x4]]
        %s285 = sld [smem:[#allocation5 + $0x5]]
        %v286 = vld [vmem:[%s243] sm:$0xff]
        %v287 = vld [vmem:[%s243 + $0x8] sm:$0xff]
        %v288 = vld [vmem:[%s243 + $0x10] sm:$0x3]
        %v289 = vld [vmem:[%s243 + $0x18] sm:$0xff]
        %v290 = vld [vmem:[%s243 + $0x20] sm:$0xff]
        %v291 = vld [vmem:[%s243 + $0x28] sm:$0x3]
        %v292 = vld [vmem:[%s243 + $0x30] sm:$0xff]
        %v293 = vld [vmem:[%s243 + $0x38] sm:$0xff]
        %v294 = vld [vmem:[%s243 + $0x40] sm:$0x3]
        %v295 = vld [vmem:[%s243 + $0x48] sm:$0xff]
        %v296 = vld [vmem:[%s243 + $0x50] sm:$0xff]
        %v297 = vld [vmem:[%s243 + $0x58] sm:$0x3]
        %v298 = vld [vmem:[%s243 + $0x60] sm:$0xff]
        %v299 = vld [vmem:[%s243 + $0x68] sm:$0xff]
        %v300 = vld [vmem:[%s243 + $0x70] sm:$0x3]
        %v301 = vld [vmem:[%s243 + $0x78] sm:$0xff]
        %v302 = vld [vmem:[%s243 + $0x80] sm:$0xff]
        %v303 = vld [vmem:[%s243 + $0x88] sm:$0x3]
        %v304 = vld [vmem:[%s243 + $0x90] sm:$0xff]
        %v305 = vld [vmem:[%s243 + $0x98] sm:$0xff]
        %v306 = vld [vmem:[%s243 + $0xa0] sm:$0x3]
        %v307 = vld [vmem:[%s243 + $0xa8] sm:$0xff]
        %v308 = vld [vmem:[%s243 + $0xb0] sm:$0xff]
        %v309 = vld [vmem:[%s243 + $0xb8] sm:$0x3]
        %v310 = vld [vmem:[%s243 + $0xc0] sm:$0xff]
        %v311 = vld [vmem:[%s243 + $0xc8] sm:$0xff]
        %v312 = vld [vmem:[%s243 + $0xd0] sm:$0x3]
        %v313 = vld [vmem:[%s243 + $0xd8] sm:$0xff]
        %v314 = vld [vmem:[%s243 + $0xe0] sm:$0xff]
        %v315 = vld [vmem:[%s243 + $0xe8] sm:$0x3]
        %v316 = vld [vmem:[%s243 + $0xf0] sm:$0xff]
        %v317 = vld [vmem:[%s243 + $0xf8] sm:$0xff]
        %v318 = vld [vmem:[%s243 + $0x100] sm:$0x3]
        %v319 = vld [vmem:[%s243 + $0x108] sm:$0xff]
        %v320 = vld [vmem:[%s243 + $0x110] sm:$0xff]
        %v321 = vld [vmem:[%s243 + $0x118] sm:$0x3]
        %v322 = vstv %s280
        %v323 = vmul.f32 %v286, %v322
        %v324 = vmul.f32 %v287, %v322
        %v325 = vmul.f32 %v288, %v322
        %v326 = vmul.f32 %v289, %v322
        %v327 = vmul.f32 %v290, %v322
        %v328 = vmul.f32 %v291, %v322
        %v329 = vmul.f32 %v292, %v322
        %v330 = vmul.f32 %v293, %v322
        %v331 = vmul.f32 %v294, %v322
        %v332 = vmul.f32 %v295, %v322
        %v333 = vmul.f32 %v296, %v322
        %v334 = vmul.f32 %v297, %v322
        %v335 = vmul.f32 %v298, %v322
        %v336 = vmul.f32 %v299, %v322
        %v337 = vmul.f32 %v300, %v322
        %v338 = vmul.f32 %v301, %v322
        %v339 = vmul.f32 %v302, %v322
        %v340 = vmul.f32 %v303, %v322
        %v341 = vmul.f32 %v304, %v322
        %v342 = vmul.f32 %v305, %v322
        %v343 = vmul.f32 %v306, %v322
        %v344 = vmul.f32 %v307, %v322
        %v345 = vmul.f32 %v308, %v322
        %v346 = vmul.f32 %v309, %v322
        %v347 = vmul.f32 %v310, %v322
        %v348 = vmul.f32 %v311, %v322
        %v349 = vmul.f32 %v312, %v322
        %v350 = vmul.f32 %v313, %v322
        %v351 = vmul.f32 %v314, %v322
        %v352 = vmul.f32 %v315, %v322
        %v353 = vmul.f32 %v316, %v322
        %v354 = vmul.f32 %v317, %v322
        %v355 = vmul.f32 %v318, %v322
        %v356 = vmul.f32 %v319, %v322
        %v357 = vmul.f32 %v320, %v322
        %v358 = vmul.f32 %v321, %v322
        %v359 = vmax.f32 %v323, -127.0
        %v360 = vmax.f32 %v324, -127.0
        %v361 = vmax.f32 %v325, -127.0
        %v362 = vmax.f32 %v326, -127.0
        %v363 = vmax.f32 %v327, -127.0
        %v364 = vmax.f32 %v328, -127.0
        %v365 = vmax.f32 %v329, -127.0
        %v366 = vmax.f32 %v330, -127.0
        %v367 = vmax.f32 %v331, -127.0
        %v368 = vmax.f32 %v332, -127.0
        %v369 = vmax.f32 %v333, -127.0
        %v370 = vmax.f32 %v334, -127.0
        %v371 = vmax.f32 %v335, -127.0
        %v372 = vmax.f32 %v336, -127.0
        %v373 = vmax.f32 %v337, -127.0
        %v374 = vmax.f32 %v338, -127.0
        %v375 = vmax.f32 %v339, -127.0
        %v376 = vmax.f32 %v340, -127.0
        %v377 = vmax.f32 %v341, -127.0
        %v378 = vmax.f32 %v342, -127.0
        %v379 = vmax.f32 %v343, -127.0
        %v380 = vmax.f32 %v344, -127.0
        %v381 = vmax.f32 %v345, -127.0
        %v382 = vmax.f32 %v346, -127.0
        %v383 = vmax.f32 %v347, -127.0
        %v384 = vmax.f32 %v348, -127.0
        %v385 = vmax.f32 %v349, -127.0
        %v386 = vmax.f32 %v350, -127.0
        %v387 = vmax.f32 %v351, -127.0
        %v388 = vmax.f32 %v352, -127.0
        %v389 = vmax.f32 %v353, -127.0
        %v390 = vmax.f32 %v354, -127.0
        %v391 = vmax.f32 %v355, -127.0
        %v392 = vmax.f32 %v356, -127.0
        %v393 = vmax.f32 %v357, -127.0
        %v394 = vmax.f32 %v358, -127.0
        %v395 = vmin.f32 %v359, 127.0
        %v396 = vmin.f32 %v360, 127.0
        %v397 = vmin.f32 %v361, 127.0
        %v398 = vmin.f32 %v362, 127.0
        %v399 = vmin.f32 %v363, 127.0
        %v400 = vmin.f32 %v364, 127.0
        %v401 = vmin.f32 %v365, 127.0
        %v402 = vmin.f32 %v366, 127.0
        %v403 = vmin.f32 %v367, 127.0
        %v404 = vmin.f32 %v368, 127.0
        %v405 = vmin.f32 %v369, 127.0
        %v406 = vmin.f32 %v370, 127.0
        %v407 = vmin.f32 %v371, 127.0
        %v408 = vmin.f32 %v372, 127.0
        %v409 = vmin.f32 %v373, 127.0
        %v410 = vmin.f32 %v374, 127.0
        %v411 = vmin.f32 %v375, 127.0
        %v412 = vmin.f32 %v376, 127.0
        %v413 = vmin.f32 %v377, 127.0
        %v414 = vmin.f32 %v378, 127.0
        %v415 = vmin.f32 %v379, 127.0
        %v416 = vmin.f32 %v380, 127.0
        %v417 = vmin.f32 %v381, 127.0
        %v418 = vmin.f32 %v382, 127.0
        %v419 = vmin.f32 %v383, 127.0
        %v420 = vmin.f32 %v384, 127.0
        %v421 = vmin.f32 %v385, 127.0
        %v422 = vmin.f32 %v386, 127.0
        %v423 = vmin.f32 %v387, 127.0
        %v424 = vmin.f32 %v388, 127.0
        %v425 = vmin.f32 %v389, 127.0
        %v426 = vmin.f32 %v390, 127.0
        %v427 = vmin.f32 %v391, 127.0
        %v428 = vmin.f32 %v392, 127.0
        %v429 = vmin.f32 %v393, 127.0
        %v430 = vmin.f32 %v394, 127.0
        %v431 = vround.ne.pseudo %v395
        %v432 = vround.ne.pseudo %v396
        %v433 = vround.ne.pseudo %v397
        %v434 = vround.ne.pseudo %v398
        %v435 = vround.ne.pseudo %v399
        %v436 = vround.ne.pseudo %v400
        %v437 = vround.ne.pseudo %v401
        %v438 = vround.ne.pseudo %v402
        %v439 = vround.ne.pseudo %v403
        %v440 = vround.ne.pseudo %v404
        %v441 = vround.ne.pseudo %v405
        %v442 = vround.ne.pseudo %v406
        %v443 = vround.ne.pseudo %v407
        %v444 = vround.ne.pseudo %v408
        %v445 = vround.ne.pseudo %v409
        %v446 = vround.ne.pseudo %v410
        %v447 = vround.ne.pseudo %v411
        %v448 = vround.ne.pseudo %v412
        %v449 = vround.ne.pseudo %v413
        %v450 = vround.ne.pseudo %v414
        %v451 = vround.ne.pseudo %v415
        %v452 = vround.ne.pseudo %v416
        %v453 = vround.ne.pseudo %v417
        %v454 = vround.ne.pseudo %v418
        %v455 = vround.ne.pseudo %v419
        %v456 = vround.ne.pseudo %v420
        %v457 = vround.ne.pseudo %v421
        %v458 = vround.ne.pseudo %v422
        %v459 = vround.ne.pseudo %v423
        %v460 = vround.ne.pseudo %v424
        %v461 = vround.ne.pseudo %v425
        %v462 = vround.ne.pseudo %v426
        %v463 = vround.ne.pseudo %v427
        %v464 = vround.ne.pseudo %v428
        %v465 = vround.ne.pseudo %v429
        %v466 = vround.ne.pseudo %v430
        %v467 = vstv %s281
        %v468 = vmul.f32 %v431, %v467
        %v469 = vmul.f32 %v432, %v467
        %v470 = vmul.f32 %v433, %v467
        %v471 = vmul.f32 %v434, %v467
        %v472 = vmul.f32 %v435, %v467
        %v473 = vmul.f32 %v436, %v467
        %v474 = vmul.f32 %v437, %v467
        %v475 = vmul.f32 %v438, %v467
        %v476 = vmul.f32 %v439, %v467
        %v477 = vmul.f32 %v440, %v467
        %v478 = vmul.f32 %v441, %v467
        %v479 = vmul.f32 %v442, %v467
        %v480 = vmul.f32 %v443, %v467
        %v481 = vmul.f32 %v444, %v467
        %v482 = vmul.f32 %v445, %v467
        %v483 = vmul.f32 %v446, %v467
        %v484 = vmul.f32 %v447, %v467
        %v485 = vmul.f32 %v448, %v467
        %v486 = vmul.f32 %v449, %v467
        %v487 = vmul.f32 %v450, %v467
        %v488 = vmul.f32 %v451, %v467
        %v489 = vmul.f32 %v452, %v467
        %v490 = vmul.f32 %v453, %v467
        %v491 = vmul.f32 %v454, %v467
        %v492 = vmul.f32 %v455, %v467
        %v493 = vmul.f32 %v456, %v467
        %v494 = vmul.f32 %v457, %v467
        %v495 = vmul.f32 %v458, %v467
        %v496 = vmul.f32 %v459, %v467
        %v497 = vmul.f32 %v460, %v467
        %v498 = vmul.f32 %v461, %v467
        %v499 = vmul.f32 %v462, %v467
        %v500 = vmul.f32 %v463, %v467
        %v501 = vmul.f32 %v464, %v467
        %v502 = vmul.f32 %v465, %v467
        %v503 = vmul.f32 %v466, %v467
        %504 = vst [vmem:[#allocation2] sm:$0xff] %v468
        %505 = vst [vmem:[#allocation2 + $0x8] sm:$0xff] %v469
        %506 = vst [vmem:[#allocation2 + $0x10] sm:$0x3] %v470
        %507 = vst [vmem:[#allocation2 + $0x18] sm:$0xff] %v471
        %508 = vst [vmem:[#allocation2 + $0x20] sm:$0xff] %v472
        %509 = vst [vmem:[#allocation2 + $0x28] sm:$0x3] %v473
        %510 = vst [vmem:[#allocation2 + $0x30] sm:$0xff] %v474
        %511 = vst [vmem:[#allocation2 + $0x38] sm:$0xff] %v475
        %512 = vst [vmem:[#allocation2 + $0x40] sm:$0x3] %v476
        %513 = vst [vmem:[#allocation2 + $0x48] sm:$0xff] %v477
        %514 = vst [vmem:[#allocation2 + $0x50] sm:$0xff] %v478
        %515 = vst [vmem:[#allocation2 + $0x58] sm:$0x3] %v479
        %516 = vst [vmem:[#allocation2 + $0x60] sm:$0xff] %v480
        %517 = vst [vmem:[#allocation2 + $0x68] sm:$0xff] %v481
        %518 = vst [vmem:[#allocation2 + $0x70] sm:$0x3] %v482
        %519 = vst [vmem:[#allocation2 + $0x78] sm:$0xff] %v483
        %520 = vst [vmem:[#allocation2 + $0x80] sm:$0xff] %v484
        %521 = vst [vmem:[#allocation2 + $0x88] sm:$0x3] %v485
        %522 = vst [vmem:[#allocation2 + $0x90] sm:$0xff] %v486
        %523 = vst [vmem:[#allocation2 + $0x98] sm:$0xff] %v487
        %524 = vst [vmem:[#allocation2 + $0xa0] sm:$0x3] %v488
        %525 = vst [vmem:[#allocation2 + $0xa8] sm:$0xff] %v489
        %526 = vst [vmem:[#allocation2 + $0xb0] sm:$0xff] %v490
        %527 = vst [vmem:[#allocation2 + $0xb8] sm:$0x3] %v491
        %528 = vst [vmem:[#allocation2 + $0xc0] sm:$0xff] %v492
        %529 = vst [vmem:[#allocation2 + $0xc8] sm:$0xff] %v493
        %530 = vst [vmem:[#allocation2 + $0xd0] sm:$0x3] %v494
        %531 = vst [vmem:[#allocation2 + $0xd8] sm:$0xff] %v495
        %532 = vst [vmem:[#allocation2 + $0xe0] sm:$0xff] %v496
        %533 = vst [vmem:[#allocation2 + $0xe8] sm:$0x3] %v497
        %534 = vst [vmem:[#allocation2 + $0xf0] sm:$0xff] %v498
        %535 = vst [vmem:[#allocation2 + $0xf8] sm:$0xff] %v499
        %536 = vst [vmem:[#allocation2 + $0x100] sm:$0x3] %v500
        %537 = vst [vmem:[#allocation2 + $0x108] sm:$0xff] %v501
        %538 = vst [vmem:[#allocation2 + $0x110] sm:$0xff] %v502
        %539 = vst [vmem:[#allocation2 + $0x118] sm:$0x3] %v503
        %v540 = vld [vmem:[#allocation2] sm:$0xff]
        %v541 = vld [vmem:[#allocation2 + $0x8] sm:$0xff]
        %v542 = vld [vmem:[#allocation2 + $0x18] sm:$0xff]
        %v543 = vld [vmem:[#allocation2 + $0x20] sm:$0xff]
        %v544 = vld [vmem:[#allocation2 + $0x30] sm:$0xff]
        %v545 = vld [vmem:[#allocation2 + $0x38] sm:$0xff]
        %v546 = vld [vmem:[#allocation2 + $0x48] sm:$0xff]
        %v547 = vld [vmem:[#allocation2 + $0x50] sm:$0xff]
        %v548 = vld [vmem:[#allocation2 + $0x60] sm:$0xff]
        %v549 = vld [vmem:[#allocation2 + $0x68] sm:$0xff]
        %v550 = vld [vmem:[#allocation2 + $0x78] sm:$0xff]
        %v551 = vld [vmem:[#allocation2 + $0x80] sm:$0xff]
        %v552 = vld [vmem:[#allocation2 + $0x90] sm:$0xff]
        %v553 = vld [vmem:[#allocation2 + $0x98] sm:$0xff]
        %v554 = vld [vmem:[#allocation2 + $0xa8] sm:$0xff]
        %v555 = vld [vmem:[#allocation2 + $0xb0] sm:$0xff]
        %v556 = vld [vmem:[#allocation2 + $0xc0] sm:$0xff]
        %v557 = vld [vmem:[#allocation2 + $0xc8] sm:$0xff]
        %v558 = vld [vmem:[#allocation2 + $0xd8] sm:$0xff]
        %v559 = vld [vmem:[#allocation2 + $0xe0] sm:$0xff]
        %560 = vst [vmem:[#allocation4] sm:$0xff] %v540
        %561 = vst [vmem:[#allocation4 + $0x48] sm:$0xff] %v541
        %562 = vst [vmem:[#allocation4 + $0x90] sm:$0xff] %v542
        %563 = vst [vmem:[#allocation4 + $0xd8] sm:$0xff] %v543
        %564 = vst [vmem:[#allocation4 + $0x120] sm:$0xff] %v544
        %565 = vst [vmem:[#allocation4 + $0x168] sm:$0xff] %v545
        %566 = vst [vmem:[#allocation4 + $0x1b0] sm:$0xff] %v546
        %567 = vst [vmem:[#allocation4 + $0x1f8] sm:$0xff] %v547
        %568 = vst [vmem:[#allocation4 + $0x240] sm:$0xff] %v548
        %569 = vst [vmem:[#allocation4 + $0x288] sm:$0xff] %v549
        %570 = vst [vmem:[#allocation4 + $0x2d0] sm:$0xff] %v550
        %571 = vst [vmem:[#allocation4 + $0x318] sm:$0xff] %v551
        %572 = vst [vmem:[#allocation4 + $0x360] sm:$0xff] %v552
        %573 = vst [vmem:[#allocation4 + $0x3a8] sm:$0xff] %v553
        %574 = vst [vmem:[#allocation4 + $0x3f0] sm:$0xff] %v554
        %575 = vst [vmem:[#allocation4 + $0x438] sm:$0xff] %v555
        %576 = vst [vmem:[#allocation4 + $0x480] sm:$0xff] %v556
        %577 = vst [vmem:[#allocation4 + $0x4c8] sm:$0xff] %v557
        %578 = vst [vmem:[#allocation4 + $0x510] sm:$0xff] %v558
        %579 = vst [vmem:[#allocation4 + $0x558] sm:$0xff] %v559
        %v580 = vld [vmem:[#allocation2 + $0x1] sm:$0xff]
        %v581 = vld [vmem:[#allocation2 + $0x9] sm:$0xff]
        %v582 = vld [vmem:[#allocation2 + $0x19] sm:$0xff]
        %v583 = vld [vmem:[#allocation2 + $0x21] sm:$0xff]
        %v584 = vld [vmem:[#allocation2 + $0x31] sm:$0xff]
        %v585 = vld [vmem:[#allocation2 + $0x39] sm:$0xff]
        %v586 = vld [vmem:[#allocation2 + $0x49] sm:$0xff]
        %v587 = vld [vmem:[#allocation2 + $0x51] sm:$0xff]
        %v588 = vld [vmem:[#allocation2 + $0x61] sm:$0xff]
        %v589 = vld [vmem:[#allocation2 + $0x69] sm:$0xff]
        %v590 = vld [vmem:[#allocation2 + $0x79] sm:$0xff]
        %v591 = vld [vmem:[#allocation2 + $0x81] sm:$0xff]
        %v592 = vld [vmem:[#allocation2 + $0x91] sm:$0xff]
        %v593 = vld [vmem:[#allocation2 + $0x99] sm:$0xff]
        %v594 = vld [vmem:[#allocation2 + $0xa9] sm:$0xff]
        %v595 = vld [vmem:[#allocation2 + $0xb1] sm:$0xff]
        %v596 = vld [vmem:[#allocation2 + $0xc1] sm:$0xff]
        %v597 = vld [vmem:[#allocation2 + $0xc9] sm:$0xff]
        %v598 = vld [vmem:[#allocation2 + $0xd9] sm:$0xff]
        %v599 = vld [vmem:[#allocation2 + $0xe1] sm:$0xff]
        %600 = vst [vmem:[#allocation4 + $0x8] sm:$0xff] %v580
        %601 = vst [vmem:[#allocation4 + $0x50] sm:$0xff] %v581
        %602 = vst [vmem:[#allocation4 + $0x98] sm:$0xff] %v582
        %603 = vst [vmem:[#allocation4 + $0xe0] sm:$0xff] %v583
        %604 = vst [vmem:[#allocation4 + $0x128] sm:$0xff] %v584
        %605 = vst [vmem:[#allocation4 + $0x170] sm:$0xff] %v585
        %606 = vst [vmem:[#allocation4 + $0x1b8] sm:$0xff] %v586
        %607 = vst [vmem:[#allocation4 + $0x200] sm:$0xff] %v587
        %608 = vst [vmem:[#allocation4 + $0x248] sm:$0xff] %v588
        %609 = vst [vmem:[#allocation4 + $0x290] sm:$0xff] %v589
        %610 = vst [vmem:[#allocation4 + $0x2d8] sm:$0xff] %v590
        %611 = vst [vmem:[#allocation4 + $0x320] sm:$0xff] %v591
        %612 = vst [vmem:[#allocation4 + $0x368] sm:$0xff] %v592
        %613 = vst [vmem:[#allocation4 + $0x3b0] sm:$0xff] %v593
        %614 = vst [vmem:[#allocation4 + $0x3f8] sm:$0xff] %v594
        %615 = vst [vmem:[#allocation4 + $0x440] sm:$0xff] %v595
        %616 = vst [vmem:[#allocation4 + $0x488] sm:$0xff] %v596
        %617 = vst [vmem:[#allocation4 + $0x4d0] sm:$0xff] %v597
        %618 = vst [vmem:[#allocation4 + $0x518] sm:$0xff] %v598
        %619 = vst [vmem:[#allocation4 + $0x560] sm:$0xff] %v599
        %v620 = vld [vmem:[#allocation2 + $0x2] sm:$0xff]
        %v621 = vld [vmem:[#allocation2 + $0xa] sm:$0xff]
        %v622 = vld [vmem:[#allocation2 + $0x1a] sm:$0xff]
        %v623 = vld [vmem:[#allocation2 + $0x22] sm:$0xff]
        %v624 = vld [vmem:[#allocation2 + $0x32] sm:$0xff]
        %v625 = vld [vmem:[#allocation2 + $0x3a] sm:$0xff]
        %v626 = vld [vmem:[#allocation2 + $0x4a] sm:$0xff]
        %v627 = vld [vmem:[#allocation2 + $0x52] sm:$0xff]
        %v628 = vld [vmem:[#allocation2 + $0x62] sm:$0xff]
        %v629 = vld [vmem:[#allocation2 + $0x6a] sm:$0xff]
        %v630 = vld [vmem:[#allocation2 + $0x7a] sm:$0xff]
        %v631 = vld [vmem:[#allocation2 + $0x82] sm:$0xff]
        %v632 = vld [vmem:[#allocation2 + $0x92] sm:$0xff]
        %v633 = vld [vmem:[#allocation2 + $0x9a] sm:$0xff]
        %v634 = vld [vmem:[#allocation2 + $0xaa] sm:$0xff]
        %v635 = vld [vmem:[#allocation2 + $0xb2] sm:$0xff]
        %v636 = vld [vmem:[#allocation2 + $0xc2] sm:$0xff]
        %v637 = vld [vmem:[#allocation2 + $0xca] sm:$0xff]
        %v638 = vld [vmem:[#allocation2 + $0xda] sm:$0xff]
        %v639 = vld [vmem:[#allocation2 + $0xe2] sm:$0xff]
        %640 = vst [vmem:[#allocation4 + $0x10] sm:$0xff] %v620
        %641 = vst [vmem:[#allocation4 + $0x58] sm:$0xff] %v621
        %642 = vst [vmem:[#allocation4 + $0xa0] sm:$0xff] %v622
        %643 = vst [vmem:[#allocation4 + $0xe8] sm:$0xff] %v623
        %644 = vst [vmem:[#allocation4 + $0x130] sm:$0xff] %v624
        %645 = vst [vmem:[#allocation4 + $0x178] sm:$0xff] %v625
        %646 = vst [vmem:[#allocation4 + $0x1c0] sm:$0xff] %v626
        %647 = vst [vmem:[#allocation4 + $0x208] sm:$0xff] %v627
        %648 = vst [vmem:[#allocation4 + $0x250] sm:$0xff] %v628
        %649 = vst [vmem:[#allocation4 + $0x298] sm:$0xff] %v629
        %650 = vst [vmem:[#allocation4 + $0x2e0] sm:$0xff] %v630
        %651 = vst [vmem:[#allocation4 + $0x328] sm:$0xff] %v631
        %652 = vst [vmem:[#allocation4 + $0x370] sm:$0xff] %v632
        %653 = vst [vmem:[#allocation4 + $0x3b8] sm:$0xff] %v633
        %654 = vst [vmem:[#allocation4 + $0x400] sm:$0xff] %v634
        %655 = vst [vmem:[#allocation4 + $0x448] sm:$0xff] %v635
        %656 = vst [vmem:[#allocation4 + $0x490] sm:$0xff] %v636
        %657 = vst [vmem:[#allocation4 + $0x4d8] sm:$0xff] %v637
        %658 = vst [vmem:[#allocation4 + $0x520] sm:$0xff] %v638
        %659 = vst [vmem:[#allocation4 + $0x568] sm:$0xff] %v639
        %s660 = scalar_lea.vmem [#allocation2], 24
        %v661 = vld [vmem:[%s660] sm:$0xff]
        %v662 = vld [vmem:[%s660 + $0x8] sm:$0xff]
        %v663 = vld [vmem:[%s660 + $0x18] sm:$0xff]
        %v664 = vld [vmem:[%s660 + $0x20] sm:$0xff]
        %v665 = vld [vmem:[%s660 + $0x30] sm:$0xff]
        %v666 = vld [vmem:[%s660 + $0x38] sm:$0xff]
        %v667 = vld [vmem:[%s660 + $0x48] sm:$0xff]
        %v668 = vld [vmem:[%s660 + $0x50] sm:$0xff]
        %v669 = vld [vmem:[%s660 + $0x60] sm:$0xff]
        %v670 = vld [vmem:[%s660 + $0x68] sm:$0xff]
        %v671 = vld [vmem:[%s660 + $0x78] sm:$0xff]
        %v672 = vld [vmem:[%s660 + $0x80] sm:$0xff]
        %v673 = vld [vmem:[%s660 + $0x90] sm:$0xff]
        %v674 = vld [vmem:[%s660 + $0x98] sm:$0xff]
        %v675 = vld [vmem:[%s660 + $0xa8] sm:$0xff]
        %v676 = vld [vmem:[%s660 + $0xb0] sm:$0xff]
        %v677 = vld [vmem:[%s660 + $0xc0] sm:$0xff]
        %v678 = vld [vmem:[%s660 + $0xc8] sm:$0xff]
        %v679 = vld [vmem:[%s660 + $0xd8] sm:$0xff]
        %v680 = vld [vmem:[%s660 + $0xe0] sm:$0xff]
        %681 = vst [vmem:[#allocation4 + $0x18] sm:$0xff] %v661
        %682 = vst [vmem:[#allocation4 + $0x60] sm:$0xff] %v662
        %683 = vst [vmem:[#allocation4 + $0xa8] sm:$0xff] %v663
        %684 = vst [vmem:[#allocation4 + $0xf0] sm:$0xff] %v664
        %685 = vst [vmem:[#allocation4 + $0x138] sm:$0xff] %v665
        %686 = vst [vmem:[#allocation4 + $0x180] sm:$0xff] %v666
        %687 = vst [vmem:[#allocation4 + $0x1c8] sm:$0xff] %v667
        %688 = vst [vmem:[#allocation4 + $0x210] sm:$0xff] %v668
        %689 = vst [vmem:[#allocation4 + $0x258] sm:$0xff] %v669
        %690 = vst [vmem:[#allocation4 + $0x2a0] sm:$0xff] %v670
        %691 = vst [vmem:[#allocation4 + $0x2e8] sm:$0xff] %v671
        %692 = vst [vmem:[#allocation4 + $0x330] sm:$0xff] %v672
        %693 = vst [vmem:[#allocation4 + $0x378] sm:$0xff] %v673
        %694 = vst [vmem:[#allocation4 + $0x3c0] sm:$0xff] %v674
        %695 = vst [vmem:[#allocation4 + $0x408] sm:$0xff] %v675
        %696 = vst [vmem:[#allocation4 + $0x450] sm:$0xff] %v676
        %697 = vst [vmem:[#allocation4 + $0x498] sm:$0xff] %v677
        %698 = vst [vmem:[#allocation4 + $0x4e0] sm:$0xff] %v678
        %699 = vst [vmem:[#allocation4 + $0x528] sm:$0xff] %v679
        %700 = vst [vmem:[#allocation4 + $0x570] sm:$0xff] %v680
        %v701 = vld [vmem:[%s660 + $0x1] sm:$0xff]
        %v702 = vld [vmem:[%s660 + $0x9] sm:$0xff]
        %v703 = vld [vmem:[%s660 + $0x19] sm:$0xff]
        %v704 = vld [vmem:[%s660 + $0x21] sm:$0xff]
        %v705 = vld [vmem:[%s660 + $0x31] sm:$0xff]
        %v706 = vld [vmem:[%s660 + $0x39] sm:$0xff]
        %v707 = vld [vmem:[%s660 + $0x49] sm:$0xff]
        %v708 = vld [vmem:[%s660 + $0x51] sm:$0xff]
        %v709 = vld [vmem:[%s660 + $0x61] sm:$0xff]
        %v710 = vld [vmem:[%s660 + $0x69] sm:$0xff]
        %v711 = vld [vmem:[%s660 + $0x79] sm:$0xff]
        %v712 = vld [vmem:[%s660 + $0x81] sm:$0xff]
        %v713 = vld [vmem:[%s660 + $0x91] sm:$0xff]
        %v714 = vld [vmem:[%s660 + $0x99] sm:$0xff]
        %v715 = vld [vmem:[%s660 + $0xa9] sm:$0xff]
        %v716 = vld [vmem:[%s660 + $0xb1] sm:$0xff]
        %v717 = vld [vmem:[%s660 + $0xc1] sm:$0xff]
        %v718 = vld [vmem:[%s660 + $0xc9] sm:$0xff]
        %v719 = vld [vmem:[%s660 + $0xd9] sm:$0xff]
        %v720 = vld [vmem:[%s660 + $0xe1] sm:$0xff]
        %721 = vst [vmem:[#allocation4 + $0x20] sm:$0xff] %v701
        %722 = vst [vmem:[#allocation4 + $0x68] sm:$0xff] %v702
        %723 = vst [vmem:[#allocation4 + $0xb0] sm:$0xff] %v703
        %724 = vst [vmem:[#allocation4 + $0xf8] sm:$0xff] %v704
        %725 = vst [vmem:[#allocation4 + $0x140] sm:$0xff] %v705
        %726 = vst [vmem:[#allocation4 + $0x188] sm:$0xff] %v706
        %727 = vst [vmem:[#allocation4 + $0x1d0] sm:$0xff] %v707
        %728 = vst [vmem:[#allocation4 + $0x218] sm:$0xff] %v708
        %729 = vst [vmem:[#allocation4 + $0x260] sm:$0xff] %v709
        %730 = vst [vmem:[#allocation4 + $0x2a8] sm:$0xff] %v710
        %731 = vst [vmem:[#allocation4 + $0x2f0] sm:$0xff] %v711
        %732 = vst [vmem:[#allocation4 + $0x338] sm:$0xff] %v712
        %733 = vst [vmem:[#allocation4 + $0x380] sm:$0xff] %v713
        %734 = vst [vmem:[#allocation4 + $0x3c8] sm:$0xff] %v714
        %735 = vst [vmem:[#allocation4 + $0x410] sm:$0xff] %v715
        %736 = vst [vmem:[#allocation4 + $0x458] sm:$0xff] %v716
        %737 = vst [vmem:[#allocation4 + $0x4a0] sm:$0xff] %v717
        %738 = vst [vmem:[#allocation4 + $0x4e8] sm:$0xff] %v718
        %739 = vst [vmem:[#allocation4 + $0x530] sm:$0xff] %v719
        %740 = vst [vmem:[#allocation4 + $0x578] sm:$0xff] %v720
        %v741 = vld [vmem:[%s660 + $0x2] sm:$0xff]
        %v742 = vld [vmem:[%s660 + $0xa] sm:$0xff]
        %v743 = vld [vmem:[%s660 + $0x1a] sm:$0xff]
        %v744 = vld [vmem:[%s660 + $0x22] sm:$0xff]
        %v745 = vld [vmem:[%s660 + $0x32] sm:$0xff]
        %v746 = vld [vmem:[%s660 + $0x3a] sm:$0xff]
        %v747 = vld [vmem:[%s660 + $0x4a] sm:$0xff]
        %v748 = vld [vmem:[%s660 + $0x52] sm:$0xff]
        %v749 = vld [vmem:[%s660 + $0x62] sm:$0xff]
        %v750 = vld [vmem:[%s660 + $0x6a] sm:$0xff]
        %v751 = vld [vmem:[%s660 + $0x7a] sm:$0xff]
        %v752 = vld [vmem:[%s660 + $0x82] sm:$0xff]
        %v753 = vld [vmem:[%s660 + $0x92] sm:$0xff]
        %v754 = vld [vmem:[%s660 + $0x9a] sm:$0xff]
        %v755 = vld [vmem:[%s660 + $0xaa] sm:$0xff]
        %v756 = vld [vmem:[%s660 + $0xb2] sm:$0xff]
        %v757 = vld [vmem:[%s660 + $0xc2] sm:$0xff]
        %v758 = vld [vmem:[%s660 + $0xca] sm:$0xff]
        %v759 = vld [vmem:[%s660 + $0xda] sm:$0xff]
        %v760 = vld [vmem:[%s660 + $0xe2] sm:$0xff]
        %761 = vst [vmem:[#allocation4 + $0x28] sm:$0xff] %v741
        %762 = vst [vmem:[#allocation4 + $0x70] sm:$0xff] %v742
        %763 = vst [vmem:[#allocation4 + $0xb8] sm:$0xff] %v743
        %764 = vst [vmem:[#allocation4 + $0x100] sm:$0xff] %v744
        %765 = vst [vmem:[#allocation4 + $0x148] sm:$0xff] %v745
        %766 = vst [vmem:[#allocation4 + $0x190] sm:$0xff] %v746
        %767 = vst [vmem:[#allocation4 + $0x1d8] sm:$0xff] %v747
        %768 = vst [vmem:[#allocation4 + $0x220] sm:$0xff] %v748
        %769 = vst [vmem:[#allocation4 + $0x268] sm:$0xff] %v749
        %770 = vst [vmem:[#allocation4 + $0x2b0] sm:$0xff] %v750
        %771 = vst [vmem:[#allocation4 + $0x2f8] sm:$0xff] %v751
        %772 = vst [vmem:[#allocation4 + $0x340] sm:$0xff] %v752
        %773 = vst [vmem:[#allocation4 + $0x388] sm:$0xff] %v753
        %774 = vst [vmem:[#allocation4 + $0x3d0] sm:$0xff] %v754
        %775 = vst [vmem:[#allocation4 + $0x418] sm:$0xff] %v755
        %776 = vst [vmem:[#allocation4 + $0x460] sm:$0xff] %v756
        %777 = vst [vmem:[#allocation4 + $0x4a8] sm:$0xff] %v757
        %778 = vst [vmem:[#allocation4 + $0x4f0] sm:$0xff] %v758
        %779 = vst [vmem:[#allocation4 + $0x538] sm:$0xff] %v759
        %780 = vst [vmem:[#allocation4 + $0x580] sm:$0xff] %v760
        %s781 = scalar_lea.vmem [#allocation2], 48
        %v782 = vld [vmem:[%s781] sm:$0xff]
        %v783 = vld [vmem:[%s781 + $0x8] sm:$0xff]
        %v784 = vld [vmem:[%s781 + $0x18] sm:$0xff]
        %v785 = vld [vmem:[%s781 + $0x20] sm:$0xff]
        %v786 = vld [vmem:[%s781 + $0x30] sm:$0xff]
        %v787 = vld [vmem:[%s781 + $0x38] sm:$0xff]
        %v788 = vld [vmem:[%s781 + $0x48] sm:$0xff]
        %v789 = vld [vmem:[%s781 + $0x50] sm:$0xff]
        %v790 = vld [vmem:[%s781 + $0x60] sm:$0xff]
        %v791 = vld [vmem:[%s781 + $0x68] sm:$0xff]
        %v792 = vld [vmem:[%s781 + $0x78] sm:$0xff]
        %v793 = vld [vmem:[%s781 + $0x80] sm:$0xff]
        %v794 = vld [vmem:[%s781 + $0x90] sm:$0xff]
        %v795 = vld [vmem:[%s781 + $0x98] sm:$0xff]
        %v796 = vld [vmem:[%s781 + $0xa8] sm:$0xff]
        %v797 = vld [vmem:[%s781 + $0xb0] sm:$0xff]
        %v798 = vld [vmem:[%s781 + $0xc0] sm:$0xff]
        %v799 = vld [vmem:[%s781 + $0xc8] sm:$0xff]
        %v800 = vld [vmem:[%s781 + $0xd8] sm:$0xff]
        %v801 = vld [vmem:[%s781 + $0xe0] sm:$0xff]
        %802 = vst [vmem:[#allocation4 + $0x30] sm:$0xff] %v782
        %803 = vst [vmem:[#allocation4 + $0x78] sm:$0xff] %v783
        %804 = vst [vmem:[#allocation4 + $0xc0] sm:$0xff] %v784
        %805 = vst [vmem:[#allocation4 + $0x108] sm:$0xff] %v785
        %806 = vst [vmem:[#allocation4 + $0x150] sm:$0xff] %v786
        %807 = vst [vmem:[#allocation4 + $0x198] sm:$0xff] %v787
        %808 = vst [vmem:[#allocation4 + $0x1e0] sm:$0xff] %v788
        %809 = vst [vmem:[#allocation4 + $0x228] sm:$0xff] %v789
        %810 = vst [vmem:[#allocation4 + $0x270] sm:$0xff] %v790
        %811 = vst [vmem:[#allocation4 + $0x2b8] sm:$0xff] %v791
        %812 = vst [vmem:[#allocation4 + $0x300] sm:$0xff] %v792
        %813 = vst [vmem:[#allocation4 + $0x348] sm:$0xff] %v793
        %814 = vst [vmem:[#allocation4 + $0x390] sm:$0xff] %v794
        %815 = vst [vmem:[#allocation4 + $0x3d8] sm:$0xff] %v795
        %816 = vst [vmem:[#allocation4 + $0x420] sm:$0xff] %v796
        %817 = vst [vmem:[#allocation4 + $0x468] sm:$0xff] %v797
        %818 = vst [vmem:[#allocation4 + $0x4b0] sm:$0xff] %v798
        %819 = vst [vmem:[#allocation4 + $0x4f8] sm:$0xff] %v799
        %820 = vst [vmem:[#allocation4 + $0x540] sm:$0xff] %v800
        %821 = vst [vmem:[#allocation4 + $0x588] sm:$0xff] %v801
        %v822 = vld [vmem:[%s781 + $0x1] sm:$0xff]
        %v823 = vld [vmem:[%s781 + $0x9] sm:$0xff]
        %v824 = vld [vmem:[%s781 + $0x19] sm:$0xff]
        %v825 = vld [vmem:[%s781 + $0x21] sm:$0xff]
        %v826 = vld [vmem:[%s781 + $0x31] sm:$0xff]
        %v827 = vld [vmem:[%s781 + $0x39] sm:$0xff]
        %v828 = vld [vmem:[%s781 + $0x49] sm:$0xff]
        %v829 = vld [vmem:[%s781 + $0x51] sm:$0xff]
        %v830 = vld [vmem:[%s781 + $0x61] sm:$0xff]
        %v831 = vld [vmem:[%s781 + $0x69] sm:$0xff]
        %v832 = vld [vmem:[%s781 + $0x79] sm:$0xff]
        %v833 = vld [vmem:[%s781 + $0x81] sm:$0xff]
        %v834 = vld [vmem:[%s781 + $0x91] sm:$0xff]
        %v835 = vld [vmem:[%s781 + $0x99] sm:$0xff]
        %v836 = vld [vmem:[%s781 + $0xa9] sm:$0xff]
        %v837 = vld [vmem:[%s781 + $0xb1] sm:$0xff]
        %v838 = vld [vmem:[%s781 + $0xc1] sm:$0xff]
        %v839 = vld [vmem:[%s781 + $0xc9] sm:$0xff]
        %v840 = vld [vmem:[%s781 + $0xd9] sm:$0xff]
        %v841 = vld [vmem:[%s781 + $0xe1] sm:$0xff]
        %842 = vst [vmem:[#allocation4 + $0x38] sm:$0xff] %v822
        %843 = vst [vmem:[#allocation4 + $0x80] sm:$0xff] %v823
        %844 = vst [vmem:[#allocation4 + $0xc8] sm:$0xff] %v824
        %845 = vst [vmem:[#allocation4 + $0x110] sm:$0xff] %v825
        %846 = vst [vmem:[#allocation4 + $0x158] sm:$0xff] %v826
        %847 = vst [vmem:[#allocation4 + $0x1a0] sm:$0xff] %v827
        %848 = vst [vmem:[#allocation4 + $0x1e8] sm:$0xff] %v828
        %849 = vst [vmem:[#allocation4 + $0x230] sm:$0xff] %v829
        %850 = vst [vmem:[#allocation4 + $0x278] sm:$0xff] %v830
        %851 = vst [vmem:[#allocation4 + $0x2c0] sm:$0xff] %v831
        %852 = vst [vmem:[#allocation4 + $0x308] sm:$0xff] %v832
        %853 = vst [vmem:[#allocation4 + $0x350] sm:$0xff] %v833
        %854 = vst [vmem:[#allocation4 + $0x398] sm:$0xff] %v834
        %855 = vst [vmem:[#allocation4 + $0x3e0] sm:$0xff] %v835
        %856 = vst [vmem:[#allocation4 + $0x428] sm:$0xff] %v836
        %857 = vst [vmem:[#allocation4 + $0x470] sm:$0xff] %v837
        %858 = vst [vmem:[#allocation4 + $0x4b8] sm:$0xff] %v838
        %859 = vst [vmem:[#allocation4 + $0x500] sm:$0xff] %v839
        %860 = vst [vmem:[#allocation4 + $0x548] sm:$0xff] %v840
        %861 = vst [vmem:[#allocation4 + $0x590] sm:$0xff] %v841
        %v862 = vld [vmem:[%s781 + $0x2] sm:$0xff]
        %v863 = vld [vmem:[%s781 + $0xa] sm:$0xff]
        %v864 = vld [vmem:[%s781 + $0x1a] sm:$0xff]
        %v865 = vld [vmem:[%s781 + $0x22] sm:$0xff]
        %v866 = vld [vmem:[%s781 + $0x32] sm:$0xff]
        %v867 = vld [vmem:[%s781 + $0x3a] sm:$0xff]
        %v868 = vld [vmem:[%s781 + $0x4a] sm:$0xff]
        %v869 = vld [vmem:[%s781 + $0x52] sm:$0xff]
        %v870 = vld [vmem:[%s781 + $0x62] sm:$0xff]
        %v871 = vld [vmem:[%s781 + $0x6a] sm:$0xff]
        %v872 = vld [vmem:[%s781 + $0x7a] sm:$0xff]
        %v873 = vld [vmem:[%s781 + $0x82] sm:$0xff]
        %v874 = vld [vmem:[%s781 + $0x92] sm:$0xff]
        %v875 = vld [vmem:[%s781 + $0x9a] sm:$0xff]
        %v876 = vld [vmem:[%s781 + $0xaa] sm:$0xff]
        %v877 = vld [vmem:[%s781 + $0xb2] sm:$0xff]
        %v878 = vld [vmem:[%s781 + $0xc2] sm:$0xff]
        %v879 = vld [vmem:[%s781 + $0xca] sm:$0xff]
        %v880 = vld [vmem:[%s781 + $0xda] sm:$0xff]
        %v881 = vld [vmem:[%s781 + $0xe2] sm:$0xff]
        %882 = vst [vmem:[#allocation4 + $0x40] sm:$0xff] %v862
        %883 = vst [vmem:[#allocation4 + $0x88] sm:$0xff] %v863
        %884 = vst [vmem:[#allocation4 + $0xd0] sm:$0xff] %v864
        %885 = vst [vmem:[#allocation4 + $0x118] sm:$0xff] %v865
        %886 = vst [vmem:[#allocation4 + $0x160] sm:$0xff] %v866
        %887 = vst [vmem:[#allocation4 + $0x1a8] sm:$0xff] %v867
        %888 = vst [vmem:[#allocation4 + $0x1f0] sm:$0xff] %v868
        %889 = vst [vmem:[#allocation4 + $0x238] sm:$0xff] %v869
        %890 = vst [vmem:[#allocation4 + $0x280] sm:$0xff] %v870
        %891 = vst [vmem:[#allocation4 + $0x2c8] sm:$0xff] %v871
        %892 = vst [vmem:[#allocation4 + $0x310] sm:$0xff] %v872
        %893 = vst [vmem:[#allocation4 + $0x358] sm:$0xff] %v873
        %894 = vst [vmem:[#allocation4 + $0x3a0] sm:$0xff] %v874
        %895 = vst [vmem:[#allocation4 + $0x3e8] sm:$0xff] %v875
        %896 = vst [vmem:[#allocation4 + $0x430] sm:$0xff] %v876
        %897 = vst [vmem:[#allocation4 + $0x478] sm:$0xff] %v877
        %898 = vst [vmem:[#allocation4 + $0x4c0] sm:$0xff] %v878
        %899 = vst [vmem:[#allocation4 + $0x508] sm:$0xff] %v879
        %900 = vst [vmem:[#allocation4 + $0x550] sm:$0xff] %v880
        %901 = vst [vmem:[#allocation4 + $0x598] sm:$0xff] %v881
        %v902 = vld [vmem:[#allocation4] sm:$0xff]
        %v903 = vld [vmem:[#allocation4 + $0x8] sm:$0xff]
        %v904 = vld [vmem:[#allocation4 + $0x10] sm:$0xff]
        %v905 = vld [vmem:[#allocation4 + $0x18] sm:$0xff]
        %v906 = vld [vmem:[#allocation4 + $0x20] sm:$0xff]
        %v907 = vld [vmem:[#allocation4 + $0x28] sm:$0xff]
        %v908 = vld [vmem:[#allocation4 + $0x30] sm:$0xff]
        %v909 = vld [vmem:[#allocation4 + $0x38] sm:$0xff]
        %v910 = vld [vmem:[#allocation4 + $0x40] sm:$0xff]
        %v911 = vld [vmem:[#allocation4 + $0x48] sm:$0xff]
        %v912 = vld [vmem:[#allocation4 + $0x50] sm:$0xff]
        %v913 = vld [vmem:[#allocation4 + $0x58] sm:$0xff]
        %v914 = vld [vmem:[#allocation4 + $0x60] sm:$0xff]
        %v915 = vld [vmem:[#allocation4 + $0x68] sm:$0xff]
        %v916 = vld [vmem:[#allocation4 + $0x70] sm:$0xff]
        %v917 = vld [vmem:[#allocation4 + $0x78] sm:$0xff]
        %v918 = vld [vmem:[#allocation4 + $0x80] sm:$0xff]
        %v919 = vld [vmem:[#allocation4 + $0x88] sm:$0xff]
        %v920 = vld [vmem:[#allocation4 + $0x90] sm:$0xff]
        %v921 = vld [vmem:[#allocation4 + $0x98] sm:$0xff]
        %v922 = vld [vmem:[#allocation4 + $0xa0] sm:$0xff]
        %v923 = vld [vmem:[#allocation4 + $0xa8] sm:$0xff]
        %v924 = vld [vmem:[#allocation4 + $0xb0] sm:$0xff]
        %v925 = vld [vmem:[#allocation4 + $0xb8] sm:$0xff]
        %v926 = vld [vmem:[#allocation4 + $0xc0] sm:$0xff]
        %v927 = vld [vmem:[#allocation4 + $0xc8] sm:$0xff]
        %v928 = vld [vmem:[#allocation4 + $0xd0] sm:$0xff]
        %v929 = vld [vmem:[#allocation4 + $0xd8] sm:$0xff]
        %v930 = vld [vmem:[#allocation4 + $0xe0] sm:$0xff]
        %v931 = vld [vmem:[#allocation4 + $0xe8] sm:$0xff]
        %v932 = vld [vmem:[#allocation4 + $0xf0] sm:$0xff]
        %v933 = vld [vmem:[#allocation4 + $0xf8] sm:$0xff]
        %v934 = vld [vmem:[#allocation4 + $0x100] sm:$0xff]
        %v935 = vld [vmem:[#allocation4 + $0x108] sm:$0xff]
        %v936 = vld [vmem:[#allocation4 + $0x110] sm:$0xff]
        %v937 = vld [vmem:[#allocation4 + $0x118] sm:$0xff]
        %v938 = vld [vmem:[#allocation4 + $0x120] sm:$0xff]
        %v939 = vld [vmem:[#allocation4 + $0x128] sm:$0xff]
        %v940 = vld [vmem:[#allocation4 + $0x130] sm:$0xff]
        %v941 = vld [vmem:[#allocation4 + $0x138] sm:$0xff]
        %v942 = vld [vmem:[#allocation4 + $0x140] sm:$0xff]
        %v943 = vld [vmem:[#allocation4 + $0x148] sm:$0xff]
        %v944 = vld [vmem:[#allocation4 + $0x150] sm:$0xff]
        %v945 = vld [vmem:[#allocation4 + $0x158] sm:$0xff]
        %v946 = vld [vmem:[#allocation4 + $0x160] sm:$0xff]
        %v947 = vld [vmem:[#allocation4 + $0x168] sm:$0xff]
        %v948 = vld [vmem:[#allocation4 + $0x170] sm:$0xff]
        %v949 = vld [vmem:[#allocation4 + $0x178] sm:$0xff]
        %v950 = vld [vmem:[#allocation4 + $0x180] sm:$0xff]
        %v951 = vld [vmem:[#allocation4 + $0x188] sm:$0xff]
        %v952 = vld [vmem:[#allocation4 + $0x190] sm:$0xff]
        %v953 = vld [vmem:[#allocation4 + $0x198] sm:$0xff]
        %v954 = vld [vmem:[#allocation4 + $0x1a0] sm:$0xff]
        %v955 = vld [vmem:[#allocation4 + $0x1a8] sm:$0xff]
        %v956 = vld [vmem:[#allocation4 + $0x1b0] sm:$0xff]
        %v957 = vld [vmem:[#allocation4 + $0x1b8] sm:$0xff]
        %v958 = vld [vmem:[#allocation4 + $0x1c0] sm:$0xff]
        %v959 = vld [vmem:[#allocation4 + $0x1c8] sm:$0xff]
        %v960 = vld [vmem:[#allocation4 + $0x1d0] sm:$0xff]
        %v961 = vld [vmem:[#allocation4 + $0x1d8] sm:$0xff]
        %v962 = vld [vmem:[#allocation4 + $0x1e0] sm:$0xff]
        %v963 = vld [vmem:[#allocation4 + $0x1e8] sm:$0xff]
        %v964 = vld [vmem:[#allocation4 + $0x1f0] sm:$0xff]
        %v965 = vld [vmem:[#allocation4 + $0x1f8] sm:$0xff]
        %v966 = vld [vmem:[#allocation4 + $0x200] sm:$0xff]
        %v967 = vld [vmem:[#allocation4 + $0x208] sm:$0xff]
        %v968 = vld [vmem:[#allocation4 + $0x210] sm:$0xff]
        %v969 = vld [vmem:[#allocation4 + $0x218] sm:$0xff]
        %v970 = vld [vmem:[#allocation4 + $0x220] sm:$0xff]
        %v971 = vld [vmem:[#allocation4 + $0x228] sm:$0xff]
        %v972 = vld [vmem:[#allocation4 + $0x230] sm:$0xff]
        %v973 = vld [vmem:[#allocation4 + $0x238] sm:$0xff]
        %v974 = vld [vmem:[#allocation4 + $0x240] sm:$0xff]
        %v975 = vld [vmem:[#allocation4 + $0x248] sm:$0xff]
        %v976 = vld [vmem:[#allocation4 + $0x250] sm:$0xff]
        %v977 = vld [vmem:[#allocation4 + $0x258] sm:$0xff]
        %v978 = vld [vmem:[#allocation4 + $0x260] sm:$0xff]
        %v979 = vld [vmem:[#allocation4 + $0x268] sm:$0xff]
        %v980 = vld [vmem:[#allocation4 + $0x270] sm:$0xff]
        %v981 = vld [vmem:[#allocation4 + $0x278] sm:$0xff]
        %v982 = vld [vmem:[#allocation4 + $0x280] sm:$0xff]
        %v983 = vld [vmem:[#allocation4 + $0x288] sm:$0xff]
        %v984 = vld [vmem:[#allocation4 + $0x290] sm:$0xff]
        %v985 = vld [vmem:[#allocation4 + $0x298] sm:$0xff]
        %v986 = vld [vmem:[#allocation4 + $0x2a0] sm:$0xff]
        %v987 = vld [vmem:[#allocation4 + $0x2a8] sm:$0xff]
        %v988 = vld [vmem:[#allocation4 + $0x2b0] sm:$0xff]
        %v989 = vld [vmem:[#allocation4 + $0x2b8] sm:$0xff]
        %v990 = vld [vmem:[#allocation4 + $0x2c0] sm:$0xff]
        %v991 = vld [vmem:[#allocation4 + $0x2c8] sm:$0xff]
        %v992 = vld [vmem:[#allocation4 + $0x2d0] sm:$0xff]
        %v993 = vld [vmem:[#allocation4 + $0x2d8] sm:$0xff]
        %v994 = vld [vmem:[#allocation4 + $0x2e0] sm:$0xff]
        %v995 = vld [vmem:[#allocation4 + $0x2e8] sm:$0xff]
        %v996 = vld [vmem:[#allocation4 + $0x2f0] sm:$0xff]
        %v997 = vld [vmem:[#allocation4 + $0x2f8] sm:$0xff]
        %v998 = vld [vmem:[#allocation4 + $0x300] sm:$0xff]
        %v999 = vld [vmem:[#allocation4 + $0x308] sm:$0xff]
        %v1000 = vld [vmem:[#allocation4 + $0x310] sm:$0xff]
        %v1001 = vld [vmem:[#allocation4 + $0x318] sm:$0xff]
        %v1002 = vld [vmem:[#allocation4 + $0x320] sm:$0xff]
        %v1003 = vld [vmem:[#allocation4 + $0x328] sm:$0xff]
        %v1004 = vld [vmem:[#allocation4 + $0x330] sm:$0xff]
        %v1005 = vld [vmem:[#allocation4 + $0x338] sm:$0xff]
        %v1006 = vld [vmem:[#allocation4 + $0x340] sm:$0xff]
        %v1007 = vld [vmem:[#allocation4 + $0x348] sm:$0xff]
        %v1008 = vld [vmem:[#allocation4 + $0x350] sm:$0xff]
        %v1009 = vld [vmem:[#allocation4 + $0x358] sm:$0xff]
        %v1010 = vld [vmem:[#allocation4 + $0x360] sm:$0xff]
        %v1011 = vld [vmem:[#allocation4 + $0x368] sm:$0xff]
        %v1012 = vld [vmem:[#allocation4 + $0x370] sm:$0xff]
        %v1013 = vld [vmem:[#allocation4 + $0x378] sm:$0xff]
        %v1014 = vld [vmem:[#allocation4 + $0x380] sm:$0xff]
        %v1015 = vld [vmem:[#allocation4 + $0x388] sm:$0xff]
        %v1016 = vld [vmem:[#allocation4 + $0x390] sm:$0xff]
        %v1017 = vld [vmem:[#allocation4 + $0x398] sm:$0xff]
        %v1018 = vld [vmem:[#allocation4 + $0x3a0] sm:$0xff]
        %v1019 = vld [vmem:[#allocation4 + $0x3a8] sm:$0xff]
        %v1020 = vld [vmem:[#allocation4 + $0x3b0] sm:$0xff]
        %v1021 = vld [vmem:[#allocation4 + $0x3b8] sm:$0xff]
        %v1022 = vld [vmem:[#allocation4 + $0x3c0] sm:$0xff]
        %v1023 = vld [vmem:[#allocation4 + $0x3c8] sm:$0xff]
        %v1024 = vld [vmem:[#allocation4 + $0x3d0] sm:$0xff]
        %v1025 = vld [vmem:[#allocation4 + $0x3d8] sm:$0xff]
        %v1026 = vld [vmem:[#allocation4 + $0x3e0] sm:$0xff]
        %v1027 = vld [vmem:[#allocation4 + $0x3e8] sm:$0xff]
        %v1028 = vld [vmem:[#allocation4 + $0x3f0] sm:$0xff]
        %v1029 = vld [vmem:[#allocation4 + $0x3f8] sm:$0xff]
        %v1030 = vld [vmem:[#allocation4 + $0x400] sm:$0xff]
        %v1031 = vld [vmem:[#allocation4 + $0x408] sm:$0xff]
        %v1032 = vld [vmem:[#allocation4 + $0x410] sm:$0xff]
        %v1033 = vld [vmem:[#allocation4 + $0x418] sm:$0xff]
        %v1034 = vld [vmem:[#allocation4 + $0x420] sm:$0xff]
        %v1035 = vld [vmem:[#allocation4 + $0x428] sm:$0xff]
        %v1036 = vld [vmem:[#allocation4 + $0x430] sm:$0xff]
        %v1037 = vld [vmem:[#allocation4 + $0x438] sm:$0xff]
        %v1038 = vld [vmem:[#allocation4 + $0x440] sm:$0xff]
        %v1039 = vld [vmem:[#allocation4 + $0x448] sm:$0xff]
        %v1040 = vld [vmem:[#allocation4 + $0x450] sm:$0xff]
        %v1041 = vld [vmem:[#allocation4 + $0x458] sm:$0xff]
        %v1042 = vld [vmem:[#allocation4 + $0x460] sm:$0xff]
        %v1043 = vld [vmem:[#allocation4 + $0x468] sm:$0xff]
        %v1044 = vld [vmem:[#allocation4 + $0x470] sm:$0xff]
        %v1045 = vld [vmem:[#allocation4 + $0x478] sm:$0xff]
        %v1046 = vld [vmem:[#allocation4 + $0x480] sm:$0xff]
        %v1047 = vld [vmem:[#allocation4 + $0x488] sm:$0xff]
        %v1048 = vld [vmem:[#allocation4 + $0x490] sm:$0xff]
        %v1049 = vld [vmem:[#allocation4 + $0x498] sm:$0xff]
        %v1050 = vld [vmem:[#allocation4 + $0x4a0] sm:$0xff]
        %v1051 = vld [vmem:[#allocation4 + $0x4a8] sm:$0xff]
        %v1052 = vld [vmem:[#allocation4 + $0x4b0] sm:$0xff]
        %v1053 = vld [vmem:[#allocation4 + $0x4b8] sm:$0xff]
        %v1054 = vld [vmem:[#allocation4 + $0x4c0] sm:$0xff]
        %v1055 = vld [vmem:[#allocation4 + $0x4c8] sm:$0xff]
        %v1056 = vld [vmem:[#allocation4 + $0x4d0] sm:$0xff]
        %v1057 = vld [vmem:[#allocation4 + $0x4d8] sm:$0xff]
        %v1058 = vld [vmem:[#allocation4 + $0x4e0] sm:$0xff]
        %v1059 = vld [vmem:[#allocation4 + $0x4e8] sm:$0xff]
        %v1060 = vld [vmem:[#allocation4 + $0x4f0] sm:$0xff]
        %v1061 = vld [vmem:[#allocation4 + $0x4f8] sm:$0xff]
        %v1062 = vld [vmem:[#allocation4 + $0x500] sm:$0xff]
        %v1063 = vld [vmem:[#allocation4 + $0x508] sm:$0xff]
        %v1064 = vld [vmem:[#allocation4 + $0x510] sm:$0xff]
        %v1065 = vld [vmem:[#allocation4 + $0x518] sm:$0xff]
        %v1066 = vld [vmem:[#allocation4 + $0x520] sm:$0xff]
        %v1067 = vld [vmem:[#allocation4 + $0x528] sm:$0xff]
        %v1068 = vld [vmem:[#allocation4 + $0x530] sm:$0xff]
        %v1069 = vld [vmem:[#allocation4 + $0x538] sm:$0xff]
        %v1070 = vld [vmem:[#allocation4 + $0x540] sm:$0xff]
        %v1071 = vld [vmem:[#allocation4 + $0x548] sm:$0xff]
        %v1072 = vld [vmem:[#allocation4 + $0x550] sm:$0xff]
        %v1073 = vld [vmem:[#allocation4 + $0x558] sm:$0xff]
        %v1074 = vld [vmem:[#allocation4 + $0x560] sm:$0xff]
        %v1075 = vld [vmem:[#allocation4 + $0x568] sm:$0xff]
        %v1076 = vld [vmem:[#allocation4 + $0x570] sm:$0xff]
        %v1077 = vld [vmem:[#allocation4 + $0x578] sm:$0xff]
        %v1078 = vld [vmem:[#allocation4 + $0x580] sm:$0xff]
        %v1079 = vld [vmem:[#allocation4 + $0x588] sm:$0xff]
        %v1080 = vld [vmem:[#allocation4 + $0x590] sm:$0xff]
        %v1081 = vld [vmem:[#allocation4 + $0x598] sm:$0xff]
        %v1082 = vld [vmem:[#allocation10] sm:$0xff]
        %v1083 = vld [vmem:[#allocation10 + $0x8] sm:$0xff]
        %v1084 = vld [vmem:[#allocation10 + $0x10] sm:$0xff]
        %v1085 = vld [vmem:[#allocation10 + $0x18] sm:$0xff]
        %v1086 = vld [vmem:[#allocation10 + $0x20] sm:$0xff]
        %v1087 = vld [vmem:[#allocation10 + $0x28] sm:$0xff]
        %v1088 = vld [vmem:[#allocation10 + $0x30] sm:$0xff]
        %v1089 = vld [vmem:[#allocation10 + $0x38] sm:$0xff]
        %v1090 = vld [vmem:[#allocation10 + $0x40] sm:$0xff]
        %v1091 = vld [vmem:[#allocation10 + $0x48] sm:$0xff]
        %v1092 = vld [vmem:[#allocation10 + $0x50] sm:$0xff]
        %v1093 = vld [vmem:[#allocation10 + $0x58] sm:$0xff]
        %v1094 = vld [vmem:[#allocation10 + $0x60] sm:$0xff]
        %v1095 = vld [vmem:[#allocation10 + $0x68] sm:$0xff]
        %v1096 = vld [vmem:[#allocation10 + $0x70] sm:$0xff]
        %v1097 = vld [vmem:[#allocation10 + $0x78] sm:$0xff]
        %v1098 = vld [vmem:[#allocation10 + $0x80] sm:$0xff]
        %v1099 = vld [vmem:[#allocation10 + $0x88] sm:$0xff]
        %v1100 = vld [vmem:[#allocation10 + $0x90] sm:$0xff]
        %v1101 = vld [vmem:[#allocation10 + $0x98] sm:$0xff]
        %v1102 = vld [vmem:[#allocation10 + $0xa0] sm:$0xff]
        %v1103 = vld [vmem:[#allocation10 + $0xa8] sm:$0xff]
        %v1104 = vld [vmem:[#allocation10 + $0xb0] sm:$0xff]
        %v1105 = vld [vmem:[#allocation10 + $0xb8] sm:$0xff]
        %v1106 = vld [vmem:[#allocation10 + $0xc0] sm:$0xff]
        %v1107 = vld [vmem:[#allocation10 + $0xc8] sm:$0xff]
        %v1108 = vld [vmem:[#allocation10 + $0xd0] sm:$0xff]
        %v1109 = vld [vmem:[#allocation10 + $0xd8] sm:$0xff]
        %v1110 = vld [vmem:[#allocation10 + $0xe0] sm:$0xff]
        %v1111 = vld [vmem:[#allocation10 + $0xe8] sm:$0xff]
        %v1112 = vld [vmem:[#allocation10 + $0xf0] sm:$0xff]
        %v1113 = vld [vmem:[#allocation10 + $0xf8] sm:$0xff]
        %v1114 = vld [vmem:[#allocation10 + $0x100] sm:$0xff]
        %v1115 = vld [vmem:[#allocation10 + $0x108] sm:$0xff]
        %v1116 = vld [vmem:[#allocation10 + $0x110] sm:$0xff]
        %v1117 = vld [vmem:[#allocation10 + $0x118] sm:$0xff]
        %v1118 = vld [vmem:[#allocation10 + $0x120] sm:$0xff]
        %v1119 = vld [vmem:[#allocation10 + $0x128] sm:$0xff]
        %v1120 = vld [vmem:[#allocation10 + $0x130] sm:$0xff]
        %v1121 = vld [vmem:[#allocation10 + $0x138] sm:$0xff]
        %v1122 = vld [vmem:[#allocation10 + $0x140] sm:$0xff]
        %v1123 = vld [vmem:[#allocation10 + $0x148] sm:$0xff]
        %v1124 = vld [vmem:[#allocation10 + $0x150] sm:$0xff]
        %v1125 = vld [vmem:[#allocation10 + $0x158] sm:$0xff]
        %v1126 = vld [vmem:[#allocation10 + $0x160] sm:$0xff]
        %v1127 = vld [vmem:[#allocation10 + $0x168] sm:$0xff]
        %v1128 = vld [vmem:[#allocation10 + $0x170] sm:$0xff]
        %v1129 = vld [vmem:[#allocation10 + $0x178] sm:$0xff]
        %v1130 = vld [vmem:[#allocation10 + $0x180] sm:$0xff]
        %v1131 = vld [vmem:[#allocation10 + $0x188] sm:$0xff]
        %v1132 = vld [vmem:[#allocation10 + $0x190] sm:$0xff]
        %v1133 = vld [vmem:[#allocation10 + $0x198] sm:$0xff]
        %v1134 = vld [vmem:[#allocation10 + $0x1a0] sm:$0xff]
        %v1135 = vld [vmem:[#allocation10 + $0x1a8] sm:$0xff]
        %v1136 = vld [vmem:[#allocation10 + $0x1b0] sm:$0xff]
        %v1137 = vld [vmem:[#allocation10 + $0x1b8] sm:$0xff]
        %v1138 = vld [vmem:[#allocation10 + $0x1c0] sm:$0xff]
        %v1139 = vld [vmem:[#allocation10 + $0x1c8] sm:$0xff]
        %v1140 = vld [vmem:[#allocation10 + $0x1d0] sm:$0xff]
        %v1141 = vld [vmem:[#allocation10 + $0x1d8] sm:$0xff]
        %v1142 = vld [vmem:[#allocation10 + $0x1e0] sm:$0xff]
        %v1143 = vld [vmem:[#allocation10 + $0x1e8] sm:$0xff]
        %v1144 = vld [vmem:[#allocation10 + $0x1f0] sm:$0xff]
        %v1145 = vld [vmem:[#allocation10 + $0x1f8] sm:$0xff]
        %v1146 = vld [vmem:[#allocation10 + $0x200] sm:$0xff]
        %v1147 = vld [vmem:[#allocation10 + $0x208] sm:$0xff]
        %v1148 = vld [vmem:[#allocation10 + $0x210] sm:$0xff]
        %v1149 = vld [vmem:[#allocation10 + $0x218] sm:$0xff]
        %v1150 = vld [vmem:[#allocation10 + $0x220] sm:$0xff]
        %v1151 = vld [vmem:[#allocation10 + $0x228] sm:$0xff]
        %v1152 = vld [vmem:[#allocation10 + $0x230] sm:$0xff]
        %v1153 = vld [vmem:[#allocation10 + $0x238] sm:$0xff]
        %v1154 = vld [vmem:[#allocation10 + $0x240] sm:$0xff]
        %v1155 = vld [vmem:[#allocation10 + $0x248] sm:$0xff]
        %v1156 = vld [vmem:[#allocation10 + $0x250] sm:$0xff]
        %v1157 = vld [vmem:[#allocation10 + $0x258] sm:$0xff]
        %v1158 = vld [vmem:[#allocation10 + $0x260] sm:$0xff]
        %v1159 = vld [vmem:[#allocation10 + $0x268] sm:$0xff]
        %v1160 = vld [vmem:[#allocation10 + $0x270] sm:$0xff]
        %v1161 = vld [vmem:[#allocation10 + $0x278] sm:$0xff]
        %v1162 = vld [vmem:[#allocation10 + $0x280] sm:$0xff]
        %v1163 = vld [vmem:[#allocation10 + $0x288] sm:$0xff]
        %v1164 = vld [vmem:[#allocation10 + $0x290] sm:$0xff]
        %v1165 = vld [vmem:[#allocation10 + $0x298] sm:$0xff]
        %v1166 = vld [vmem:[#allocation10 + $0x2a0] sm:$0xff]
        %v1167 = vld [vmem:[#allocation10 + $0x2a8] sm:$0xff]
        %v1168 = vld [vmem:[#allocation10 + $0x2b0] sm:$0xff]
        %v1169 = vld [vmem:[#allocation10 + $0x2b8] sm:$0xff]
        %v1170 = vld [vmem:[#allocation10 + $0x2c0] sm:$0xff]
        %v1171 = vld [vmem:[#allocation10 + $0x2c8] sm:$0xff]
        %v1172 = vld [vmem:[#allocation10 + $0x2d0] sm:$0xff]
        %v1173 = vld [vmem:[#allocation10 + $0x2d8] sm:$0xff]
        %v1174 = vld [vmem:[#allocation10 + $0x2e0] sm:$0xff]
        %v1175 = vld [vmem:[#allocation10 + $0x2e8] sm:$0xff]
        %v1176 = vld [vmem:[#allocation10 + $0x2f0] sm:$0xff]
        %v1177 = vld [vmem:[#allocation10 + $0x2f8] sm:$0xff]
        %v1178 = vld [vmem:[#allocation10 + $0x300] sm:$0xff]
        %v1179 = vld [vmem:[#allocation10 + $0x308] sm:$0xff]
        %v1180 = vld [vmem:[#allocation10 + $0x310] sm:$0xff]
        %v1181 = vld [vmem:[#allocation10 + $0x318] sm:$0xff]
        %v1182 = vld [vmem:[#allocation10 + $0x320] sm:$0xff]
        %v1183 = vld [vmem:[#allocation10 + $0x328] sm:$0xff]
        %v1184 = vld [vmem:[#allocation10 + $0x330] sm:$0xff]
        %v1185 = vld [vmem:[#allocation10 + $0x338] sm:$0xff]
        %v1186 = vld [vmem:[#allocation10 + $0x340] sm:$0xff]
        %v1187 = vld [vmem:[#allocation10 + $0x348] sm:$0xff]
        %v1188 = vld [vmem:[#allocation10 + $0x350] sm:$0xff]
        %v1189 = vld [vmem:[#allocation10 + $0x358] sm:$0xff]
        %v1190 = vld [vmem:[#allocation10 + $0x360] sm:$0xff]
        %v1191 = vld [vmem:[#allocation10 + $0x368] sm:$0xff]
        %v1192 = vld [vmem:[#allocation10 + $0x370] sm:$0xff]
        %v1193 = vld [vmem:[#allocation10 + $0x378] sm:$0xff]
        %v1194 = vld [vmem:[#allocation10 + $0x380] sm:$0xff]
        %v1195 = vld [vmem:[#allocation10 + $0x388] sm:$0xff]
        %v1196 = vld [vmem:[#allocation10 + $0x390] sm:$0xff]
        %v1197 = vld [vmem:[#allocation10 + $0x398] sm:$0xff]
        %v1198 = vld [vmem:[#allocation10 + $0x3a0] sm:$0xff]
        %v1199 = vld [vmem:[#allocation10 + $0x3a8] sm:$0xff]
        %v1200 = vld [vmem:[#allocation10 + $0x3b0] sm:$0xff]
        %v1201 = vld [vmem:[#allocation10 + $0x3b8] sm:$0xff]
        %v1202 = vld [vmem:[#allocation10 + $0x3c0] sm:$0xff]
        %v1203 = vld [vmem:[#allocation10 + $0x3c8] sm:$0xff]
        %v1204 = vld [vmem:[#allocation10 + $0x3d0] sm:$0xff]
        %v1205 = vld [vmem:[#allocation10 + $0x3d8] sm:$0xff]
        %v1206 = vld [vmem:[#allocation10 + $0x3e0] sm:$0xff]
        %v1207 = vld [vmem:[#allocation10 + $0x3e8] sm:$0xff]
        %v1208 = vld [vmem:[#allocation10 + $0x3f0] sm:$0xff]
        %v1209 = vld [vmem:[#allocation10 + $0x3f8] sm:$0xff]
        %v1210 = vld [vmem:[#allocation10 + $0x400] sm:$0xff]
        %v1211 = vld [vmem:[#allocation10 + $0x408] sm:$0xff]
        %v1212 = vld [vmem:[#allocation10 + $0x410] sm:$0xff]
        %v1213 = vld [vmem:[#allocation10 + $0x418] sm:$0xff]
        %v1214 = vld [vmem:[#allocation10 + $0x420] sm:$0xff]
        %v1215 = vld [vmem:[#allocation10 + $0x428] sm:$0xff]
        %v1216 = vld [vmem:[#allocation10 + $0x430] sm:$0xff]
        %v1217 = vld [vmem:[#allocation10 + $0x438] sm:$0xff]
        %v1218 = vld [vmem:[#allocation10 + $0x440] sm:$0xff]
        %v1219 = vld [vmem:[#allocation10 + $0x448] sm:$0xff]
        %v1220 = vld [vmem:[#allocation10 + $0x450] sm:$0xff]
        %v1221 = vld [vmem:[#allocation10 + $0x458] sm:$0xff]
        %v1222 = vld [vmem:[#allocation10 + $0x460] sm:$0xff]
        %v1223 = vld [vmem:[#allocation10 + $0x468] sm:$0xff]
        %v1224 = vld [vmem:[#allocation10 + $0x470] sm:$0xff]
        %v1225 = vld [vmem:[#allocation10 + $0x478] sm:$0xff]
        %1226 = vmatprep.subr.mxu0 0.0
        %1227 = vmatpush1.msra.mxu0 %v1082
        %1228 = vmatprep.subr.mxu0 0.0
        %1229 = vmatpush1.msra.mxu0 %v1083
        %1230 = vmatprep.subr.mxu0 0.0
        %1231 = vmatpush1.msra.mxu0 %v1084
        %1232 = vmatprep.subr.mxu0 0.0
        %1233 = vmatpush1.msra.mxu0 %v1085
        %1234 = vmatprep.subr.mxu0 0.0
        %1235 = vmatpush1.msra.mxu0 %v1086
        %1236 = vmatprep.subr.mxu0 0.0
        %1237 = vmatpush1.msra.mxu0 %v1087
        %1238 = vmatprep.subr.mxu0 0.0
        %1239 = vmatpush1.msra.mxu0 %v1088
        %1240 = vmatprep.subr.mxu0 0.0
        %1241 = vmatpush1.msra.mxu0 %v1089
        %1242 = vmatprep.subr.mxu0 0.0
        %1243 = vmatpush1.msra.mxu0 %v1090
        %1244 = vmatprep.subr.mxu0 0.0
        %1245 = vmatpush1.msra.mxu0 %v1091
        %1246 = vmatprep.subr.mxu0 0.0
        %1247 = vmatpush1.msra.mxu0 %v1092
        %1248 = vmatprep.subr.mxu0 0.0
        %1249 = vmatpush1.msra.mxu0 %v1093
        %1250 = vmatprep.subr.mxu0 0.0
        %1251 = vmatpush1.msra.mxu0 %v1094
        %1252 = vmatprep.subr.mxu0 0.0
        %1253 = vmatpush1.msra.mxu0 %v1095
        %1254 = vmatprep.subr.mxu0 0.0
        %1255 = vmatpush1.msra.mxu0 %v1096
        %1256 = vmatprep.subr.mxu0 0.0
        %1257 = vmatpush1.msra.mxu0 %v1097
        %1258 = vmatprep.subr.mxu0 0.0
        %1259 = vmatpush1.msra.mxu0 %v1098
        %1260 = vmatprep.subr.mxu0 0.0
        %1261 = vmatpush1.msra.mxu0 %v1099
        %1262 = vmatprep.subr.mxu0 0.0
        %1263 = vmatpush1.msra.mxu0 %v1100
        %1264 = vmatprep.subr.mxu0 0.0
        %1265 = vmatpush1.msra.mxu0 %v1101
        %1266 = vmatprep.subr.mxu0 0.0
        %1267 = vmatpush1.msra.mxu0 %v1102
        %1268 = vmatprep.subr.mxu0 0.0
        %1269 = vmatpush1.msra.mxu0 %v1103
        %1270 = vmatprep.subr.mxu0 0.0
        %1271 = vmatpush1.msra.mxu0 %v1104
        %1272 = vmatprep.subr.mxu0 0.0
        %1273 = vmatpush1.msra.mxu0 %v1105
        %1274 = vmatprep.subr.mxu0 0.0
        %1275 = vmatpush1.msra.mxu0 %v1106
        %1276 = vmatprep.subr.mxu0 0.0
        %1277 = vmatpush1.msra.mxu0 %v1107
        %1278 = vmatprep.subr.mxu0 0.0
        %1279 = vmatpush1.msra.mxu0 %v1108
        %1280 = vmatprep.subr.mxu0 0.0
        %1281 = vmatpush1.msra.mxu0 %v1109
        %1282 = vmatprep.subr.mxu0 0.0
        %1283 = vmatpush1.msra.mxu0 %v1110
        %1284 = vmatprep.subr.mxu0 0.0
        %1285 = vmatpush1.msra.mxu0 %v1111
        %1286 = vmatprep.subr.mxu0 0.0
        %1287 = vmatpush1.msra.mxu0 %v1112
        %1288 = vmatprep.subr.mxu0 0.0
        %1289 = vmatpush1.msra.mxu0 %v1113
        %1290 = vmatprep.mubr.f32.mxu0 %v903
        %1291 = vmatmul.mubr.f32.gmra.mrb[0].mxu0 %v902
        %v1292 = vpop.f32.mrb[0].mxu0
        %v1293 = vadd.f32 0.0, %v1292
        %v1294 = vpop.f32.mrb[0].mxu0
        %1295 = vmatprep.mubr.f32.mxu0 %v912
        %1296 = vmatmul.mubr.f32.gmra.mrb[0].mxu0 %v911
        %v1297 = vpop.f32.mrb[0].mxu0
        %v1298 = vadd.f32 0.0, %v1297
        %v1299 = vpop.f32.mrb[0].mxu0
        %1300 = vmatprep.mubr.f32.mxu0 %v921
        %1301 = vmatmul.mubr.f32.gmra.mrb[0].mxu0 %v920
        %v1302 = vpop.f32.mrb[0].mxu0
        %v1303 = vadd.f32 0.0, %v1302
        %v1304 = vpop.f32.mrb[0].mxu0
        %1305 = vmatprep.mubr.f32.mxu0 %v930
        %1306 = vmatmul.mubr.f32.gmra.mrb[0].mxu0 %v929
        %v1307 = vpop.f32.mrb[0].mxu0
        %v1308 = vadd.f32 0.0, %v1307
        %v1309 = vpop.f32.mrb[0].mxu0
        %1310 = vmatprep.mubr.f32.mxu0 %v939
        %1311 = vmatmul.mubr.f32.gmra.mrb[0].mxu0 %v938
        %v1312 = vpop.f32.mrb[0].mxu0
        %v1313 = vadd.f32 0.0, %v1312
        %v1314 = vpop.f32.mrb[0].mxu0
        %1315 = vmatprep.mubr.f32.mxu0 %v948
        %1316 = vmatmul.mubr.f32.gmra.mrb[0].mxu0 %v947
        %v1317 = vpop.f32.mrb[0].mxu0
        %v1318 = vadd.f32 0.0, %v1317
        %v1319 = vpop.f32.mrb[0].mxu0
        %1320 = vmatprep.mubr.f32.mxu0 %v957
        %1321 = vmatmul.mubr.f32.gmra.mrb[0].mxu0 %v956
        %v1322 = vpop.f32.mrb[0].mxu0
        %v1323 = vadd.f32 0.0, %v1322
        %v1324 = vpop.f32.mrb[0].mxu0
        %1325 = vmatprep.mubr.f32.mxu0 %v966
        %1326 = vmatmul.mubr.f32.gmra.mrb[0].mxu0 %v965
        %v1327 = vpop.f32.mrb[0].mxu0
        %v1328 = vadd.f32 0.0, %v1327
        %v1329 = vpop.f32.mrb[0].mxu0
        %1330 = vmatprep.mubr.f32.mxu0 %v975
        %1331 = vmatmul.mubr.f32.gmra.mrb[0].mxu0 %v974
        %v1332 = vpop.f32.mrb[0].mxu0
        %v1333 = vadd.f32 0.0, %v1332
        %v1334 = vpop.f32.mrb[0].mxu0
        %1335 = vmatprep.mubr.f32.mxu0 %v984
        %1336 = vmatmul.mubr.f32.gmra.mrb[0].mxu0 %v983
        %v1337 = vpop.f32.mrb[0].mxu0
        %v1338 = vadd.f32 0.0, %v1337
        %v1339 = vpop.f32.mrb[0].mxu0
        %1340 = vmatprep.mubr.f32.mxu0 %v993
        %1341 = vmatmul.mubr.f32.gmra.mrb[0].mxu0 %v992
        %v1342 = vpop.f32.mrb[0].mxu0
        %v1343 = vadd.f32 0.0, %v1342
        %v1344 = vpop.f32.mrb[0].mxu0
        %1345 = vmatprep.mubr.f32.mxu0 %v1002
        %1346 = vmatmul.mubr.f32.gmra.mrb[0].mxu0 %v1001
        %v1347 = vpop.f32.mrb[0].mxu0
        %v1348 = vadd.f32 0.0, %v1347
        %v1349 = vpop.f32.mrb[0].mxu0
        %1350 = vmatprep.mubr.f32.mxu0 %v1011
        %1351 = vmatmul.mubr.f32.gmra.mrb[0].mxu0 %v1010
        %v1352 = vpop.f32.mrb[0].mxu0
        %v1353 = vadd.f32 0.0, %v1352
        %v1354 = vpop.f32.mrb[0].mxu0
        %1355 = vmatprep.mubr.f32.mxu0 %v1020
        %1356 = vmatmul.mubr.f32.gmra.mrb[0].mxu0 %v1019
        %v1357 = vpop.f32.mrb[0].mxu0
        %v1358 = vadd.f32 0.0, %v1357
        %v1359 = vpop.f32.mrb[0].mxu0
        %1360 = vmatprep.mubr.f32.mxu0 %v1029
        %1361 = vmatmul.mubr.f32.gmra.mrb[0].mxu0 %v1028
        %v1362 = vpop.f32.mrb[0].mxu0
        %v1363 = vadd.f32 0.0, %v1362
        %v1364 = vpop.f32.mrb[0].mxu0
        %1365 = vmatprep.mubr.f32.mxu0 %v1038
        %1366 = vmatmul.mubr.f32.gmra.mrb[0].mxu0 %v1037
        %v1367 = vpop.f32.mrb[0].mxu0
        %v1368 = vadd.f32 0.0, %v1367
        %v1369 = vpop.f32.mrb[0].mxu0
        %1370 = vmatprep.mubr.f32.mxu0 %v1047
        %1371 = vmatmul.mubr.f32.gmra.mrb[0].mxu0 %v1046
        %v1372 = vpop.f32.mrb[0].mxu0
        %v1373 = vadd.f32 0.0, %v1372
        %v1374 = vpop.f32.mrb[0].mxu0
        %1375 = vmatprep.mubr.f32.mxu0 %v1056
        %1376 = vmatmul.mubr.f32.gmra.mrb[0].mxu0 %v1055
        %v1377 = vpop.f32.mrb[0].mxu0
        %v1378 = vadd.f32 0.0, %v1377
        %v1379 = vpop.f32.mrb[0].mxu0
        %1380 = vmatprep.mubr.f32.mxu0 %v1065
        %1381 = vmatmul.mubr.f32.gmra.mrb[0].mxu0 %v1064
        %v1382 = vpop.f32.mrb[0].mxu0
        %v1383 = vadd.f32 0.0, %v1382
        %v1384 = vpop.f32.mrb[0].mxu0
        %1385 = vmatprep.mubr.f32.mxu0 %v1074
        %1386 = vmatmul.mubr.f32.gmra.mrb[0].mxu0 %v1073
        %v1387 = vpop.f32.mrb[0].mxu0
        %v1388 = vadd.f32 0.0, %v1387
        %v1389 = vpop.f32.mrb[0].mxu0
        %1390 = vdwg.mxu0
        %1391 = vmatprep.subr.mxu0 0.0
        %1392 = vmatpush1.msra.mxu0 %v1114
        %1393 = vmatprep.subr.mxu0 0.0
        %1394 = vmatpush1.msra.mxu0 %v1115
        %1395 = vmatprep.subr.mxu0 0.0
        %1396 = vmatpush1.msra.mxu0 %v1116
        %1397 = vmatprep.subr.mxu0 0.0
        %1398 = vmatpush1.msra.mxu0 %v1117
        %1399 = vmatprep.subr.mxu0 0.0
        %1400 = vmatpush1.msra.mxu0 %v1118
        %1401 = vmatprep.subr.mxu0 0.0
        %1402 = vmatpush1.msra.mxu0 %v1119
        %1403 = vmatprep.subr.mxu0 0.0
        %1404 = vmatpush1.msra.mxu0 %v1120
        %1405 = vmatprep.subr.mxu0 0.0
        %1406 = vmatpush1.msra.mxu0 %v1121
        %1407 = vmatprep.subr.mxu0 0.0
        %1408 = vmatpush1.msra.mxu0 %v1122
        %1409 = vmatprep.subr.mxu0 0.0
        %1410 = vmatpush1.msra.mxu0 %v1123
        %1411 = vmatprep.subr.mxu0 0.0
        %1412 = vmatpush1.msra.mxu0 %v1124
        %1413 = vmatprep.subr.mxu0 0.0
        %1414 = vmatpush1.msra.mxu0 %v1125
        %1415 = vmatprep.subr.mxu0 0.0
        %1416 = vmatpush1.msra.mxu0 %v1126
        %1417 = vmatprep.subr.mxu0 0.0
        %1418 = vmatpush1.msra.mxu0 %v1127
        %1419 = vmatprep.subr.mxu0 0.0
        %1420 = vmatpush1.msra.mxu0 %v1128
        %1421 = vmatprep.subr.mxu0 0.0
        %1422 = vmatpush1.msra.mxu0 %v1129
        %1423 = vmatprep.subr.mxu0 0.0
        %1424 = vmatpush1.msra.mxu0 %v1130
        %1425 = vmatprep.subr.mxu0 0.0
        %1426 = vmatpush1.msra.mxu0 %v1131
        %1427 = vmatprep.subr.mxu0 0.0
        %1428 = vmatpush1.msra.mxu0 %v1132
        %1429 = vmatprep.subr.mxu0 0.0
        %1430 = vmatpush1.msra.mxu0 %v1133
        %1431 = vmatprep.subr.mxu0 0.0
        %1432 = vmatpush1.msra.mxu0 %v1134
        %1433 = vmatprep.subr.mxu0 0.0
        %1434 = vmatpush1.msra.mxu0 %v1135
        %1435 = vmatprep.subr.mxu0 0.0
        %1436 = vmatpush1.msra.mxu0 %v1136
        %1437 = vmatprep.subr.mxu0 0.0
        %1438 = vmatpush1.msra.mxu0 %v1137
        %1439 = vmatprep.subr.mxu0 0.0
        %1440 = vmatpush1.msra.mxu0 %v1138
        %1441 = vmatprep.subr.mxu0 0.0
        %1442 = vmatpush1.msra.mxu0 %v1139
        %1443 = vmatprep.subr.mxu0 0.0
        %1444 = vmatpush1.msra.mxu0 %v1140
        %1445 = vmatprep.subr.mxu0 0.0
        %1446 = vmatpush1.msra.mxu0 %v1141
        %1447 = vmatprep.subr.mxu0 0.0
        %1448 = vmatpush1.msra.mxu0 %v1142
        %1449 = vmatprep.subr.mxu0 0.0
        %1450 = vmatpush1.msra.mxu0 %v1143
        %1451 = vmatprep.subr.mxu0 0.0
        %1452 = vmatpush1.msra.mxu0 %v1144
        %1453 = vmatprep.subr.mxu0 0.0
        %1454 = vmatpush1.msra.mxu0 %v1145
        %1455 = vmatprep.mubr.f32.mxu0 %v905
        %1456 = vmatmul.mubr.f32.gmra.mrb[0].mxu0 %v904
        %v1457 = vpop.f32.mrb[0].mxu0
        %v1458 = vadd.f32 %v1293, %v1457
        %v1459 = vpop.f32.mrb[0].mxu0
        %1460 = vmatprep.mubr.f32.mxu0 %v914
        %1461 = vmatmul.mubr.f32.gmra.mrb[0].mxu0 %v913
        %v1462 = vpop.f32.mrb[0].mxu0
        %v1463 = vadd.f32 %v1298, %v1462
        %v1464 = vpop.f32.mrb[0].mxu0
        %1465 = vmatprep.mubr.f32.mxu0 %v923
        %1466 = vmatmul.mubr.f32.gmra.mrb[0].mxu0 %v922
        %v1467 = vpop.f32.mrb[0].mxu0
        %v1468 = vadd.f32 %v1303, %v1467
        %v1469 = vpop.f32.mrb[0].mxu0
        %1470 = vmatprep.mubr.f32.mxu0 %v932
        %1471 = vmatmul.mubr.f32.gmra.mrb[0].mxu0 %v931
        %v1472 = vpop.f32.mrb[0].mxu0
        %v1473 = vadd.f32 %v1308, %v1472
        %v1474 = vpop.f32.mrb[0].mxu0
        %1475 = vmatprep.mubr.f32.mxu0 %v941
        %1476 = vmatmul.mubr.f32.gmra.mrb[0].mxu0 %v940
        %v1477 = vpop.f32.mrb[0].mxu0
        %v1478 = vadd.f32 %v1313, %v1477
        %v1479 = vpop.f32.mrb[0].mxu0
        %1480 = vmatprep.mubr.f32.mxu0 %v950
        %1481 = vmatmul.mubr.f32.gmra.mrb[0].mxu0 %v949
        %v1482 = vpop.f32.mrb[0].mxu0
        %v1483 = vadd.f32 %v1318, %v1482
        %v1484 = vpop.f32.mrb[0].mxu0
        %1485 = vmatprep.mubr.f32.mxu0 %v959
        %1486 = vmatmul.mubr.f32.gmra.mrb[0].mxu0 %v958
        %v1487 = vpop.f32.mrb[0].mxu0
        %v1488 = vadd.f32 %v1323, %v1487
        %v1489 = vpop.f32.mrb[0].mxu0
        %1490 = vmatprep.mubr.f32.mxu0 %v968
        %1491 = vmatmul.mubr.f32.gmra.mrb[0].mxu0 %v967
        %v1492 = vpop.f32.mrb[0].mxu0
        %v1493 = vadd.f32 %v1328, %v1492
        %v1494 = vpop.f32.mrb[0].mxu0
        %1495 = vmatprep.mubr.f32.mxu0 %v977
        %1496 = vmatmul.mubr.f32.gmra.mrb[0].mxu0 %v976
        %v1497 = vpop.f32.mrb[0].mxu0
        %v1498 = vadd.f32 %v1333, %v1497
        %v1499 = vpop.f32.mrb[0].mxu0
        %1500 = vmatprep.mubr.f32.mxu0 %v986
        %1501 = vmatmul.mubr.f32.gmra.mrb[0].mxu0 %v985
        %v1502 = vpop.f32.mrb[0].mxu0
        %v1503 = vadd.f32 %v1338, %v1502
        %v1504 = vpop.f32.mrb[0].mxu0
        %1505 = vmatprep.mubr.f32.mxu0 %v995
        %1506 = vmatmul.mubr.f32.gmra.mrb[0].mxu0 %v994
        %v1507 = vpop.f32.mrb[0].mxu0
        %v1508 = vadd.f32 %v1343, %v1507
        %v1509 = vpop.f32.mrb[0].mxu0
        %1510 = vmatprep.mubr.f32.mxu0 %v1004
        %1511 = vmatmul.mubr.f32.gmra.mrb[0].mxu0 %v1003
        %v1512 = vpop.f32.mrb[0].mxu0
        %v1513 = vadd.f32 %v1348, %v1512
        %v1514 = vpop.f32.mrb[0].mxu0
        %1515 = vmatprep.mubr.f32.mxu0 %v1013
        %1516 = vmatmul.mubr.f32.gmra.mrb[0].mxu0 %v1012
        %v1517 = vpop.f32.mrb[0].mxu0
        %v1518 = vadd.f32 %v1353, %v1517
        %v1519 = vpop.f32.mrb[0].mxu0
        %1520 = vmatprep.mubr.f32.mxu0 %v1022
        %1521 = vmatmul.mubr.f32.gmra.mrb[0].mxu0 %v1021
        %v1522 = vpop.f32.mrb[0].mxu0
        %v1523 = vadd.f32 %v1358, %v1522
        %v1524 = vpop.f32.mrb[0].mxu0
        %1525 = vmatprep.mubr.f32.mxu0 %v1031
        %1526 = vmatmul.mubr.f32.gmra.mrb[0].mxu0 %v1030
        %v1527 = vpop.f32.mrb[0].mxu0
        %v1528 = vadd.f32 %v1363, %v1527
        %v1529 = vpop.f32.mrb[0].mxu0
        %1530 = vmatprep.mubr.f32.mxu0 %v1040
        %1531 = vmatmul.mubr.f32.gmra.mrb[0].mxu0 %v1039
        %v1532 = vpop.f32.mrb[0].mxu0
        %v1533 = vadd.f32 %v1368, %v1532
        %v1534 = vpop.f32.mrb[0].mxu0
        %1535 = vmatprep.mubr.f32.mxu0 %v1049
        %1536 = vmatmul.mubr.f32.gmra.mrb[0].mxu0 %v1048
        %v1537 = vpop.f32.mrb[0].mxu0
        %v1538 = vadd.f32 %v1373, %v1537
        %v1539 = vpop.f32.mrb[0].mxu0
        %1540 = vmatprep.mubr.f32.mxu0 %v1058
        %1541 = vmatmul.mubr.f32.gmra.mrb[0].mxu0 %v1057
        %v1542 = vpop.f32.mrb[0].mxu0
        %v1543 = vadd.f32 %v1378, %v1542
        %v1544 = vpop.f32.mrb[0].mxu0
        %1545 = vmatprep.mubr.f32.mxu0 %v1067
        %1546 = vmatmul.mubr.f32.gmra.mrb[0].mxu0 %v1066
        %v1547 = vpop.f32.mrb[0].mxu0
        %v1548 = vadd.f32 %v1383, %v1547
        %v1549 = vpop.f32.mrb[0].mxu0
        %1550 = vmatprep.mubr.f32.mxu0 %v1076
        %1551 = vmatmul.mubr.f32.gmra.mrb[0].mxu0 %v1075
        %v1552 = vpop.f32.mrb[0].mxu0
        %v1553 = vadd.f32 %v1388, %v1552
        %v1554 = vpop.f32.mrb[0].mxu0
        %1555 = vdwg.mxu0
        %1556 = vmatprep.subr.mxu0 0.0
        %1557 = vmatpush1.msra.mxu0 %v1146
        %1558 = vmatprep.subr.mxu0 0.0
        %1559 = vmatpush1.msra.mxu0 %v1147
        %1560 = vmatprep.subr.mxu0 0.0
        %1561 = vmatpush1.msra.mxu0 %v1148
        %1562 = vmatprep.subr.mxu0 0.0
        %1563 = vmatpush1.msra.mxu0 %v1149
        %1564 = vmatprep.subr.mxu0 0.0
        %1565 = vmatpush1.msra.mxu0 %v1150
        %1566 = vmatprep.subr.mxu0 0.0
        %1567 = vmatpush1.msra.mxu0 %v1151
        %1568 = vmatprep.subr.mxu0 0.0
        %1569 = vmatpush1.msra.mxu0 %v1152
        %1570 = vmatprep.subr.mxu0 0.0
        %1571 = vmatpush1.msra.mxu0 %v1153
        %1572 = vmatprep.subr.mxu0 0.0
        %1573 = vmatpush1.msra.mxu0 %v1154
        %1574 = vmatprep.subr.mxu0 0.0
        %1575 = vmatpush1.msra.mxu0 %v1155
        %1576 = vmatprep.subr.mxu0 0.0
        %1577 = vmatpush1.msra.mxu0 %v1156
        %1578 = vmatprep.subr.mxu0 0.0
        %1579 = vmatpush1.msra.mxu0 %v1157
        %1580 = vmatprep.subr.mxu0 0.0
        %1581 = vmatpush1.msra.mxu0 %v1158
        %1582 = vmatprep.subr.mxu0 0.0
        %1583 = vmatpush1.msra.mxu0 %v1159
        %1584 = vmatprep.subr.mxu0 0.0
        %1585 = vmatpush1.msra.mxu0 %v1160
        %1586 = vmatprep.subr.mxu0 0.0
        %1587 = vmatpush1.msra.mxu0 %v1161
        %1588 = vmatprep.subr.mxu0 0.0
        %1589 = vmatpush1.msra.mxu0 %v1162
        %1590 = vmatprep.subr.mxu0 0.0
        %1591 = vmatpush1.msra.mxu0 %v1163
        %1592 = vmatprep.subr.mxu0 0.0
        %1593 = vmatpush1.msra.mxu0 %v1164
        %1594 = vmatprep.subr.mxu0 0.0
        %1595 = vmatpush1.msra.mxu0 %v1165
        %1596 = vmatprep.subr.mxu0 0.0
        %1597 = vmatpush1.msra.mxu0 %v1166
        %1598 = vmatprep.subr.mxu0 0.0
        %1599 = vmatpush1.msra.mxu0 %v1167
        %1600 = vmatprep.subr.mxu0 0.0
        %1601 = vmatpush1.msra.mxu0 %v1168
        %1602 = vmatprep.subr.mxu0 0.0
        %1603 = vmatpush1.msra.mxu0 %v1169
        %1604 = vmatprep.subr.mxu0 0.0
        %1605 = vmatpush1.msra.mxu0 %v1170
        %1606 = vmatprep.subr.mxu0 0.0
        %1607 = vmatpush1.msra.mxu0 %v1171
        %1608 = vmatprep.subr.mxu0 0.0
        %1609 = vmatpush1.msra.mxu0 %v1172
        %1610 = vmatprep.subr.mxu0 0.0
        %1611 = vmatpush1.msra.mxu0 %v1173
        %1612 = vmatprep.subr.mxu0 0.0
        %1613 = vmatpush1.msra.mxu0 %v1174
        %1614 = vmatprep.subr.mxu0 0.0
        %1615 = vmatpush1.msra.mxu0 %v1175
        %1616 = vmatprep.subr.mxu0 0.0
        %1617 = vmatpush1.msra.mxu0 %v1176
        %1618 = vmatprep.subr.mxu0 0.0
        %1619 = vmatpush1.msra.mxu0 %v1177
        %1620 = vmatprep.mubr.f32.mxu0 %v907
        %1621 = vmatmul.mubr.f32.gmra.mrb[0].mxu0 %v906
        %v1622 = vpop.f32.mrb[0].mxu0
        %v1623 = vadd.f32 %v1458, %v1622
        %v1624 = vpop.f32.mrb[0].mxu0
        %1625 = vmatprep.mubr.f32.mxu0 %v916
        %1626 = vmatmul.mubr.f32.gmra.mrb[0].mxu0 %v915
        %v1627 = vpop.f32.mrb[0].mxu0
        %v1628 = vadd.f32 %v1463, %v1627
        %v1629 = vpop.f32.mrb[0].mxu0
        %1630 = vmatprep.mubr.f32.mxu0 %v925
        %1631 = vmatmul.mubr.f32.gmra.mrb[0].mxu0 %v924
        %v1632 = vpop.f32.mrb[0].mxu0
        %v1633 = vadd.f32 %v1468, %v1632
        %v1634 = vpop.f32.mrb[0].mxu0
        %1635 = vmatprep.mubr.f32.mxu0 %v934
        %1636 = vmatmul.mubr.f32.gmra.mrb[0].mxu0 %v933
        %v1637 = vpop.f32.mrb[0].mxu0
        %v1638 = vadd.f32 %v1473, %v1637
        %v1639 = vpop.f32.mrb[0].mxu0
        %1640 = vmatprep.mubr.f32.mxu0 %v943
        %1641 = vmatmul.mubr.f32.gmra.mrb[0].mxu0 %v942
        %v1642 = vpop.f32.mrb[0].mxu0
        %v1643 = vadd.f32 %v1478, %v1642
        %v1644 = vpop.f32.mrb[0].mxu0
        %1645 = vmatprep.mubr.f32.mxu0 %v952
        %1646 = vmatmul.mubr.f32.gmra.mrb[0].mxu0 %v951
        %v1647 = vpop.f32.mrb[0].mxu0
        %v1648 = vadd.f32 %v1483, %v1647
        %v1649 = vpop.f32.mrb[0].mxu0
        %1650 = vmatprep.mubr.f32.mxu0 %v961
        %1651 = vmatmul.mubr.f32.gmra.mrb[0].mxu0 %v960
        %v1652 = vpop.f32.mrb[0].mxu0
        %v1653 = vadd.f32 %v1488, %v1652
        %v1654 = vpop.f32.mrb[0].mxu0
        %1655 = vmatprep.mubr.f32.mxu0 %v970
        %1656 = vmatmul.mubr.f32.gmra.mrb[0].mxu0 %v969
        %v1657 = vpop.f32.mrb[0].mxu0
        %v1658 = vadd.f32 %v1493, %v1657
        %v1659 = vpop.f32.mrb[0].mxu0
        %1660 = vmatprep.mubr.f32.mxu0 %v979
        %1661 = vmatmul.mubr.f32.gmra.mrb[0].mxu0 %v978
        %v1662 = vpop.f32.mrb[0].mxu0
        %v1663 = vadd.f32 %v1498, %v1662
        %v1664 = vpop.f32.mrb[0].mxu0
        %1665 = vmatprep.mubr.f32.mxu0 %v988
        %1666 = vmatmul.mubr.f32.gmra.mrb[0].mxu0 %v987
        %v1667 = vpop.f32.mrb[0].mxu0
        %v1668 = vadd.f32 %v1503, %v1667
        %v1669 = vpop.f32.mrb[0].mxu0
        %1670 = vmatprep.mubr.f32.mxu0 %v997
        %1671 = vmatmul.mubr.f32.gmra.mrb[0].mxu0 %v996
        %v1672 = vpop.f32.mrb[0].mxu0
        %v1673 = vadd.f32 %v1508, %v1672
        %v1674 = vpop.f32.mrb[0].mxu0
        %1675 = vmatprep.mubr.f32.mxu0 %v1006
        %1676 = vmatmul.mubr.f32.gmra.mrb[0].mxu0 %v1005
        %v1677 = vpop.f32.mrb[0].mxu0
        %v1678 = vadd.f32 %v1513, %v1677
        %v1679 = vpop.f32.mrb[0].mxu0
        %1680 = vmatprep.mubr.f32.mxu0 %v1015
        %1681 = vmatmul.mubr.f32.gmra.mrb[0].mxu0 %v1014
        %v1682 = vpop.f32.mrb[0].mxu0
        %v1683 = vadd.f32 %v1518, %v1682
        %v1684 = vpop.f32.mrb[0].mxu0
        %1685 = vmatprep.mubr.f32.mxu0 %v1024
        %1686 = vmatmul.mubr.f32.gmra.mrb[0].mxu0 %v1023
        %v1687 = vpop.f32.mrb[0].mxu0
        %v1688 = vadd.f32 %v1523, %v1687
        %v1689 = vpop.f32.mrb[0].mxu0
        %1690 = vmatprep.mubr.f32.mxu0 %v1033
        %1691 = vmatmul.mubr.f32.gmra.mrb[0].mxu0 %v1032
        %v1692 = vpop.f32.mrb[0].mxu0
        %v1693 = vadd.f32 %v1528, %v1692
        %v1694 = vpop.f32.mrb[0].mxu0
        %1695 = vmatprep.mubr.f32.mxu0 %v1042
        %1696 = vmatmul.mubr.f32.gmra.mrb[0].mxu0 %v1041
        %v1697 = vpop.f32.mrb[0].mxu0
        %v1698 = vadd.f32 %v1533, %v1697
        %v1699 = vpop.f32.mrb[0].mxu0
        %1700 = vmatprep.mubr.f32.mxu0 %v1051
        %1701 = vmatmul.mubr.f32.gmra.mrb[0].mxu0 %v1050
        %v1702 = vpop.f32.mrb[0].mxu0
        %v1703 = vadd.f32 %v1538, %v1702
        %v1704 = vpop.f32.mrb[0].mxu0
        %1705 = vmatprep.mubr.f32.mxu0 %v1060
        %1706 = vmatmul.mubr.f32.gmra.mrb[0].mxu0 %v1059
        %v1707 = vpop.f32.mrb[0].mxu0
        %v1708 = vadd.f32 %v1543, %v1707
        %v1709 = vpop.f32.mrb[0].mxu0
        %1710 = vmatprep.mubr.f32.mxu0 %v1069
        %1711 = vmatmul.mubr.f32.gmra.mrb[0].mxu0 %v1068
        %v1712 = vpop.f32.mrb[0].mxu0
        %v1713 = vadd.f32 %v1548, %v1712
        %v1714 = vpop.f32.mrb[0].mxu0
        %1715 = vmatprep.mubr.f32.mxu0 %v1078
        %1716 = vmatmul.mubr.f32.gmra.mrb[0].mxu0 %v1077
        %v1717 = vpop.f32.mrb[0].mxu0
        %v1718 = vadd.f32 %v1553, %v1717
        %v1719 = vpop.f32.mrb[0].mxu0
        %1720 = vdwg.mxu0
        %1721 = vmatprep.subr.mxu0 0.0
        %1722 = vmatpush1.msra.mxu0 %v1178
        %1723 = vmatprep.subr.mxu0 0.0
        %1724 = vmatpush1.msra.mxu0 %v1179
        %1725 = vmatprep.subr.mxu0 0.0
        %1726 = vmatpush1.msra.mxu0 %v1180
        %1727 = vmatprep.subr.mxu0 0.0
        %1728 = vmatpush1.msra.mxu0 %v1181
        %1729 = vmatprep.subr.mxu0 0.0
        %1730 = vmatpush1.msra.mxu0 %v1182
        %1731 = vmatprep.subr.mxu0 0.0
        %1732 = vmatpush1.msra.mxu0 %v1183
        %1733 = vmatprep.subr.mxu0 0.0
        %1734 = vmatpush1.msra.mxu0 %v1184
        %1735 = vmatprep.subr.mxu0 0.0
        %1736 = vmatpush1.msra.mxu0 %v1185
        %1737 = vmatprep.subr.mxu0 0.0
        %1738 = vmatpush1.msra.mxu0 %v1186
        %1739 = vmatprep.subr.mxu0 0.0
        %1740 = vmatpush1.msra.mxu0 %v1187
        %1741 = vmatprep.subr.mxu0 0.0
        %1742 = vmatpush1.msra.mxu0 %v1188
        %1743 = vmatprep.subr.mxu0 0.0
        %1744 = vmatpush1.msra.mxu0 %v1189
        %1745 = vmatprep.subr.mxu0 0.0
        %1746 = vmatpush1.msra.mxu0 %v1190
        %1747 = vmatprep.subr.mxu0 0.0
        %1748 = vmatpush1.msra.mxu0 %v1191
        %1749 = vmatprep.subr.mxu0 0.0
        %1750 = vmatpush1.msra.mxu0 %v1192
        %1751 = vmatprep.subr.mxu0 0.0
        %1752 = vmatpush1.msra.mxu0 %v1193
        %1753 = vmatprep.subr.mxu0 0.0
        %1754 = vmatpush1.msra.mxu0 %v1194
        %1755 = vmatprep.subr.mxu0 0.0
        %1756 = vmatpush1.msra.mxu0 %v1195
        %1757 = vmatprep.subr.mxu0 0.0
        %1758 = vmatpush1.msra.mxu0 %v1196
        %1759 = vmatprep.subr.mxu0 0.0
        %1760 = vmatpush1.msra.mxu0 %v1197
        %1761 = vmatprep.subr.mxu0 0.0
        %1762 = vmatpush1.msra.mxu0 %v1198
        %1763 = vmatprep.subr.mxu0 0.0
        %1764 = vmatpush1.msra.mxu0 %v1199
        %1765 = vmatprep.subr.mxu0 0.0
        %1766 = vmatpush1.msra.mxu0 %v1200
        %1767 = vmatprep.subr.mxu0 0.0
        %1768 = vmatpush1.msra.mxu0 %v1201
        %1769 = vmatprep.subr.mxu0 0.0
        %1770 = vmatpush1.msra.mxu0 %v1202
        %1771 = vmatprep.subr.mxu0 0.0
        %1772 = vmatpush1.msra.mxu0 %v1203
        %1773 = vmatprep.subr.mxu0 0.0
        %1774 = vmatpush1.msra.mxu0 %v1204
        %1775 = vmatprep.subr.mxu0 0.0
        %1776 = vmatpush1.msra.mxu0 %v1205
        %1777 = vmatprep.subr.mxu0 0.0
        %1778 = vmatpush1.msra.mxu0 %v1206
        %1779 = vmatprep.subr.mxu0 0.0
        %1780 = vmatpush1.msra.mxu0 %v1207
        %1781 = vmatprep.subr.mxu0 0.0
        %1782 = vmatpush1.msra.mxu0 %v1208
        %1783 = vmatprep.subr.mxu0 0.0
        %1784 = vmatpush1.msra.mxu0 %v1209
        %1785 = vmatprep.mubr.f32.mxu0 %v909
        %1786 = vmatmul.mubr.f32.gmra.mrb[0].mxu0 %v908
        %v1787 = vpop.f32.mrb[0].mxu0
        %v1788 = vadd.f32 %v1623, %v1787
        %v1789 = vpop.f32.mrb[0].mxu0
        %1790 = vmatprep.mubr.f32.mxu0 %v918
        %1791 = vmatmul.mubr.f32.gmra.mrb[0].mxu0 %v917
        %v1792 = vpop.f32.mrb[0].mxu0
        %v1793 = vadd.f32 %v1628, %v1792
        %v1794 = vpop.f32.mrb[0].mxu0
        %1795 = vmatprep.mubr.f32.mxu0 %v927
        %1796 = vmatmul.mubr.f32.gmra.mrb[0].mxu0 %v926
        %v1797 = vpop.f32.mrb[0].mxu0
        %v1798 = vadd.f32 %v1633, %v1797
        %v1799 = vpop.f32.mrb[0].mxu0
        %1800 = vmatprep.mubr.f32.mxu0 %v936
        %1801 = vmatmul.mubr.f32.gmra.mrb[0].mxu0 %v935
        %v1802 = vpop.f32.mrb[0].mxu0
        %v1803 = vadd.f32 %v1638, %v1802
        %v1804 = vpop.f32.mrb[0].mxu0
        %1805 = vmatprep.mubr.f32.mxu0 %v945
        %1806 = vmatmul.mubr.f32.gmra.mrb[0].mxu0 %v944
        %v1807 = vpop.f32.mrb[0].mxu0
        %v1808 = vadd.f32 %v1643, %v1807
        %v1809 = vpop.f32.mrb[0].mxu0
        %1810 = vmatprep.mubr.f32.mxu0 %v954
        %1811 = vmatmul.mubr.f32.gmra.mrb[0].mxu0 %v953
        %v1812 = vpop.f32.mrb[0].mxu0
        %v1813 = vadd.f32 %v1648, %v1812
        %v1814 = vpop.f32.mrb[0].mxu0
        %1815 = vmatprep.mubr.f32.mxu0 %v963
        %1816 = vmatmul.mubr.f32.gmra.mrb[0].mxu0 %v962
        %v1817 = vpop.f32.mrb[0].mxu0
        %v1818 = vadd.f32 %v1653, %v1817
        %v1819 = vpop.f32.mrb[0].mxu0
        %1820 = vmatprep.mubr.f32.mxu0 %v972
        %1821 = vmatmul.mubr.f32.gmra.mrb[0].mxu0 %v971
        %v1822 = vpop.f32.mrb[0].mxu0
        %v1823 = vadd.f32 %v1658, %v1822
        %v1824 = vpop.f32.mrb[0].mxu0
        %1825 = vmatprep.mubr.f32.mxu0 %v981
        %1826 = vmatmul.mubr.f32.gmra.mrb[0].mxu0 %v980
        %v1827 = vpop.f32.mrb[0].mxu0
        %v1828 = vadd.f32 %v1663, %v1827
        %v1829 = vpop.f32.mrb[0].mxu0
        %1830 = vmatprep.mubr.f32.mxu0 %v990
        %1831 = vmatmul.mubr.f32.gmra.mrb[0].mxu0 %v989
        %v1832 = vpop.f32.mrb[0].mxu0
        %v1833 = vadd.f32 %v1668, %v1832
        %v1834 = vpop.f32.mrb[0].mxu0
        %1835 = vmatprep.mubr.f32.mxu0 %v999
        %1836 = vmatmul.mubr.f32.gmra.mrb[0].mxu0 %v998
        %v1837 = vpop.f32.mrb[0].mxu0
        %v1838 = vadd.f32 %v1673, %v1837
        %v1839 = vpop.f32.mrb[0].mxu0
        %1840 = vmatprep.mubr.f32.mxu0 %v1008
        %1841 = vmatmul.mubr.f32.gmra.mrb[0].mxu0 %v1007
        %v1842 = vpop.f32.mrb[0].mxu0
        %v1843 = vadd.f32 %v1678, %v1842
        %v1844 = vpop.f32.mrb[0].mxu0
        %1845 = vmatprep.mubr.f32.mxu0 %v1017
        %1846 = vmatmul.mubr.f32.gmra.mrb[0].mxu0 %v1016
        %v1847 = vpop.f32.mrb[0].mxu0
        %v1848 = vadd.f32 %v1683, %v1847
        %v1849 = vpop.f32.mrb[0].mxu0
        %1850 = vmatprep.mubr.f32.mxu0 %v1026
        %1851 = vmatmul.mubr.f32.gmra.mrb[0].mxu0 %v1025
        %v1852 = vpop.f32.mrb[0].mxu0
        %v1853 = vadd.f32 %v1688, %v1852
        %v1854 = vpop.f32.mrb[0].mxu0
        %1855 = vmatprep.mubr.f32.mxu0 %v1035
        %1856 = vmatmul.mubr.f32.gmra.mrb[0].mxu0 %v1034
        %v1857 = vpop.f32.mrb[0].mxu0
        %v1858 = vadd.f32 %v1693, %v1857
        %v1859 = vpop.f32.mrb[0].mxu0
        %1860 = vmatprep.mubr.f32.mxu0 %v1044
        %1861 = vmatmul.mubr.f32.gmra.mrb[0].mxu0 %v1043
        %v1862 = vpop.f32.mrb[0].mxu0
        %v1863 = vadd.f32 %v1698, %v1862
        %v1864 = vpop.f32.mrb[0].mxu0
        %1865 = vmatprep.mubr.f32.mxu0 %v1053
        %1866 = vmatmul.mubr.f32.gmra.mrb[0].mxu0 %v1052
        %v1867 = vpop.f32.mrb[0].mxu0
        %v1868 = vadd.f32 %v1703, %v1867
        %v1869 = vpop.f32.mrb[0].mxu0
        %1870 = vmatprep.mubr.f32.mxu0 %v1062
        %1871 = vmatmul.mubr.f32.gmra.mrb[0].mxu0 %v1061
        %v1872 = vpop.f32.mrb[0].mxu0
        %v1873 = vadd.f32 %v1708, %v1872
        %v1874 = vpop.f32.mrb[0].mxu0
        %1875 = vmatprep.mubr.f32.mxu0 %v1071
        %1876 = vmatmul.mubr.f32.gmra.mrb[0].mxu0 %v1070
        %v1877 = vpop.f32.mrb[0].mxu0
        %v1878 = vadd.f32 %v1713, %v1877
        %v1879 = vpop.f32.mrb[0].mxu0
        %1880 = vmatprep.mubr.f32.mxu0 %v1080
        %1881 = vmatmul.mubr.f32.gmra.mrb[0].mxu0 %v1079
        %v1882 = vpop.f32.mrb[0].mxu0
        %v1883 = vadd.f32 %v1718, %v1882
        %v1884 = vpop.f32.mrb[0].mxu0
        %1885 = vdwg.mxu0
        %1886 = vmatprep.subr.mxu0 0.0
        %1887 = vmatpush1.msra.mxu0 %v1210
        %1888 = vmatprep.subr.mxu0 0.0
        %1889 = vmatpush1.msra.mxu0 %v1211
        %1890 = vmatprep.subr.mxu0 0.0
        %1891 = vmatpush1.msra.mxu0 %v1212
        %1892 = vmatprep.subr.mxu0 0.0
        %1893 = vmatpush1.msra.mxu0 %v1213
        %1894 = vmatprep.subr.mxu0 0.0
        %1895 = vmatpush1.msra.mxu0 %v1214
        %1896 = vmatprep.subr.mxu0 0.0
        %1897 = vmatpush1.msra.mxu0 %v1215
        %1898 = vmatprep.subr.mxu0 0.0
        %1899 = vmatpush1.msra.mxu0 %v1216
        %1900 = vmatprep.subr.mxu0 0.0
        %1901 = vmatpush1.msra.mxu0 %v1217
        %1902 = vmatprep.subr.mxu0 0.0
        %1903 = vmatpush1.msra.mxu0 %v1218
        %1904 = vmatprep.subr.mxu0 0.0
        %1905 = vmatpush1.msra.mxu0 %v1219
        %1906 = vmatprep.subr.mxu0 0.0
        %1907 = vmatpush1.msra.mxu0 %v1220
        %1908 = vmatprep.subr.mxu0 0.0
        %1909 = vmatpush1.msra.mxu0 %v1221
        %1910 = vmatprep.subr.mxu0 0.0
        %1911 = vmatpush1.msra.mxu0 %v1222
        %1912 = vmatprep.subr.mxu0 0.0
        %1913 = vmatpush1.msra.mxu0 %v1223
        %1914 = vmatprep.subr.mxu0 0.0
        %1915 = vmatpush1.msra.mxu0 %v1224
        %1916 = vmatprep.subr.mxu0 0.0
        %1917 = vmatpush1.msra.mxu0 %v1225
        %1918 = vmatprep.subr.mxu0 0.0
        %1919 = vmatpush1.msra.mxu0 0.0
        %1920 = vmatprep.subr.mxu0 0.0
        %1921 = vmatpush1.msra.mxu0 0.0
        %1922 = vmatprep.subr.mxu0 0.0
        %1923 = vmatpush1.msra.mxu0 0.0
        %1924 = vmatprep.subr.mxu0 0.0
        %1925 = vmatpush1.msra.mxu0 0.0
        %1926 = vmatprep.subr.mxu0 0.0
        %1927 = vmatpush1.msra.mxu0 0.0
        %1928 = vmatprep.subr.mxu0 0.0
        %1929 = vmatpush1.msra.mxu0 0.0
        %1930 = vmatprep.subr.mxu0 0.0
        %1931 = vmatpush1.msra.mxu0 0.0
        %1932 = vmatprep.subr.mxu0 0.0
        %1933 = vmatpush1.msra.mxu0 0.0
        %1934 = vmatprep.subr.mxu0 0.0
        %1935 = vmatpush1.msra.mxu0 0.0
        %1936 = vmatprep.subr.mxu0 0.0
        %1937 = vmatpush1.msra.mxu0 0.0
        %1938 = vmatprep.subr.mxu0 0.0
        %1939 = vmatpush1.msra.mxu0 0.0
        %1940 = vmatprep.subr.mxu0 0.0
        %1941 = vmatpush1.msra.mxu0 0.0
        %1942 = vmatprep.subr.mxu0 0.0
        %1943 = vmatpush1.msra.mxu0 0.0
        %1944 = vmatprep.subr.mxu0 0.0
        %1945 = vmatpush1.msra.mxu0 0.0
        %1946 = vmatprep.subr.mxu0 0.0
        %1947 = vmatpush1.msra.mxu0 0.0
        %1948 = vmatprep.subr.mxu0 0.0
        %1949 = vmatpush1.msra.mxu0 0.0
        %1950 = vmatprep.mubr.f32.mxu0 0.0
        %1951 = vmatmul.mubr.f32.gmra.mrb[0].mxu0 %v910
        %v1952 = vpop.f32.mrb[0].mxu0
        %v1953 = vadd.f32 %v1788, %v1952
        %v1954 = vpop.f32.mrb[0].mxu0
        %1955 = vmatprep.mubr.f32.mxu0 0.0
        %1956 = vmatmul.mubr.f32.gmra.mrb[0].mxu0 %v919
        %v1957 = vpop.f32.mrb[0].mxu0
        %v1958 = vadd.f32 %v1793, %v1957
        %v1959 = vpop.f32.mrb[0].mxu0
        %1960 = vmatprep.mubr.f32.mxu0 0.0
        %1961 = vmatmul.mubr.f32.gmra.mrb[0].mxu0 %v928
        %v1962 = vpop.f32.mrb[0].mxu0
        %v1963 = vadd.f32 %v1798, %v1962
        %v1964 = vpop.f32.mrb[0].mxu0
        %1965 = vmatprep.mubr.f32.mxu0 0.0
        %1966 = vmatmul.mubr.f32.gmra.mrb[0].mxu0 %v937
        %v1967 = vpop.f32.mrb[0].mxu0
        %v1968 = vadd.f32 %v1803, %v1967
        %v1969 = vpop.f32.mrb[0].mxu0
        %1970 = vmatprep.mubr.f32.mxu0 0.0
        %1971 = vmatmul.mubr.f32.gmra.mrb[0].mxu0 %v946
        %v1972 = vpop.f32.mrb[0].mxu0
        %v1973 = vadd.f32 %v1808, %v1972
        %v1974 = vpop.f32.mrb[0].mxu0
        %1975 = vmatprep.mubr.f32.mxu0 0.0
        %1976 = vmatmul.mubr.f32.gmra.mrb[0].mxu0 %v955
        %v1977 = vpop.f32.mrb[0].mxu0
        %v1978 = vadd.f32 %v1813, %v1977
        %v1979 = vpop.f32.mrb[0].mxu0
        %1980 = vmatprep.mubr.f32.mxu0 0.0
        %1981 = vmatmul.mubr.f32.gmra.mrb[0].mxu0 %v964
        %v1982 = vpop.f32.mrb[0].mxu0
        %v1983 = vadd.f32 %v1818, %v1982
        %v1984 = vpop.f32.mrb[0].mxu0
        %1985 = vmatprep.mubr.f32.mxu0 0.0
        %1986 = vmatmul.mubr.f32.gmra.mrb[0].mxu0 %v973
        %v1987 = vpop.f32.mrb[0].mxu0
        %v1988 = vadd.f32 %v1823, %v1987
        %v1989 = vpop.f32.mrb[0].mxu0
        %1990 = vmatprep.mubr.f32.mxu0 0.0
        %1991 = vmatmul.mubr.f32.gmra.mrb[0].mxu0 %v982
        %v1992 = vpop.f32.mrb[0].mxu0
        %v1993 = vadd.f32 %v1828, %v1992
        %v1994 = vpop.f32.mrb[0].mxu0
        %1995 = vmatprep.mubr.f32.mxu0 0.0
        %1996 = vmatmul.mubr.f32.gmra.mrb[0].mxu0 %v991
        %v1997 = vpop.f32.mrb[0].mxu0
        %v1998 = vadd.f32 %v1833, %v1997
        %v1999 = vpop.f32.mrb[0].mxu0
        %2000 = vmatprep.mubr.f32.mxu0 0.0
        %2001 = vmatmul.mubr.f32.gmra.mrb[0].mxu0 %v1000
        %v2002 = vpop.f32.mrb[0].mxu0
        %v2003 = vadd.f32 %v1838, %v2002
        %v2004 = vpop.f32.mrb[0].mxu0
        %2005 = vmatprep.mubr.f32.mxu0 0.0
        %2006 = vmatmul.mubr.f32.gmra.mrb[0].mxu0 %v1009
        %v2007 = vpop.f32.mrb[0].mxu0
        %v2008 = vadd.f32 %v1843, %v2007
        %v2009 = vpop.f32.mrb[0].mxu0
        %2010 = vmatprep.mubr.f32.mxu0 0.0
        %2011 = vmatmul.mubr.f32.gmra.mrb[0].mxu0 %v1018
        %v2012 = vpop.f32.mrb[0].mxu0
        %v2013 = vadd.f32 %v1848, %v2012
        %v2014 = vpop.f32.mrb[0].mxu0
        %2015 = vmatprep.mubr.f32.mxu0 0.0
        %2016 = vmatmul.mubr.f32.gmra.mrb[0].mxu0 %v1027
        %v2017 = vpop.f32.mrb[0].mxu0
        %v2018 = vadd.f32 %v1853, %v2017
        %v2019 = vpop.f32.mrb[0].mxu0
        %2020 = vmatprep.mubr.f32.mxu0 0.0
        %2021 = vmatmul.mubr.f32.gmra.mrb[0].mxu0 %v1036
        %v2022 = vpop.f32.mrb[0].mxu0
        %v2023 = vadd.f32 %v1858, %v2022
        %v2024 = vpop.f32.mrb[0].mxu0
        %2025 = vmatprep.mubr.f32.mxu0 0.0
        %2026 = vmatmul.mubr.f32.gmra.mrb[0].mxu0 %v1045
        %v2027 = vpop.f32.mrb[0].mxu0
        %v2028 = vadd.f32 %v1863, %v2027
        %v2029 = vpop.f32.mrb[0].mxu0
        %2030 = vmatprep.mubr.f32.mxu0 0.0
        %2031 = vmatmul.mubr.f32.gmra.mrb[0].mxu0 %v1054
        %v2032 = vpop.f32.mrb[0].mxu0
        %v2033 = vadd.f32 %v1868, %v2032
        %v2034 = vpop.f32.mrb[0].mxu0
        %2035 = vmatprep.mubr.f32.mxu0 0.0
        %2036 = vmatmul.mubr.f32.gmra.mrb[0].mxu0 %v1063
        %v2037 = vpop.f32.mrb[0].mxu0
        %v2038 = vadd.f32 %v1873, %v2037
        %v2039 = vpop.f32.mrb[0].mxu0
        %2040 = vmatprep.mubr.f32.mxu0 0.0
        %2041 = vmatmul.mubr.f32.gmra.mrb[0].mxu0 %v1072
        %v2042 = vpop.f32.mrb[0].mxu0
        %v2043 = vadd.f32 %v1878, %v2042
        %v2044 = vpop.f32.mrb[0].mxu0
        %2045 = vmatprep.mubr.f32.mxu0 0.0
        %2046 = vmatmul.mubr.f32.gmra.mrb[0].mxu0 %v1081
        %v2047 = vpop.f32.mrb[0].mxu0
        %v2048 = vadd.f32 %v1883, %v2047
        %v2049 = vpop.f32.mrb[0].mxu0
        %2050 = vdwg.mxu0
        %v2051 = vmax.f32 %v1953, 0.0
        %v2052 = vmax.f32 %v1958, 0.0
        %v2053 = vmax.f32 %v1963, 0.0
        %v2054 = vmax.f32 %v1968, 0.0
        %v2055 = vmax.f32 %v1973, 0.0
        %v2056 = vmax.f32 %v1978, 0.0
        %v2057 = vmax.f32 %v1983, 0.0
        %v2058 = vmax.f32 %v1988, 0.0
        %v2059 = vmax.f32 %v1993, 0.0
        %v2060 = vmax.f32 %v1998, 0.0
        %v2061 = vmax.f32 %v2003, 0.0
        %v2062 = vmax.f32 %v2008, 0.0
        %v2063 = vmax.f32 %v2013, 0.0
        %v2064 = vmax.f32 %v2018, 0.0
        %v2065 = vmax.f32 %v2023, 0.0
        %v2066 = vmax.f32 %v2028, 0.0
        %v2067 = vmax.f32 %v2033, 0.0
        %v2068 = vmax.f32 %v2038, 0.0
        %v2069 = vmax.f32 %v2043, 0.0
        %v2070 = vmax.f32 %v2048, 0.0
        %v2071 = vstv %s282
        %v2072 = vmul.f32 %v2051, %v2071
        %v2073 = vmul.f32 %v2052, %v2071
        %v2074 = vmul.f32 %v2053, %v2071
        %v2075 = vmul.f32 %v2054, %v2071
        %v2076 = vmul.f32 %v2055, %v2071
        %v2077 = vmul.f32 %v2056, %v2071
        %v2078 = vmul.f32 %v2057, %v2071
        %v2079 = vmul.f32 %v2058, %v2071
        %v2080 = vmul.f32 %v2059, %v2071
        %v2081 = vmul.f32 %v2060, %v2071
        %v2082 = vmul.f32 %v2061, %v2071
        %v2083 = vmul.f32 %v2062, %v2071
        %v2084 = vmul.f32 %v2063, %v2071
        %v2085 = vmul.f32 %v2064, %v2071
        %v2086 = vmul.f32 %v2065, %v2071
        %v2087 = vmul.f32 %v2066, %v2071
        %v2088 = vmul.f32 %v2067, %v2071
        %v2089 = vmul.f32 %v2068, %v2071
        %v2090 = vmul.f32 %v2069, %v2071
        %v2091 = vmul.f32 %v2070, %v2071
        %v2092 = vmax.f32 %v2072, -127.0
        %v2093 = vmax.f32 %v2073, -127.0
        %v2094 = vmax.f32 %v2074, -127.0
        %v2095 = vmax.f32 %v2075, -127.0
        %v2096 = vmax.f32 %v2076, -127.0
        %v2097 = vmax.f32 %v2077, -127.0
        %v2098 = vmax.f32 %v2078, -127.0
        %v2099 = vmax.f32 %v2079, -127.0
        %v2100 = vmax.f32 %v2080, -127.0
        %v2101 = vmax.f32 %v2081, -127.0
        %v2102 = vmax.f32 %v2082, -127.0
        %v2103 = vmax.f32 %v2083, -127.0
        %v2104 = vmax.f32 %v2084, -127.0
        %v2105 = vmax.f32 %v2085, -127.0
        %v2106 = vmax.f32 %v2086, -127.0
        %v2107 = vmax.f32 %v2087, -127.0
        %v2108 = vmax.f32 %v2088, -127.0
        %v2109 = vmax.f32 %v2089, -127.0
        %v2110 = vmax.f32 %v2090, -127.0
        %v2111 = vmax.f32 %v2091, -127.0
        %v2112 = vmin.f32 %v2092, 127.0
        %v2113 = vmin.f32 %v2093, 127.0
        %v2114 = vmin.f32 %v2094, 127.0
        %v2115 = vmin.f32 %v2095, 127.0
        %v2116 = vmin.f32 %v2096, 127.0
        %v2117 = vmin.f32 %v2097, 127.0
        %v2118 = vmin.f32 %v2098, 127.0
        %v2119 = vmin.f32 %v2099, 127.0
        %v2120 = vmin.f32 %v2100, 127.0
        %v2121 = vmin.f32 %v2101, 127.0
        %v2122 = vmin.f32 %v2102, 127.0
        %v2123 = vmin.f32 %v2103, 127.0
        %v2124 = vmin.f32 %v2104, 127.0
        %v2125 = vmin.f32 %v2105, 127.0
        %v2126 = vmin.f32 %v2106, 127.0
        %v2127 = vmin.f32 %v2107, 127.0
        %v2128 = vmin.f32 %v2108, 127.0
        %v2129 = vmin.f32 %v2109, 127.0
        %v2130 = vmin.f32 %v2110, 127.0
        %v2131 = vmin.f32 %v2111, 127.0
        %v2132 = vround.ne.pseudo %v2112
        %v2133 = vround.ne.pseudo %v2113
        %v2134 = vround.ne.pseudo %v2114
        %v2135 = vround.ne.pseudo %v2115
        %v2136 = vround.ne.pseudo %v2116
        %v2137 = vround.ne.pseudo %v2117
        %v2138 = vround.ne.pseudo %v2118
        %v2139 = vround.ne.pseudo %v2119
        %v2140 = vround.ne.pseudo %v2120
        %v2141 = vround.ne.pseudo %v2121
        %v2142 = vround.ne.pseudo %v2122
        %v2143 = vround.ne.pseudo %v2123
        %v2144 = vround.ne.pseudo %v2124
        %v2145 = vround.ne.pseudo %v2125
        %v2146 = vround.ne.pseudo %v2126
        %v2147 = vround.ne.pseudo %v2127
        %v2148 = vround.ne.pseudo %v2128
        %v2149 = vround.ne.pseudo %v2129
        %v2150 = vround.ne.pseudo %v2130
        %v2151 = vround.ne.pseudo %v2131
        %v2152 = vstv %s283
        %v2153 = vmul.f32 %v2132, %v2152
        %v2154 = vmul.f32 %v2133, %v2152
        %v2155 = vmul.f32 %v2134, %v2152
        %v2156 = vmul.f32 %v2135, %v2152
        %v2157 = vmul.f32 %v2136, %v2152
        %v2158 = vmul.f32 %v2137, %v2152
        %v2159 = vmul.f32 %v2138, %v2152
        %v2160 = vmul.f32 %v2139, %v2152
        %v2161 = vmul.f32 %v2140, %v2152
        %v2162 = vmul.f32 %v2141, %v2152
        %v2163 = vmul.f32 %v2142, %v2152
        %v2164 = vmul.f32 %v2143, %v2152
        %v2165 = vmul.f32 %v2144, %v2152
        %v2166 = vmul.f32 %v2145, %v2152
        %v2167 = vmul.f32 %v2146, %v2152
        %v2168 = vmul.f32 %v2147, %v2152
        %v2169 = vmul.f32 %v2148, %v2152
        %v2170 = vmul.f32 %v2149, %v2152
        %v2171 = vmul.f32 %v2150, %v2152
        %v2172 = vmul.f32 %v2151, %v2152
        %2173 = vst [vmem:[#allocation3 + $0x1] sm:$0xff] %v2153
        %2174 = vst [vmem:[#allocation3 + $0x9] sm:$0xff] %v2154
        %2175 = vst [vmem:[#allocation3 + $0x19] sm:$0xff] %v2155
        %2176 = vst [vmem:[#allocation3 + $0x21] sm:$0xff] %v2156
        %2177 = vst [vmem:[#allocation3 + $0x31] sm:$0xff] %v2157
        %2178 = vst [vmem:[#allocation3 + $0x39] sm:$0xff] %v2158
        %2179 = vst [vmem:[#allocation3 + $0x49] sm:$0xff] %v2159
        %2180 = vst [vmem:[#allocation3 + $0x51] sm:$0xff] %v2160
        %2181 = vst [vmem:[#allocation3 + $0x61] sm:$0xff] %v2161
        %2182 = vst [vmem:[#allocation3 + $0x69] sm:$0xff] %v2162
        %2183 = vst [vmem:[#allocation3 + $0x79] sm:$0xff] %v2163
        %2184 = vst [vmem:[#allocation3 + $0x81] sm:$0xff] %v2164
        %2185 = vst [vmem:[#allocation3 + $0x91] sm:$0xff] %v2165
        %2186 = vst [vmem:[#allocation3 + $0x99] sm:$0xff] %v2166
        %2187 = vst [vmem:[#allocation3 + $0xa9] sm:$0xff] %v2167
        %2188 = vst [vmem:[#allocation3 + $0xb1] sm:$0xff] %v2168
        %2189 = vst [vmem:[#allocation3 + $0xc1] sm:$0xff] %v2169
        %2190 = vst [vmem:[#allocation3 + $0xc9] sm:$0xff] %v2170
        %2191 = vst [vmem:[#allocation3 + $0xd9] sm:$0xff] %v2171
        %2192 = vst [vmem:[#allocation3 + $0xe1] sm:$0xff] %v2172
        %2193 = vst [vmem:[#allocation3] sm:$0x1] 0.0
        %2194 = vst [vmem:[#allocation3 + $0x18] sm:$0x1] 0.0
        %2195 = vst [vmem:[#allocation3 + $0x30] sm:$0x1] 0.0
        %2196 = vst [vmem:[#allocation3 + $0x48] sm:$0x1] 0.0
        %2197 = vst [vmem:[#allocation3 + $0x60] sm:$0x1] 0.0
        %2198 = vst [vmem:[#allocation3 + $0x78] sm:$0x1] 0.0
        %2199 = vst [vmem:[#allocation3 + $0x90] sm:$0x1] 0.0
        %2200 = vst [vmem:[#allocation3 + $0xa8] sm:$0x1] 0.0
        %2201 = vst [vmem:[#allocation3 + $0xc0] sm:$0x1] 0.0
        %2202 = vst [vmem:[#allocation3 + $0xd8] sm:$0x1] 0.0
        %2203 = vst [vmem:[#allocation3 + $0x11] sm:$0x1] 0.0
        %2204 = vst [vmem:[#allocation3 + $0x29] sm:$0x1] 0.0
        %2205 = vst [vmem:[#allocation3 + $0x41] sm:$0x1] 0.0
        %2206 = vst [vmem:[#allocation3 + $0x59] sm:$0x1] 0.0
        %2207 = vst [vmem:[#allocation3 + $0x71] sm:$0x1] 0.0
        %2208 = vst [vmem:[#allocation3 + $0x89] sm:$0x1] 0.0
        %2209 = vst [vmem:[#allocation3 + $0xa1] sm:$0x1] 0.0
        %2210 = vst [vmem:[#allocation3 + $0xb9] sm:$0x1] 0.0
        %2211 = vst [vmem:[#allocation3 + $0xd1] sm:$0x1] 0.0
        %2212 = vst [vmem:[#allocation3 + $0xe9] sm:$0x1] 0.0
        %p2213 = scmp.eq.s32.totalorder %s28, 0
        // Predicated region
        $region53: #{tpu_custom_call.1} parent=35 // pred_check
          %p2214 = pneg %p2213
        $region54: #{tpu_custom_call.1} parent=35 // pred_check_branch
          %2216 = sbr.rel (%p2214) target = $region56
        $region55: #{tpu_custom_call.1} parent=35 // pred_region
          %2217 = vst [vmem:[#allocation3] sm:$0xff] 0.0
          %2218 = vst [vmem:[#allocation3 + $0x8] sm:$0xff] 0.0
          %2219 = vst [vmem:[#allocation3 + $0x10] sm:$0x3] 0.0
        $region56: #{tpu_custom_call.1} parent=35 // pred_fallthru
          _
        %p2220 = scmp.eq.s32.totalorder %s28, 1
        // Predicated region
        $region57: #{tpu_custom_call.1} parent=35 // pred_check
          %p2221 = pneg %p2220
        $region58: #{tpu_custom_call.1} parent=35 // pred_check_branch
          %2223 = sbr.rel (%p2221) target = $region60
        $region59: #{tpu_custom_call.1} parent=35 // pred_region
          %s2224 = scalar_lea.vmem [#allocation3], 216
          %2225 = vst [vmem:[%s2224] sm:$0xff] 0.0
          %2226 = vst [vmem:[%s2224 + $0x8] sm:$0xff] 0.0
          %2227 = vst [vmem:[%s2224 + $0x10] sm:$0x3] 0.0
        $region60: #{tpu_custom_call.1} parent=35 // pred_fallthru
          _
        %v2228 = vld [vmem:[#allocation3] sm:$0xff]
        %v2229 = vld [vmem:[#allocation3 + $0x8] sm:$0xff]
        %v2230 = vld [vmem:[#allocation3 + $0x18] sm:$0xff]
        %v2231 = vld [vmem:[#allocation3 + $0x20] sm:$0xff]
        %v2232 = vld [vmem:[#allocation3 + $0x30] sm:$0xff]
        %v2233 = vld [vmem:[#allocation3 + $0x38] sm:$0xff]
        %v2234 = vld [vmem:[#allocation3 + $0x48] sm:$0xff]
        %v2235 = vld [vmem:[#allocation3 + $0x50] sm:$0xff]
        %v2236 = vld [vmem:[#allocation3 + $0x60] sm:$0xff]
        %v2237 = vld [vmem:[#allocation3 + $0x68] sm:$0xff]
        %v2238 = vld [vmem:[#allocation3 + $0x78] sm:$0xff]
        %v2239 = vld [vmem:[#allocation3 + $0x80] sm:$0xff]
        %v2240 = vld [vmem:[#allocation3 + $0x90] sm:$0xff]
        %v2241 = vld [vmem:[#allocation3 + $0x98] sm:$0xff]
        %v2242 = vld [vmem:[#allocation3 + $0xa8] sm:$0xff]
        %v2243 = vld [vmem:[#allocation3 + $0xb0] sm:$0xff]
        %2244 = vst [vmem:[#allocation4] sm:$0xff] %v2228
        %2245 = vst [vmem:[#allocation4 + $0x48] sm:$0xff] %v2229
        %2246 = vst [vmem:[#allocation4 + $0x90] sm:$0xff] %v2230
        %2247 = vst [vmem:[#allocation4 + $0xd8] sm:$0xff] %v2231
        %2248 = vst [vmem:[#allocation4 + $0x120] sm:$0xff] %v2232
        %2249 = vst [vmem:[#allocation4 + $0x168] sm:$0xff] %v2233
        %2250 = vst [vmem:[#allocation4 + $0x1b0] sm:$0xff] %v2234
        %2251 = vst [vmem:[#allocation4 + $0x1f8] sm:$0xff] %v2235
        %2252 = vst [vmem:[#allocation4 + $0x240] sm:$0xff] %v2236
        %2253 = vst [vmem:[#allocation4 + $0x288] sm:$0xff] %v2237
        %2254 = vst [vmem:[#allocation4 + $0x2d0] sm:$0xff] %v2238
        %2255 = vst [vmem:[#allocation4 + $0x318] sm:$0xff] %v2239
        %2256 = vst [vmem:[#allocation4 + $0x360] sm:$0xff] %v2240
        %2257 = vst [vmem:[#allocation4 + $0x3a8] sm:$0xff] %v2241
        %2258 = vst [vmem:[#allocation4 + $0x3f0] sm:$0xff] %v2242
        %2259 = vst [vmem:[#allocation4 + $0x438] sm:$0xff] %v2243
        %v2260 = vld [vmem:[#allocation3 + $0x1] sm:$0xff]
        %v2261 = vld [vmem:[#allocation3 + $0x9] sm:$0xff]
        %v2262 = vld [vmem:[#allocation3 + $0x19] sm:$0xff]
        %v2263 = vld [vmem:[#allocation3 + $0x21] sm:$0xff]
        %v2264 = vld [vmem:[#allocation3 + $0x31] sm:$0xff]
        %v2265 = vld [vmem:[#allocation3 + $0x39] sm:$0xff]
        %v2266 = vld [vmem:[#allocation3 + $0x49] sm:$0xff]
        %v2267 = vld [vmem:[#allocation3 + $0x51] sm:$0xff]
        %v2268 = vld [vmem:[#allocation3 + $0x61] sm:$0xff]
        %v2269 = vld [vmem:[#allocation3 + $0x69] sm:$0xff]
        %v2270 = vld [vmem:[#allocation3 + $0x79] sm:$0xff]
        %v2271 = vld [vmem:[#allocation3 + $0x81] sm:$0xff]
        %v2272 = vld [vmem:[#allocation3 + $0x91] sm:$0xff]
        %v2273 = vld [vmem:[#allocation3 + $0x99] sm:$0xff]
        %v2274 = vld [vmem:[#allocation3 + $0xa9] sm:$0xff]
        %v2275 = vld [vmem:[#allocation3 + $0xb1] sm:$0xff]
        %2276 = vst [vmem:[#allocation4 + $0x8] sm:$0xff] %v2260
        %2277 = vst [vmem:[#allocation4 + $0x50] sm:$0xff] %v2261
        %2278 = vst [vmem:[#allocation4 + $0x98] sm:$0xff] %v2262
        %2279 = vst [vmem:[#allocation4 + $0xe0] sm:$0xff] %v2263
        %2280 = vst [vmem:[#allocation4 + $0x128] sm:$0xff] %v2264
        %2281 = vst [vmem:[#allocation4 + $0x170] sm:$0xff] %v2265
        %2282 = vst [vmem:[#allocation4 + $0x1b8] sm:$0xff] %v2266
        %2283 = vst [vmem:[#allocation4 + $0x200] sm:$0xff] %v2267
        %2284 = vst [vmem:[#allocation4 + $0x248] sm:$0xff] %v2268
        %2285 = vst [vmem:[#allocation4 + $0x290] sm:$0xff] %v2269
        %2286 = vst [vmem:[#allocation4 + $0x2d8] sm:$0xff] %v2270
        %2287 = vst [vmem:[#allocation4 + $0x320] sm:$0xff] %v2271
        %2288 = vst [vmem:[#allocation4 + $0x368] sm:$0xff] %v2272
        %2289 = vst [vmem:[#allocation4 + $0x3b0] sm:$0xff] %v2273
        %2290 = vst [vmem:[#allocation4 + $0x3f8] sm:$0xff] %v2274
        %2291 = vst [vmem:[#allocation4 + $0x440] sm:$0xff] %v2275
        %v2292 = vld [vmem:[#allocation3 + $0x2] sm:$0xff]
        %v2293 = vld [vmem:[#allocation3 + $0xa] sm:$0xff]
        %v2294 = vld [vmem:[#allocation3 + $0x1a] sm:$0xff]
        %v2295 = vld [vmem:[#allocation3 + $0x22] sm:$0xff]
        %v2296 = vld [vmem:[#allocation3 + $0x32] sm:$0xff]
        %v2297 = vld [vmem:[#allocation3 + $0x3a] sm:$0xff]
        %v2298 = vld [vmem:[#allocation3 + $0x4a] sm:$0xff]
        %v2299 = vld [vmem:[#allocation3 + $0x52] sm:$0xff]
        %v2300 = vld [vmem:[#allocation3 + $0x62] sm:$0xff]
        %v2301 = vld [vmem:[#allocation3 + $0x6a] sm:$0xff]
        %v2302 = vld [vmem:[#allocation3 + $0x7a] sm:$0xff]
        %v2303 = vld [vmem:[#allocation3 + $0x82] sm:$0xff]
        %v2304 = vld [vmem:[#allocation3 + $0x92] sm:$0xff]
        %v2305 = vld [vmem:[#allocation3 + $0x9a] sm:$0xff]
        %v2306 = vld [vmem:[#allocation3 + $0xaa] sm:$0xff]
        %v2307 = vld [vmem:[#allocation3 + $0xb2] sm:$0xff]
        %2308 = vst [vmem:[#allocation4 + $0x10] sm:$0xff] %v2292
        %2309 = vst [vmem:[#allocation4 + $0x58] sm:$0xff] %v2293
        %2310 = vst [vmem:[#allocation4 + $0xa0] sm:$0xff] %v2294
        %2311 = vst [vmem:[#allocation4 + $0xe8] sm:$0xff] %v2295
        %2312 = vst [vmem:[#allocation4 + $0x130] sm:$0xff] %v2296
        %2313 = vst [vmem:[#allocation4 + $0x178] sm:$0xff] %v2297
        %2314 = vst [vmem:[#allocation4 + $0x1c0] sm:$0xff] %v2298
        %2315 = vst [vmem:[#allocation4 + $0x208] sm:$0xff] %v2299
        %2316 = vst [vmem:[#allocation4 + $0x250] sm:$0xff] %v2300
        %2317 = vst [vmem:[#allocation4 + $0x298] sm:$0xff] %v2301
        %2318 = vst [vmem:[#allocation4 + $0x2e0] sm:$0xff] %v2302
        %2319 = vst [vmem:[#allocation4 + $0x328] sm:$0xff] %v2303
        %2320 = vst [vmem:[#allocation4 + $0x370] sm:$0xff] %v2304
        %2321 = vst [vmem:[#allocation4 + $0x3b8] sm:$0xff] %v2305
        %2322 = vst [vmem:[#allocation4 + $0x400] sm:$0xff] %v2306
        %2323 = vst [vmem:[#allocation4 + $0x448] sm:$0xff] %v2307
        %s2324 = scalar_lea.vmem [#allocation3], 24
        %v2325 = vld [vmem:[%s2324] sm:$0xff]
        %v2326 = vld [vmem:[%s2324 + $0x8] sm:$0xff]
        %v2327 = vld [vmem:[%s2324 + $0x18] sm:$0xff]
        %v2328 = vld [vmem:[%s2324 + $0x20] sm:$0xff]
        %v2329 = vld [vmem:[%s2324 + $0x30] sm:$0xff]
        %v2330 = vld [vmem:[%s2324 + $0x38] sm:$0xff]
        %v2331 = vld [vmem:[%s2324 + $0x48] sm:$0xff]
        %v2332 = vld [vmem:[%s2324 + $0x50] sm:$0xff]
        %v2333 = vld [vmem:[%s2324 + $0x60] sm:$0xff]
        %v2334 = vld [vmem:[%s2324 + $0x68] sm:$0xff]
        %v2335 = vld [vmem:[%s2324 + $0x78] sm:$0xff]
        %v2336 = vld [vmem:[%s2324 + $0x80] sm:$0xff]
        %v2337 = vld [vmem:[%s2324 + $0x90] sm:$0xff]
        %v2338 = vld [vmem:[%s2324 + $0x98] sm:$0xff]
        %v2339 = vld [vmem:[%s2324 + $0xa8] sm:$0xff]
        %v2340 = vld [vmem:[%s2324 + $0xb0] sm:$0xff]
        %2341 = vst [vmem:[#allocation4 + $0x18] sm:$0xff] %v2325
        %2342 = vst [vmem:[#allocation4 + $0x60] sm:$0xff] %v2326
        %2343 = vst [vmem:[#allocation4 + $0xa8] sm:$0xff] %v2327
        %2344 = vst [vmem:[#allocation4 + $0xf0] sm:$0xff] %v2328
        %2345 = vst [vmem:[#allocation4 + $0x138] sm:$0xff] %v2329
        %2346 = vst [vmem:[#allocation4 + $0x180] sm:$0xff] %v2330
        %2347 = vst [vmem:[#allocation4 + $0x1c8] sm:$0xff] %v2331
        %2348 = vst [vmem:[#allocation4 + $0x210] sm:$0xff] %v2332
        %2349 = vst [vmem:[#allocation4 + $0x258] sm:$0xff] %v2333
        %2350 = vst [vmem:[#allocation4 + $0x2a0] sm:$0xff] %v2334
        %2351 = vst [vmem:[#allocation4 + $0x2e8] sm:$0xff] %v2335
        %2352 = vst [vmem:[#allocation4 + $0x330] sm:$0xff] %v2336
        %2353 = vst [vmem:[#allocation4 + $0x378] sm:$0xff] %v2337
        %2354 = vst [vmem:[#allocation4 + $0x3c0] sm:$0xff] %v2338
        %2355 = vst [vmem:[#allocation4 + $0x408] sm:$0xff] %v2339
        %2356 = vst [vmem:[#allocation4 + $0x450] sm:$0xff] %v2340
        %v2357 = vld [vmem:[%s2324 + $0x1] sm:$0xff]
        %v2358 = vld [vmem:[%s2324 + $0x9] sm:$0xff]
        %v2359 = vld [vmem:[%s2324 + $0x19] sm:$0xff]
        %v2360 = vld [vmem:[%s2324 + $0x21] sm:$0xff]
        %v2361 = vld [vmem:[%s2324 + $0x31] sm:$0xff]
        %v2362 = vld [vmem:[%s2324 + $0x39] sm:$0xff]
        %v2363 = vld [vmem:[%s2324 + $0x49] sm:$0xff]
        %v2364 = vld [vmem:[%s2324 + $0x51] sm:$0xff]
        %v2365 = vld [vmem:[%s2324 + $0x61] sm:$0xff]
        %v2366 = vld [vmem:[%s2324 + $0x69] sm:$0xff]
        %v2367 = vld [vmem:[%s2324 + $0x79] sm:$0xff]
        %v2368 = vld [vmem:[%s2324 + $0x81] sm:$0xff]
        %v2369 = vld [vmem:[%s2324 + $0x91] sm:$0xff]
        %v2370 = vld [vmem:[%s2324 + $0x99] sm:$0xff]
        %v2371 = vld [vmem:[%s2324 + $0xa9] sm:$0xff]
        %v2372 = vld [vmem:[%s2324 + $0xb1] sm:$0xff]
        %2373 = vst [vmem:[#allocation4 + $0x20] sm:$0xff] %v2357
        %2374 = vst [vmem:[#allocation4 + $0x68] sm:$0xff] %v2358
        %2375 = vst [vmem:[#allocation4 + $0xb0] sm:$0xff] %v2359
        %2376 = vst [vmem:[#allocation4 + $0xf8] sm:$0xff] %v2360
        %2377 = vst [vmem:[#allocation4 + $0x140] sm:$0xff] %v2361
        %2378 = vst [vmem:[#allocation4 + $0x188] sm:$0xff] %v2362
        %2379 = vst [vmem:[#allocation4 + $0x1d0] sm:$0xff] %v2363
        %2380 = vst [vmem:[#allocation4 + $0x218] sm:$0xff] %v2364
        %2381 = vst [vmem:[#allocation4 + $0x260] sm:$0xff] %v2365
        %2382 = vst [vmem:[#allocation4 + $0x2a8] sm:$0xff] %v2366
        %2383 = vst [vmem:[#allocation4 + $0x2f0] sm:$0xff] %v2367
        %2384 = vst [vmem:[#allocation4 + $0x338] sm:$0xff] %v2368
        %2385 = vst [vmem:[#allocation4 + $0x380] sm:$0xff] %v2369
        %2386 = vst [vmem:[#allocation4 + $0x3c8] sm:$0xff] %v2370
        %2387 = vst [vmem:[#allocation4 + $0x410] sm:$0xff] %v2371
        %2388 = vst [vmem:[#allocation4 + $0x458] sm:$0xff] %v2372
        %v2389 = vld [vmem:[%s2324 + $0x2] sm:$0xff]
        %v2390 = vld [vmem:[%s2324 + $0xa] sm:$0xff]
        %v2391 = vld [vmem:[%s2324 + $0x1a] sm:$0xff]
        %v2392 = vld [vmem:[%s2324 + $0x22] sm:$0xff]
        %v2393 = vld [vmem:[%s2324 + $0x32] sm:$0xff]
        %v2394 = vld [vmem:[%s2324 + $0x3a] sm:$0xff]
        %v2395 = vld [vmem:[%s2324 + $0x4a] sm:$0xff]
        %v2396 = vld [vmem:[%s2324 + $0x52] sm:$0xff]
        %v2397 = vld [vmem:[%s2324 + $0x62] sm:$0xff]
        %v2398 = vld [vmem:[%s2324 + $0x6a] sm:$0xff]
        %v2399 = vld [vmem:[%s2324 + $0x7a] sm:$0xff]
        %v2400 = vld [vmem:[%s2324 + $0x82] sm:$0xff]
        %v2401 = vld [vmem:[%s2324 + $0x92] sm:$0xff]
        %v2402 = vld [vmem:[%s2324 + $0x9a] sm:$0xff]
        %v2403 = vld [vmem:[%s2324 + $0xaa] sm:$0xff]
        %v2404 = vld [vmem:[%s2324 + $0xb2] sm:$0xff]
        %2405 = vst [vmem:[#allocation4 + $0x28] sm:$0xff] %v2389
        %2406 = vst [vmem:[#allocation4 + $0x70] sm:$0xff] %v2390
        %2407 = vst [vmem:[#allocation4 + $0xb8] sm:$0xff] %v2391
        %2408 = vst [vmem:[#allocation4 + $0x100] sm:$0xff] %v2392
        %2409 = vst [vmem:[#allocation4 + $0x148] sm:$0xff] %v2393
        %2410 = vst [vmem:[#allocation4 + $0x190] sm:$0xff] %v2394
        %2411 = vst [vmem:[#allocation4 + $0x1d8] sm:$0xff] %v2395
        %2412 = vst [vmem:[#allocation4 + $0x220] sm:$0xff] %v2396
        %2413 = vst [vmem:[#allocation4 + $0x268] sm:$0xff] %v2397
        %2414 = vst [vmem:[#allocation4 + $0x2b0] sm:$0xff] %v2398
        %2415 = vst [vmem:[#allocation4 + $0x2f8] sm:$0xff] %v2399
        %2416 = vst [vmem:[#allocation4 + $0x340] sm:$0xff] %v2400
        %2417 = vst [vmem:[#allocation4 + $0x388] sm:$0xff] %v2401
        %2418 = vst [vmem:[#allocation4 + $0x3d0] sm:$0xff] %v2402
        %2419 = vst [vmem:[#allocation4 + $0x418] sm:$0xff] %v2403
        %2420 = vst [vmem:[#allocation4 + $0x460] sm:$0xff] %v2404
        %s2421 = scalar_lea.vmem [#allocation3], 48
        %v2422 = vld [vmem:[%s2421] sm:$0xff]
        %v2423 = vld [vmem:[%s2421 + $0x8] sm:$0xff]
        %v2424 = vld [vmem:[%s2421 + $0x18] sm:$0xff]
        %v2425 = vld [vmem:[%s2421 + $0x20] sm:$0xff]
        %v2426 = vld [vmem:[%s2421 + $0x30] sm:$0xff]
        %v2427 = vld [vmem:[%s2421 + $0x38] sm:$0xff]
        %v2428 = vld [vmem:[%s2421 + $0x48] sm:$0xff]
        %v2429 = vld [vmem:[%s2421 + $0x50] sm:$0xff]
        %v2430 = vld [vmem:[%s2421 + $0x60] sm:$0xff]
        %v2431 = vld [vmem:[%s2421 + $0x68] sm:$0xff]
        %v2432 = vld [vmem:[%s2421 + $0x78] sm:$0xff]
        %v2433 = vld [vmem:[%s2421 + $0x80] sm:$0xff]
        %v2434 = vld [vmem:[%s2421 + $0x90] sm:$0xff]
        %v2435 = vld [vmem:[%s2421 + $0x98] sm:$0xff]
        %v2436 = vld [vmem:[%s2421 + $0xa8] sm:$0xff]
        %v2437 = vld [vmem:[%s2421 + $0xb0] sm:$0xff]
        %2438 = vst [vmem:[#allocation4 + $0x30] sm:$0xff] %v2422
        %2439 = vst [vmem:[#allocation4 + $0x78] sm:$0xff] %v2423
        %2440 = vst [vmem:[#allocation4 + $0xc0] sm:$0xff] %v2424
        %2441 = vst [vmem:[#allocation4 + $0x108] sm:$0xff] %v2425
        %2442 = vst [vmem:[#allocation4 + $0x150] sm:$0xff] %v2426
        %2443 = vst [vmem:[#allocation4 + $0x198] sm:$0xff] %v2427
        %2444 = vst [vmem:[#allocation4 + $0x1e0] sm:$0xff] %v2428
        %2445 = vst [vmem:[#allocation4 + $0x228] sm:$0xff] %v2429
        %2446 = vst [vmem:[#allocation4 + $0x270] sm:$0xff] %v2430
        %2447 = vst [vmem:[#allocation4 + $0x2b8] sm:$0xff] %v2431
        %2448 = vst [vmem:[#allocation4 + $0x300] sm:$0xff] %v2432
        %2449 = vst [vmem:[#allocation4 + $0x348] sm:$0xff] %v2433
        %2450 = vst [vmem:[#allocation4 + $0x390] sm:$0xff] %v2434
        %2451 = vst [vmem:[#allocation4 + $0x3d8] sm:$0xff] %v2435
        %2452 = vst [vmem:[#allocation4 + $0x420] sm:$0xff] %v2436
        %2453 = vst [vmem:[#allocation4 + $0x468] sm:$0xff] %v2437
        %v2454 = vld [vmem:[%s2421 + $0x1] sm:$0xff]
        %v2455 = vld [vmem:[%s2421 + $0x9] sm:$0xff]
        %v2456 = vld [vmem:[%s2421 + $0x19] sm:$0xff]
        %v2457 = vld [vmem:[%s2421 + $0x21] sm:$0xff]
        %v2458 = vld [vmem:[%s2421 + $0x31] sm:$0xff]
        %v2459 = vld [vmem:[%s2421 + $0x39] sm:$0xff]
        %v2460 = vld [vmem:[%s2421 + $0x49] sm:$0xff]
        %v2461 = vld [vmem:[%s2421 + $0x51] sm:$0xff]
        %v2462 = vld [vmem:[%s2421 + $0x61] sm:$0xff]
        %v2463 = vld [vmem:[%s2421 + $0x69] sm:$0xff]
        %v2464 = vld [vmem:[%s2421 + $0x79] sm:$0xff]
        %v2465 = vld [vmem:[%s2421 + $0x81] sm:$0xff]
        %v2466 = vld [vmem:[%s2421 + $0x91] sm:$0xff]
        %v2467 = vld [vmem:[%s2421 + $0x99] sm:$0xff]
        %v2468 = vld [vmem:[%s2421 + $0xa9] sm:$0xff]
        %v2469 = vld [vmem:[%s2421 + $0xb1] sm:$0xff]
        %2470 = vst [vmem:[#allocation4 + $0x38] sm:$0xff] %v2454
        %2471 = vst [vmem:[#allocation4 + $0x80] sm:$0xff] %v2455
        %2472 = vst [vmem:[#allocation4 + $0xc8] sm:$0xff] %v2456
        %2473 = vst [vmem:[#allocation4 + $0x110] sm:$0xff] %v2457
        %2474 = vst [vmem:[#allocation4 + $0x158] sm:$0xff] %v2458
        %2475 = vst [vmem:[#allocation4 + $0x1a0] sm:$0xff] %v2459
        %2476 = vst [vmem:[#allocation4 + $0x1e8] sm:$0xff] %v2460
        %2477 = vst [vmem:[#allocation4 + $0x230] sm:$0xff] %v2461
        %2478 = vst [vmem:[#allocation4 + $0x278] sm:$0xff] %v2462
        %2479 = vst [vmem:[#allocation4 + $0x2c0] sm:$0xff] %v2463
        %2480 = vst [vmem:[#allocation4 + $0x308] sm:$0xff] %v2464
        %2481 = vst [vmem:[#allocation4 + $0x350] sm:$0xff] %v2465
        %2482 = vst [vmem:[#allocation4 + $0x398] sm:$0xff] %v2466
        %2483 = vst [vmem:[#allocation4 + $0x3e0] sm:$0xff] %v2467
        %2484 = vst [vmem:[#allocation4 + $0x428] sm:$0xff] %v2468
        %2485 = vst [vmem:[#allocation4 + $0x470] sm:$0xff] %v2469
        %v2486 = vld [vmem:[%s2421 + $0x2] sm:$0xff]
        %v2487 = vld [vmem:[%s2421 + $0xa] sm:$0xff]
        %v2488 = vld [vmem:[%s2421 + $0x1a] sm:$0xff]
        %v2489 = vld [vmem:[%s2421 + $0x22] sm:$0xff]
        %v2490 = vld [vmem:[%s2421 + $0x32] sm:$0xff]
        %v2491 = vld [vmem:[%s2421 + $0x3a] sm:$0xff]
        %v2492 = vld [vmem:[%s2421 + $0x4a] sm:$0xff]
        %v2493 = vld [vmem:[%s2421 + $0x52] sm:$0xff]
        %v2494 = vld [vmem:[%s2421 + $0x62] sm:$0xff]
        %v2495 = vld [vmem:[%s2421 + $0x6a] sm:$0xff]
        %v2496 = vld [vmem:[%s2421 + $0x7a] sm:$0xff]
        %v2497 = vld [vmem:[%s2421 + $0x82] sm:$0xff]
        %v2498 = vld [vmem:[%s2421 + $0x92] sm:$0xff]
        %v2499 = vld [vmem:[%s2421 + $0x9a] sm:$0xff]
        %v2500 = vld [vmem:[%s2421 + $0xaa] sm:$0xff]
        %v2501 = vld [vmem:[%s2421 + $0xb2] sm:$0xff]
        %2502 = vst [vmem:[#allocation4 + $0x40] sm:$0xff] %v2486
        %2503 = vst [vmem:[#allocation4 + $0x88] sm:$0xff] %v2487
        %2504 = vst [vmem:[#allocation4 + $0xd0] sm:$0xff] %v2488
        %2505 = vst [vmem:[#allocation4 + $0x118] sm:$0xff] %v2489
        %2506 = vst [vmem:[#allocation4 + $0x160] sm:$0xff] %v2490
        %2507 = vst [vmem:[#allocation4 + $0x1a8] sm:$0xff] %v2491
        %2508 = vst [vmem:[#allocation4 + $0x1f0] sm:$0xff] %v2492
        %2509 = vst [vmem:[#allocation4 + $0x238] sm:$0xff] %v2493
        %2510 = vst [vmem:[#allocation4 + $0x280] sm:$0xff] %v2494
        %2511 = vst [vmem:[#allocation4 + $0x2c8] sm:$0xff] %v2495
        %2512 = vst [vmem:[#allocation4 + $0x310] sm:$0xff] %v2496
        %2513 = vst [vmem:[#allocation4 + $0x358] sm:$0xff] %v2497
        %2514 = vst [vmem:[#allocation4 + $0x3a0] sm:$0xff] %v2498
        %2515 = vst [vmem:[#allocation4 + $0x3e8] sm:$0xff] %v2499
        %2516 = vst [vmem:[#allocation4 + $0x430] sm:$0xff] %v2500
        %2517 = vst [vmem:[#allocation4 + $0x478] sm:$0xff] %v2501
        %v2518 = vld [vmem:[#allocation4] sm:$0xff]
        %v2519 = vld [vmem:[#allocation4 + $0x8] sm:$0xff]
        %v2520 = vld [vmem:[#allocation4 + $0x10] sm:$0xff]
        %v2521 = vld [vmem:[#allocation4 + $0x18] sm:$0xff]
        %v2522 = vld [vmem:[#allocation4 + $0x20] sm:$0xff]
        %v2523 = vld [vmem:[#allocation4 + $0x28] sm:$0xff]
        %v2524 = vld [vmem:[#allocation4 + $0x30] sm:$0xff]
        %v2525 = vld [vmem:[#allocation4 + $0x38] sm:$0xff]
        %v2526 = vld [vmem:[#allocation4 + $0x40] sm:$0xff]
        %v2527 = vld [vmem:[#allocation4 + $0x48] sm:$0xff]
        %v2528 = vld [vmem:[#allocation4 + $0x50] sm:$0xff]
        %v2529 = vld [vmem:[#allocation4 + $0x58] sm:$0xff]
        %v2530 = vld [vmem:[#allocation4 + $0x60] sm:$0xff]
        %v2531 = vld [vmem:[#allocation4 + $0x68] sm:$0xff]
        %v2532 = vld [vmem:[#allocation4 + $0x70] sm:$0xff]
        %v2533 = vld [vmem:[#allocation4 + $0x78] sm:$0xff]
        %v2534 = vld [vmem:[#allocation4 + $0x80] sm:$0xff]
        %v2535 = vld [vmem:[#allocation4 + $0x88] sm:$0xff]
        %v2536 = vld [vmem:[#allocation4 + $0x90] sm:$0xff]
        %v2537 = vld [vmem:[#allocation4 + $0x98] sm:$0xff]
        %v2538 = vld [vmem:[#allocation4 + $0xa0] sm:$0xff]
        %v2539 = vld [vmem:[#allocation4 + $0xa8] sm:$0xff]
        %v2540 = vld [vmem:[#allocation4 + $0xb0] sm:$0xff]
        %v2541 = vld [vmem:[#allocation4 + $0xb8] sm:$0xff]
        %v2542 = vld [vmem:[#allocation4 + $0xc0] sm:$0xff]
        %v2543 = vld [vmem:[#allocation4 + $0xc8] sm:$0xff]
        %v2544 = vld [vmem:[#allocation4 + $0xd0] sm:$0xff]
        %v2545 = vld [vmem:[#allocation4 + $0xd8] sm:$0xff]
        %v2546 = vld [vmem:[#allocation4 + $0xe0] sm:$0xff]
        %v2547 = vld [vmem:[#allocation4 + $0xe8] sm:$0xff]
        %v2548 = vld [vmem:[#allocation4 + $0xf0] sm:$0xff]
        %v2549 = vld [vmem:[#allocation4 + $0xf8] sm:$0xff]
        %v2550 = vld [vmem:[#allocation4 + $0x100] sm:$0xff]
        %v2551 = vld [vmem:[#allocation4 + $0x108] sm:$0xff]
        %v2552 = vld [vmem:[#allocation4 + $0x110] sm:$0xff]
        %v2553 = vld [vmem:[#allocation4 + $0x118] sm:$0xff]
        %v2554 = vld [vmem:[#allocation4 + $0x120] sm:$0xff]
        %v2555 = vld [vmem:[#allocation4 + $0x128] sm:$0xff]
        %v2556 = vld [vmem:[#allocation4 + $0x130] sm:$0xff]
        %v2557 = vld [vmem:[#allocation4 + $0x138] sm:$0xff]
        %v2558 = vld [vmem:[#allocation4 + $0x140] sm:$0xff]
        %v2559 = vld [vmem:[#allocation4 + $0x148] sm:$0xff]
        %v2560 = vld [vmem:[#allocation4 + $0x150] sm:$0xff]
        %v2561 = vld [vmem:[#allocation4 + $0x158] sm:$0xff]
        %v2562 = vld [vmem:[#allocation4 + $0x160] sm:$0xff]
        %v2563 = vld [vmem:[#allocation4 + $0x168] sm:$0xff]
        %v2564 = vld [vmem:[#allocation4 + $0x170] sm:$0xff]
        %v2565 = vld [vmem:[#allocation4 + $0x178] sm:$0xff]
        %v2566 = vld [vmem:[#allocation4 + $0x180] sm:$0xff]
        %v2567 = vld [vmem:[#allocation4 + $0x188] sm:$0xff]
        %v2568 = vld [vmem:[#allocation4 + $0x190] sm:$0xff]
        %v2569 = vld [vmem:[#allocation4 + $0x198] sm:$0xff]
        %v2570 = vld [vmem:[#allocation4 + $0x1a0] sm:$0xff]
        %v2571 = vld [vmem:[#allocation4 + $0x1a8] sm:$0xff]
        %v2572 = vld [vmem:[#allocation4 + $0x1b0] sm:$0xff]
        %v2573 = vld [vmem:[#allocation4 + $0x1b8] sm:$0xff]
        %v2574 = vld [vmem:[#allocation4 + $0x1c0] sm:$0xff]
        %v2575 = vld [vmem:[#allocation4 + $0x1c8] sm:$0xff]
        %v2576 = vld [vmem:[#allocation4 + $0x1d0] sm:$0xff]
        %v2577 = vld [vmem:[#allocation4 + $0x1d8] sm:$0xff]
        %v2578 = vld [vmem:[#allocation4 + $0x1e0] sm:$0xff]
        %v2579 = vld [vmem:[#allocation4 + $0x1e8] sm:$0xff]
        %v2580 = vld [vmem:[#allocation4 + $0x1f0] sm:$0xff]
        %v2581 = vld [vmem:[#allocation4 + $0x1f8] sm:$0xff]
        %v2582 = vld [vmem:[#allocation4 + $0x200] sm:$0xff]
        %v2583 = vld [vmem:[#allocation4 + $0x208] sm:$0xff]
        %v2584 = vld [vmem:[#allocation4 + $0x210] sm:$0xff]
        %v2585 = vld [vmem:[#allocation4 + $0x218] sm:$0xff]
        %v2586 = vld [vmem:[#allocation4 + $0x220] sm:$0xff]
        %v2587 = vld [vmem:[#allocation4 + $0x228] sm:$0xff]
        %v2588 = vld [vmem:[#allocation4 + $0x230] sm:$0xff]
        %v2589 = vld [vmem:[#allocation4 + $0x238] sm:$0xff]
        %v2590 = vld [vmem:[#allocation4 + $0x240] sm:$0xff]
        %v2591 = vld [vmem:[#allocation4 + $0x248] sm:$0xff]
        %v2592 = vld [vmem:[#allocation4 + $0x250] sm:$0xff]
        %v2593 = vld [vmem:[#allocation4 + $0x258] sm:$0xff]
        %v2594 = vld [vmem:[#allocation4 + $0x260] sm:$0xff]
        %v2595 = vld [vmem:[#allocation4 + $0x268] sm:$0xff]
        %v2596 = vld [vmem:[#allocation4 + $0x270] sm:$0xff]
        %v2597 = vld [vmem:[#allocation4 + $0x278] sm:$0xff]
        %v2598 = vld [vmem:[#allocation4 + $0x280] sm:$0xff]
        %v2599 = vld [vmem:[#allocation4 + $0x288] sm:$0xff]
        %v2600 = vld [vmem:[#allocation4 + $0x290] sm:$0xff]
        %v2601 = vld [vmem:[#allocation4 + $0x298] sm:$0xff]
        %v2602 = vld [vmem:[#allocation4 + $0x2a0] sm:$0xff]
        %v2603 = vld [vmem:[#allocation4 + $0x2a8] sm:$0xff]
        %v2604 = vld [vmem:[#allocation4 + $0x2b0] sm:$0xff]
        %v2605 = vld [vmem:[#allocation4 + $0x2b8] sm:$0xff]
        %v2606 = vld [vmem:[#allocation4 + $0x2c0] sm:$0xff]
        %v2607 = vld [vmem:[#allocation4 + $0x2c8] sm:$0xff]
        %v2608 = vld [vmem:[#allocation4 + $0x2d0] sm:$0xff]
        %v2609 = vld [vmem:[#allocation4 + $0x2d8] sm:$0xff]
        %v2610 = vld [vmem:[#allocation4 + $0x2e0] sm:$0xff]
        %v2611 = vld [vmem:[#allocation4 + $0x2e8] sm:$0xff]
        %v2612 = vld [vmem:[#allocation4 + $0x2f0] sm:$0xff]
        %v2613 = vld [vmem:[#allocation4 + $0x2f8] sm:$0xff]
        %v2614 = vld [vmem:[#allocation4 + $0x300] sm:$0xff]
        %v2615 = vld [vmem:[#allocation4 + $0x308] sm:$0xff]
        %v2616 = vld [vmem:[#allocation4 + $0x310] sm:$0xff]
        %v2617 = vld [vmem:[#allocation4 + $0x318] sm:$0xff]
        %v2618 = vld [vmem:[#allocation4 + $0x320] sm:$0xff]
        %v2619 = vld [vmem:[#allocation4 + $0x328] sm:$0xff]
        %v2620 = vld [vmem:[#allocation4 + $0x330] sm:$0xff]
        %v2621 = vld [vmem:[#allocation4 + $0x338] sm:$0xff]
        %v2622 = vld [vmem:[#allocation4 + $0x340] sm:$0xff]
        %v2623 = vld [vmem:[#allocation4 + $0x348] sm:$0xff]
        %v2624 = vld [vmem:[#allocation4 + $0x350] sm:$0xff]
        %v2625 = vld [vmem:[#allocation4 + $0x358] sm:$0xff]
        %v2626 = vld [vmem:[#allocation4 + $0x360] sm:$0xff]
        %v2627 = vld [vmem:[#allocation4 + $0x368] sm:$0xff]
        %v2628 = vld [vmem:[#allocation4 + $0x370] sm:$0xff]
        %v2629 = vld [vmem:[#allocation4 + $0x378] sm:$0xff]
        %v2630 = vld [vmem:[#allocation4 + $0x380] sm:$0xff]
        %v2631 = vld [vmem:[#allocation4 + $0x388] sm:$0xff]
        %v2632 = vld [vmem:[#allocation4 + $0x390] sm:$0xff]
        %v2633 = vld [vmem:[#allocation4 + $0x398] sm:$0xff]
        %v2634 = vld [vmem:[#allocation4 + $0x3a0] sm:$0xff]
        %v2635 = vld [vmem:[#allocation4 + $0x3a8] sm:$0xff]
        %v2636 = vld [vmem:[#allocation4 + $0x3b0] sm:$0xff]
        %v2637 = vld [vmem:[#allocation4 + $0x3b8] sm:$0xff]
        %v2638 = vld [vmem:[#allocation4 + $0x3c0] sm:$0xff]
        %v2639 = vld [vmem:[#allocation4 + $0x3c8] sm:$0xff]
        %v2640 = vld [vmem:[#allocation4 + $0x3d0] sm:$0xff]
        %v2641 = vld [vmem:[#allocation4 + $0x3d8] sm:$0xff]
        %v2642 = vld [vmem:[#allocation4 + $0x3e0] sm:$0xff]
        %v2643 = vld [vmem:[#allocation4 + $0x3e8] sm:$0xff]
        %v2644 = vld [vmem:[#allocation4 + $0x3f0] sm:$0xff]
        %v2645 = vld [vmem:[#allocation4 + $0x3f8] sm:$0xff]
        %v2646 = vld [vmem:[#allocation4 + $0x400] sm:$0xff]
        %v2647 = vld [vmem:[#allocation4 + $0x408] sm:$0xff]
        %v2648 = vld [vmem:[#allocation4 + $0x410] sm:$0xff]
        %v2649 = vld [vmem:[#allocation4 + $0x418] sm:$0xff]
        %v2650 = vld [vmem:[#allocation4 + $0x420] sm:$0xff]
        %v2651 = vld [vmem:[#allocation4 + $0x428] sm:$0xff]
        %v2652 = vld [vmem:[#allocation4 + $0x430] sm:$0xff]
        %v2653 = vld [vmem:[#allocation4 + $0x438] sm:$0xff]
        %v2654 = vld [vmem:[#allocation4 + $0x440] sm:$0xff]
        %v2655 = vld [vmem:[#allocation4 + $0x448] sm:$0xff]
        %v2656 = vld [vmem:[#allocation4 + $0x450] sm:$0xff]
        %v2657 = vld [vmem:[#allocation4 + $0x458] sm:$0xff]
        %v2658 = vld [vmem:[#allocation4 + $0x460] sm:$0xff]
        %v2659 = vld [vmem:[#allocation4 + $0x468] sm:$0xff]
        %v2660 = vld [vmem:[#allocation4 + $0x470] sm:$0xff]
        %v2661 = vld [vmem:[#allocation4 + $0x478] sm:$0xff]
        %v2662 = vld [vmem:[#allocation12] sm:$0xff]
        %v2663 = vld [vmem:[#allocation12 + $0x8] sm:$0xff]
        %v2664 = vld [vmem:[#allocation12 + $0x10] sm:$0xff]
        %v2665 = vld [vmem:[#allocation12 + $0x18] sm:$0xff]
        %v2666 = vld [vmem:[#allocation12 + $0x20] sm:$0xff]
        %v2667 = vld [vmem:[#allocation12 + $0x28] sm:$0xff]
        %v2668 = vld [vmem:[#allocation12 + $0x30] sm:$0xff]
        %v2669 = vld [vmem:[#allocation12 + $0x38] sm:$0xff]
        %v2670 = vld [vmem:[#allocation12 + $0x40] sm:$0xff]
        %v2671 = vld [vmem:[#allocation12 + $0x48] sm:$0xff]
        %v2672 = vld [vmem:[#allocation12 + $0x50] sm:$0xff]
        %v2673 = vld [vmem:[#allocation12 + $0x58] sm:$0xff]
        %v2674 = vld [vmem:[#allocation12 + $0x60] sm:$0xff]
        %v2675 = vld [vmem:[#allocation12 + $0x68] sm:$0xff]
        %v2676 = vld [vmem:[#allocation12 + $0x70] sm:$0xff]
        %v2677 = vld [vmem:[#allocation12 + $0x78] sm:$0xff]
        %v2678 = vld [vmem:[#allocation12 + $0x80] sm:$0xff]
        %v2679 = vld [vmem:[#allocation12 + $0x88] sm:$0xff]
        %v2680 = vld [vmem:[#allocation12 + $0x90] sm:$0xff]
        %v2681 = vld [vmem:[#allocation12 + $0x98] sm:$0xff]
        %v2682 = vld [vmem:[#allocation12 + $0xa0] sm:$0xff]
        %v2683 = vld [vmem:[#allocation12 + $0xa8] sm:$0xff]
        %v2684 = vld [vmem:[#allocation12 + $0xb0] sm:$0xff]
        %v2685 = vld [vmem:[#allocation12 + $0xb8] sm:$0xff]
        %v2686 = vld [vmem:[#allocation12 + $0xc0] sm:$0xff]
        %v2687 = vld [vmem:[#allocation12 + $0xc8] sm:$0xff]
        %v2688 = vld [vmem:[#allocation12 + $0xd0] sm:$0xff]
        %v2689 = vld [vmem:[#allocation12 + $0xd8] sm:$0xff]
        %v2690 = vld [vmem:[#allocation12 + $0xe0] sm:$0xff]
        %v2691 = vld [vmem:[#allocation12 + $0xe8] sm:$0xff]
        %v2692 = vld [vmem:[#allocation12 + $0xf0] sm:$0xff]
        %v2693 = vld [vmem:[#allocation12 + $0xf8] sm:$0xff]
        %v2694 = vld [vmem:[#allocation12 + $0x100] sm:$0xff]
        %v2695 = vld [vmem:[#allocation12 + $0x108] sm:$0xff]
        %v2696 = vld [vmem:[#allocation12 + $0x110] sm:$0xff]
        %v2697 = vld [vmem:[#allocation12 + $0x118] sm:$0xff]
        %v2698 = vld [vmem:[#allocation12 + $0x120] sm:$0xff]
        %v2699 = vld [vmem:[#allocation12 + $0x128] sm:$0xff]
        %v2700 = vld [vmem:[#allocation12 + $0x130] sm:$0xff]
        %v2701 = vld [vmem:[#allocation12 + $0x138] sm:$0xff]
        %v2702 = vld [vmem:[#allocation12 + $0x140] sm:$0xff]
        %v2703 = vld [vmem:[#allocation12 + $0x148] sm:$0xff]
        %v2704 = vld [vmem:[#allocation12 + $0x150] sm:$0xff]
        %v2705 = vld [vmem:[#allocation12 + $0x158] sm:$0xff]
        %v2706 = vld [vmem:[#allocation12 + $0x160] sm:$0xff]
        %v2707 = vld [vmem:[#allocation12 + $0x168] sm:$0xff]
        %v2708 = vld [vmem:[#allocation12 + $0x170] sm:$0xff]
        %v2709 = vld [vmem:[#allocation12 + $0x178] sm:$0xff]
        %v2710 = vld [vmem:[#allocation12 + $0x180] sm:$0xff]
        %v2711 = vld [vmem:[#allocation12 + $0x188] sm:$0xff]
        %v2712 = vld [vmem:[#allocation12 + $0x190] sm:$0xff]
        %v2713 = vld [vmem:[#allocation12 + $0x198] sm:$0xff]
        %v2714 = vld [vmem:[#allocation12 + $0x1a0] sm:$0xff]
        %v2715 = vld [vmem:[#allocation12 + $0x1a8] sm:$0xff]
        %v2716 = vld [vmem:[#allocation12 + $0x1b0] sm:$0xff]
        %v2717 = vld [vmem:[#allocation12 + $0x1b8] sm:$0xff]
        %v2718 = vld [vmem:[#allocation12 + $0x1c0] sm:$0xff]
        %v2719 = vld [vmem:[#allocation12 + $0x1c8] sm:$0xff]
        %v2720 = vld [vmem:[#allocation12 + $0x1d0] sm:$0xff]
        %v2721 = vld [vmem:[#allocation12 + $0x1d8] sm:$0xff]
        %v2722 = vld [vmem:[#allocation12 + $0x1e0] sm:$0xff]
        %v2723 = vld [vmem:[#allocation12 + $0x1e8] sm:$0xff]
        %v2724 = vld [vmem:[#allocation12 + $0x1f0] sm:$0xff]
        %v2725 = vld [vmem:[#allocation12 + $0x1f8] sm:$0xff]
        %v2726 = vld [vmem:[#allocation12 + $0x200] sm:$0xff]
        %v2727 = vld [vmem:[#allocation12 + $0x208] sm:$0xff]
        %v2728 = vld [vmem:[#allocation12 + $0x210] sm:$0xff]
        %v2729 = vld [vmem:[#allocation12 + $0x218] sm:$0xff]
        %v2730 = vld [vmem:[#allocation12 + $0x220] sm:$0xff]
        %v2731 = vld [vmem:[#allocation12 + $0x228] sm:$0xff]
        %v2732 = vld [vmem:[#allocation12 + $0x230] sm:$0xff]
        %v2733 = vld [vmem:[#allocation12 + $0x238] sm:$0xff]
        %v2734 = vld [vmem:[#allocation12 + $0x240] sm:$0xff]
        %v2735 = vld [vmem:[#allocation12 + $0x248] sm:$0xff]
        %v2736 = vld [vmem:[#allocation12 + $0x250] sm:$0xff]
        %v2737 = vld [vmem:[#allocation12 + $0x258] sm:$0xff]
        %v2738 = vld [vmem:[#allocation12 + $0x260] sm:$0xff]
        %v2739 = vld [vmem:[#allocation12 + $0x268] sm:$0xff]
        %v2740 = vld [vmem:[#allocation12 + $0x270] sm:$0xff]
        %v2741 = vld [vmem:[#allocation12 + $0x278] sm:$0xff]
        %v2742 = vld [vmem:[#allocation12 + $0x280] sm:$0xff]
        %v2743 = vld [vmem:[#allocation12 + $0x288] sm:$0xff]
        %v2744 = vld [vmem:[#allocation12 + $0x290] sm:$0xff]
        %v2745 = vld [vmem:[#allocation12 + $0x298] sm:$0xff]
        %v2746 = vld [vmem:[#allocation12 + $0x2a0] sm:$0xff]
        %v2747 = vld [vmem:[#allocation12 + $0x2a8] sm:$0xff]
        %v2748 = vld [vmem:[#allocation12 + $0x2b0] sm:$0xff]
        %v2749 = vld [vmem:[#allocation12 + $0x2b8] sm:$0xff]
        %v2750 = vld [vmem:[#allocation12 + $0x2c0] sm:$0xff]
        %v2751 = vld [vmem:[#allocation12 + $0x2c8] sm:$0xff]
        %v2752 = vld [vmem:[#allocation12 + $0x2d0] sm:$0xff]
        %v2753 = vld [vmem:[#allocation12 + $0x2d8] sm:$0xff]
        %v2754 = vld [vmem:[#allocation12 + $0x2e0] sm:$0xff]
        %v2755 = vld [vmem:[#allocation12 + $0x2e8] sm:$0xff]
        %v2756 = vld [vmem:[#allocation12 + $0x2f0] sm:$0xff]
        %v2757 = vld [vmem:[#allocation12 + $0x2f8] sm:$0xff]
        %v2758 = vld [vmem:[#allocation12 + $0x300] sm:$0xff]
        %v2759 = vld [vmem:[#allocation12 + $0x308] sm:$0xff]
        %v2760 = vld [vmem:[#allocation12 + $0x310] sm:$0xff]
        %v2761 = vld [vmem:[#allocation12 + $0x318] sm:$0xff]
        %v2762 = vld [vmem:[#allocation12 + $0x320] sm:$0xff]
        %v2763 = vld [vmem:[#allocation12 + $0x328] sm:$0xff]
        %v2764 = vld [vmem:[#allocation12 + $0x330] sm:$0xff]
        %v2765 = vld [vmem:[#allocation12 + $0x338] sm:$0xff]
        %v2766 = vld [vmem:[#allocation12 + $0x340] sm:$0xff]
        %v2767 = vld [vmem:[#allocation12 + $0x348] sm:$0xff]
        %v2768 = vld [vmem:[#allocation12 + $0x350] sm:$0xff]
        %v2769 = vld [vmem:[#allocation12 + $0x358] sm:$0xff]
        %v2770 = vld [vmem:[#allocation12 + $0x360] sm:$0xff]
        %v2771 = vld [vmem:[#allocation12 + $0x368] sm:$0xff]
        %v2772 = vld [vmem:[#allocation12 + $0x370] sm:$0xff]
        %v2773 = vld [vmem:[#allocation12 + $0x378] sm:$0xff]
        %v2774 = vld [vmem:[#allocation12 + $0x380] sm:$0xff]
        %v2775 = vld [vmem:[#allocation12 + $0x388] sm:$0xff]
        %v2776 = vld [vmem:[#allocation12 + $0x390] sm:$0xff]
        %v2777 = vld [vmem:[#allocation12 + $0x398] sm:$0xff]
        %v2778 = vld [vmem:[#allocation12 + $0x3a0] sm:$0xff]
        %v2779 = vld [vmem:[#allocation12 + $0x3a8] sm:$0xff]
        %v2780 = vld [vmem:[#allocation12 + $0x3b0] sm:$0xff]
        %v2781 = vld [vmem:[#allocation12 + $0x3b8] sm:$0xff]
        %v2782 = vld [vmem:[#allocation12 + $0x3c0] sm:$0xff]
        %v2783 = vld [vmem:[#allocation12 + $0x3c8] sm:$0xff]
        %v2784 = vld [vmem:[#allocation12 + $0x3d0] sm:$0xff]
        %v2785 = vld [vmem:[#allocation12 + $0x3d8] sm:$0xff]
        %v2786 = vld [vmem:[#allocation12 + $0x3e0] sm:$0xff]
        %v2787 = vld [vmem:[#allocation12 + $0x3e8] sm:$0xff]
        %v2788 = vld [vmem:[#allocation12 + $0x3f0] sm:$0xff]
        %v2789 = vld [vmem:[#allocation12 + $0x3f8] sm:$0xff]
        %v2790 = vld [vmem:[#allocation12 + $0x400] sm:$0xff]
        %v2791 = vld [vmem:[#allocation12 + $0x408] sm:$0xff]
        %v2792 = vld [vmem:[#allocation12 + $0x410] sm:$0xff]
        %v2793 = vld [vmem:[#allocation12 + $0x418] sm:$0xff]
        %v2794 = vld [vmem:[#allocation12 + $0x420] sm:$0xff]
        %v2795 = vld [vmem:[#allocation12 + $0x428] sm:$0xff]
        %v2796 = vld [vmem:[#allocation12 + $0x430] sm:$0xff]
        %v2797 = vld [vmem:[#allocation12 + $0x438] sm:$0xff]
        %v2798 = vld [vmem:[#allocation12 + $0x440] sm:$0xff]
        %v2799 = vld [vmem:[#allocation12 + $0x448] sm:$0xff]
        %v2800 = vld [vmem:[#allocation12 + $0x450] sm:$0xff]
        %v2801 = vld [vmem:[#allocation12 + $0x458] sm:$0xff]
        %v2802 = vld [vmem:[#allocation12 + $0x460] sm:$0xff]
        %v2803 = vld [vmem:[#allocation12 + $0x468] sm:$0xff]
        %v2804 = vld [vmem:[#allocation12 + $0x470] sm:$0xff]
        %v2805 = vld [vmem:[#allocation12 + $0x478] sm:$0xff]
        %2806 = vmatprep.subr.mxu0 0.0
        %2807 = vmatpush1.msra.mxu0 %v2662
        %2808 = vmatprep.subr.mxu0 0.0
        %2809 = vmatpush1.msra.mxu0 %v2663
        %2810 = vmatprep.subr.mxu0 0.0
        %2811 = vmatpush1.msra.mxu0 %v2664
        %2812 = vmatprep.subr.mxu0 0.0
        %2813 = vmatpush1.msra.mxu0 %v2665
        %2814 = vmatprep.subr.mxu0 0.0
        %2815 = vmatpush1.msra.mxu0 %v2666
        %2816 = vmatprep.subr.mxu0 0.0
        %2817 = vmatpush1.msra.mxu0 %v2667
        %2818 = vmatprep.subr.mxu0 0.0
        %2819 = vmatpush1.msra.mxu0 %v2668
        %2820 = vmatprep.subr.mxu0 0.0
        %2821 = vmatpush1.msra.mxu0 %v2669
        %2822 = vmatprep.subr.mxu0 0.0
        %2823 = vmatpush1.msra.mxu0 %v2670
        %2824 = vmatprep.subr.mxu0 0.0
        %2825 = vmatpush1.msra.mxu0 %v2671
        %2826 = vmatprep.subr.mxu0 0.0
        %2827 = vmatpush1.msra.mxu0 %v2672
        %2828 = vmatprep.subr.mxu0 0.0
        %2829 = vmatpush1.msra.mxu0 %v2673
        %2830 = vmatprep.subr.mxu0 0.0
        %2831 = vmatpush1.msra.mxu0 %v2674
        %2832 = vmatprep.subr.mxu0 0.0
        %2833 = vmatpush1.msra.mxu0 %v2675
        %2834 = vmatprep.subr.mxu0 0.0
        %2835 = vmatpush1.msra.mxu0 %v2676
        %2836 = vmatprep.subr.mxu0 0.0
        %2837 = vmatpush1.msra.mxu0 %v2677
        %2838 = vmatprep.subr.mxu0 0.0
        %2839 = vmatpush1.msra.mxu0 %v2678
        %2840 = vmatprep.subr.mxu0 0.0
        %2841 = vmatpush1.msra.mxu0 %v2679
        %2842 = vmatprep.subr.mxu0 0.0
        %2843 = vmatpush1.msra.mxu0 %v2680
        %2844 = vmatprep.subr.mxu0 0.0
        %2845 = vmatpush1.msra.mxu0 %v2681
        %2846 = vmatprep.subr.mxu0 0.0
        %2847 = vmatpush1.msra.mxu0 %v2682
        %2848 = vmatprep.subr.mxu0 0.0
        %2849 = vmatpush1.msra.mxu0 %v2683
        %2850 = vmatprep.subr.mxu0 0.0
        %2851 = vmatpush1.msra.mxu0 %v2684
        %2852 = vmatprep.subr.mxu0 0.0
        %2853 = vmatpush1.msra.mxu0 %v2685
        %2854 = vmatprep.subr.mxu0 0.0
        %2855 = vmatpush1.msra.mxu0 %v2686
        %2856 = vmatprep.subr.mxu0 0.0
        %2857 = vmatpush1.msra.mxu0 %v2687
        %2858 = vmatprep.subr.mxu0 0.0
        %2859 = vmatpush1.msra.mxu0 %v2688
        %2860 = vmatprep.subr.mxu0 0.0
        %2861 = vmatpush1.msra.mxu0 %v2689
        %2862 = vmatprep.subr.mxu0 0.0
        %2863 = vmatpush1.msra.mxu0 %v2690
        %2864 = vmatprep.subr.mxu0 0.0
        %2865 = vmatpush1.msra.mxu0 %v2691
        %2866 = vmatprep.subr.mxu0 0.0
        %2867 = vmatpush1.msra.mxu0 %v2692
        %2868 = vmatprep.subr.mxu0 0.0
        %2869 = vmatpush1.msra.mxu0 %v2693
        %2870 = vmatprep.mubr.f32.mxu0 %v2519
        %2871 = vmatmul.mubr.f32.gmra.mrb[0].mxu0 %v2518
        %v2872 = vpop.f32.mrb[0].mxu0
        %v2873 = vadd.f32 0.0, %v2872
        %v2874 = vpop.f32.mrb[0].mxu0
        %2875 = vmatprep.mubr.f32.mxu0 %v2528
        %2876 = vmatmul.mubr.f32.gmra.mrb[0].mxu0 %v2527
        %v2877 = vpop.f32.mrb[0].mxu0
        %v2878 = vadd.f32 0.0, %v2877
        %v2879 = vpop.f32.mrb[0].mxu0
        %2880 = vmatprep.mubr.f32.mxu0 %v2537
        %2881 = vmatmul.mubr.f32.gmra.mrb[0].mxu0 %v2536
        %v2882 = vpop.f32.mrb[0].mxu0
        %v2883 = vadd.f32 0.0, %v2882
        %v2884 = vpop.f32.mrb[0].mxu0
        %2885 = vmatprep.mubr.f32.mxu0 %v2546
        %2886 = vmatmul.mubr.f32.gmra.mrb[0].mxu0 %v2545
        %v2887 = vpop.f32.mrb[0].mxu0
        %v2888 = vadd.f32 0.0, %v2887
        %v2889 = vpop.f32.mrb[0].mxu0
        %2890 = vmatprep.mubr.f32.mxu0 %v2555
        %2891 = vmatmul.mubr.f32.gmra.mrb[0].mxu0 %v2554
        %v2892 = vpop.f32.mrb[0].mxu0
        %v2893 = vadd.f32 0.0, %v2892
        %v2894 = vpop.f32.mrb[0].mxu0
        %2895 = vmatprep.mubr.f32.mxu0 %v2564
        %2896 = vmatmul.mubr.f32.gmra.mrb[0].mxu0 %v2563
        %v2897 = vpop.f32.mrb[0].mxu0
        %v2898 = vadd.f32 0.0, %v2897
        %v2899 = vpop.f32.mrb[0].mxu0
        %2900 = vmatprep.mubr.f32.mxu0 %v2573
        %2901 = vmatmul.mubr.f32.gmra.mrb[0].mxu0 %v2572
        %v2902 = vpop.f32.mrb[0].mxu0
        %v2903 = vadd.f32 0.0, %v2902
        %v2904 = vpop.f32.mrb[0].mxu0
        %2905 = vmatprep.mubr.f32.mxu0 %v2582
        %2906 = vmatmul.mubr.f32.gmra.mrb[0].mxu0 %v2581
        %v2907 = vpop.f32.mrb[0].mxu0
        %v2908 = vadd.f32 0.0, %v2907
        %v2909 = vpop.f32.mrb[0].mxu0
        %2910 = vmatprep.mubr.f32.mxu0 %v2591
        %2911 = vmatmul.mubr.f32.gmra.mrb[0].mxu0 %v2590
        %v2912 = vpop.f32.mrb[0].mxu0
        %v2913 = vadd.f32 0.0, %v2912
        %v2914 = vpop.f32.mrb[0].mxu0
        %2915 = vmatprep.mubr.f32.mxu0 %v2600
        %2916 = vmatmul.mubr.f32.gmra.mrb[0].mxu0 %v2599
        %v2917 = vpop.f32.mrb[0].mxu0
        %v2918 = vadd.f32 0.0, %v2917
        %v2919 = vpop.f32.mrb[0].mxu0
        %2920 = vmatprep.mubr.f32.mxu0 %v2609
        %2921 = vmatmul.mubr.f32.gmra.mrb[0].mxu0 %v2608
        %v2922 = vpop.f32.mrb[0].mxu0
        %v2923 = vadd.f32 0.0, %v2922
        %v2924 = vpop.f32.mrb[0].mxu0
        %2925 = vmatprep.mubr.f32.mxu0 %v2618
        %2926 = vmatmul.mubr.f32.gmra.mrb[0].mxu0 %v2617
        %v2927 = vpop.f32.mrb[0].mxu0
        %v2928 = vadd.f32 0.0, %v2927
        %v2929 = vpop.f32.mrb[0].mxu0
        %2930 = vmatprep.mubr.f32.mxu0 %v2627
        %2931 = vmatmul.mubr.f32.gmra.mrb[0].mxu0 %v2626
        %v2932 = vpop.f32.mrb[0].mxu0
        %v2933 = vadd.f32 0.0, %v2932
        %v2934 = vpop.f32.mrb[0].mxu0
        %2935 = vmatprep.mubr.f32.mxu0 %v2636
        %2936 = vmatmul.mubr.f32.gmra.mrb[0].mxu0 %v2635
        %v2937 = vpop.f32.mrb[0].mxu0
        %v2938 = vadd.f32 0.0, %v2937
        %v2939 = vpop.f32.mrb[0].mxu0
        %2940 = vmatprep.mubr.f32.mxu0 %v2645
        %2941 = vmatmul.mubr.f32.gmra.mrb[0].mxu0 %v2644
        %v2942 = vpop.f32.mrb[0].mxu0
        %v2943 = vadd.f32 0.0, %v2942
        %v2944 = vpop.f32.mrb[0].mxu0
        %2945 = vmatprep.mubr.f32.mxu0 %v2654
        %2946 = vmatmul.mubr.f32.gmra.mrb[0].mxu0 %v2653
        %v2947 = vpop.f32.mrb[0].mxu0
        %v2948 = vadd.f32 0.0, %v2947
        %v2949 = vpop.f32.mrb[0].mxu0
        %2950 = vdwg.mxu0
        %2951 = vmatprep.subr.mxu0 0.0
        %2952 = vmatpush1.msra.mxu0 %v2694
        %2953 = vmatprep.subr.mxu0 0.0
        %2954 = vmatpush1.msra.mxu0 %v2695
        %2955 = vmatprep.subr.mxu0 0.0
        %2956 = vmatpush1.msra.mxu0 %v2696
        %2957 = vmatprep.subr.mxu0 0.0
        %2958 = vmatpush1.msra.mxu0 %v2697
        %2959 = vmatprep.subr.mxu0 0.0
        %2960 = vmatpush1.msra.mxu0 %v2698
        %2961 = vmatprep.subr.mxu0 0.0
        %2962 = vmatpush1.msra.mxu0 %v2699
        %2963 = vmatprep.subr.mxu0 0.0
        %2964 = vmatpush1.msra.mxu0 %v2700
        %2965 = vmatprep.subr.mxu0 0.0
        %2966 = vmatpush1.msra.mxu0 %v2701
        %2967 = vmatprep.subr.mxu0 0.0
        %2968 = vmatpush1.msra.mxu0 %v2702
        %2969 = vmatprep.subr.mxu0 0.0
        %2970 = vmatpush1.msra.mxu0 %v2703
        %2971 = vmatprep.subr.mxu0 0.0
        %2972 = vmatpush1.msra.mxu0 %v2704
        %2973 = vmatprep.subr.mxu0 0.0
        %2974 = vmatpush1.msra.mxu0 %v2705
        %2975 = vmatprep.subr.mxu0 0.0
        %2976 = vmatpush1.msra.mxu0 %v2706
        %2977 = vmatprep.subr.mxu0 0.0
        %2978 = vmatpush1.msra.mxu0 %v2707
        %2979 = vmatprep.subr.mxu0 0.0
        %2980 = vmatpush1.msra.mxu0 %v2708
        %2981 = vmatprep.subr.mxu0 0.0
        %2982 = vmatpush1.msra.mxu0 %v2709
        %2983 = vmatprep.subr.mxu0 0.0
        %2984 = vmatpush1.msra.mxu0 %v2710
        %2985 = vmatprep.subr.mxu0 0.0
        %2986 = vmatpush1.msra.mxu0 %v2711
        %2987 = vmatprep.subr.mxu0 0.0
        %2988 = vmatpush1.msra.mxu0 %v2712
        %2989 = vmatprep.subr.mxu0 0.0
        %2990 = vmatpush1.msra.mxu0 %v2713
        %2991 = vmatprep.subr.mxu0 0.0
        %2992 = vmatpush1.msra.mxu0 %v2714
        %2993 = vmatprep.subr.mxu0 0.0
        %2994 = vmatpush1.msra.mxu0 %v2715
        %2995 = vmatprep.subr.mxu0 0.0
        %2996 = vmatpush1.msra.mxu0 %v2716
        %2997 = vmatprep.subr.mxu0 0.0
        %2998 = vmatpush1.msra.mxu0 %v2717
        %2999 = vmatprep.subr.mxu0 0.0
        %3000 = vmatpush1.msra.mxu0 %v2718
        %3001 = vmatprep.subr.mxu0 0.0
        %3002 = vmatpush1.msra.mxu0 %v2719
        %3003 = vmatprep.subr.mxu0 0.0
        %3004 = vmatpush1.msra.mxu0 %v2720
        %3005 = vmatprep.subr.mxu0 0.0
        %3006 = vmatpush1.msra.mxu0 %v2721
        %3007 = vmatprep.subr.mxu0 0.0
        %3008 = vmatpush1.msra.mxu0 %v2722
        %3009 = vmatprep.subr.mxu0 0.0
        %3010 = vmatpush1.msra.mxu0 %v2723
        %3011 = vmatprep.subr.mxu0 0.0
        %3012 = vmatpush1.msra.mxu0 %v2724
        %3013 = vmatprep.subr.mxu0 0.0
        %3014 = vmatpush1.msra.mxu0 %v2725
        %3015 = vmatprep.mubr.f32.mxu0 %v2521
        %3016 = vmatmul.mubr.f32.gmra.mrb[0].mxu0 %v2520
        %v3017 = vpop.f32.mrb[0].mxu0
        %v3018 = vadd.f32 %v2873, %v3017
        %v3019 = vpop.f32.mrb[0].mxu0
        %3020 = vmatprep.mubr.f32.mxu0 %v2530
        %3021 = vmatmul.mubr.f32.gmra.mrb[0].mxu0 %v2529
        %v3022 = vpop.f32.mrb[0].mxu0
        %v3023 = vadd.f32 %v2878, %v3022
        %v3024 = vpop.f32.mrb[0].mxu0
        %3025 = vmatprep.mubr.f32.mxu0 %v2539
        %3026 = vmatmul.mubr.f32.gmra.mrb[0].mxu0 %v2538
        %v3027 = vpop.f32.mrb[0].mxu0
        %v3028 = vadd.f32 %v2883, %v3027
        %v3029 = vpop.f32.mrb[0].mxu0
        %3030 = vmatprep.mubr.f32.mxu0 %v2548
        %3031 = vmatmul.mubr.f32.gmra.mrb[0].mxu0 %v2547
        %v3032 = vpop.f32.mrb[0].mxu0
        %v3033 = vadd.f32 %v2888, %v3032
        %v3034 = vpop.f32.mrb[0].mxu0
        %3035 = vmatprep.mubr.f32.mxu0 %v2557
        %3036 = vmatmul.mubr.f32.gmra.mrb[0].mxu0 %v2556
        %v3037 = vpop.f32.mrb[0].mxu0
        %v3038 = vadd.f32 %v2893, %v3037
        %v3039 = vpop.f32.mrb[0].mxu0
        %3040 = vmatprep.mubr.f32.mxu0 %v2566
        %3041 = vmatmul.mubr.f32.gmra.mrb[0].mxu0 %v2565
        %v3042 = vpop.f32.mrb[0].mxu0
        %v3043 = vadd.f32 %v2898, %v3042
        %v3044 = vpop.f32.mrb[0].mxu0
        %3045 = vmatprep.mubr.f32.mxu0 %v2575
        %3046 = vmatmul.mubr.f32.gmra.mrb[0].mxu0 %v2574
        %v3047 = vpop.f32.mrb[0].mxu0
        %v3048 = vadd.f32 %v2903, %v3047
        %v3049 = vpop.f32.mrb[0].mxu0
        %3050 = vmatprep.mubr.f32.mxu0 %v2584
        %3051 = vmatmul.mubr.f32.gmra.mrb[0].mxu0 %v2583
        %v3052 = vpop.f32.mrb[0].mxu0
        %v3053 = vadd.f32 %v2908, %v3052
        %v3054 = vpop.f32.mrb[0].mxu0
        %3055 = vmatprep.mubr.f32.mxu0 %v2593
        %3056 = vmatmul.mubr.f32.gmra.mrb[0].mxu0 %v2592
        %v3057 = vpop.f32.mrb[0].mxu0
        %v3058 = vadd.f32 %v2913, %v3057
        %v3059 = vpop.f32.mrb[0].mxu0
        %3060 = vmatprep.mubr.f32.mxu0 %v2602
        %3061 = vmatmul.mubr.f32.gmra.mrb[0].mxu0 %v2601
        %v3062 = vpop.f32.mrb[0].mxu0
        %v3063 = vadd.f32 %v2918, %v3062
        %v3064 = vpop.f32.mrb[0].mxu0
        %3065 = vmatprep.mubr.f32.mxu0 %v2611
        %3066 = vmatmul.mubr.f32.gmra.mrb[0].mxu0 %v2610
        %v3067 = vpop.f32.mrb[0].mxu0
        %v3068 = vadd.f32 %v2923, %v3067
        %v3069 = vpop.f32.mrb[0].mxu0
        %3070 = vmatprep.mubr.f32.mxu0 %v2620
        %3071 = vmatmul.mubr.f32.gmra.mrb[0].mxu0 %v2619
        %v3072 = vpop.f32.mrb[0].mxu0
        %v3073 = vadd.f32 %v2928, %v3072
        %v3074 = vpop.f32.mrb[0].mxu0
        %3075 = vmatprep.mubr.f32.mxu0 %v2629
        %3076 = vmatmul.mubr.f32.gmra.mrb[0].mxu0 %v2628
        %v3077 = vpop.f32.mrb[0].mxu0
        %v3078 = vadd.f32 %v2933, %v3077
        %v3079 = vpop.f32.mrb[0].mxu0
        %3080 = vmatprep.mubr.f32.mxu0 %v2638
        %3081 = vmatmul.mubr.f32.gmra.mrb[0].mxu0 %v2637
        %v3082 = vpop.f32.mrb[0].mxu0
        %v3083 = vadd.f32 %v2938, %v3082
        %v3084 = vpop.f32.mrb[0].mxu0
        %3085 = vmatprep.mubr.f32.mxu0 %v2647
        %3086 = vmatmul.mubr.f32.gmra.mrb[0].mxu0 %v2646
        %v3087 = vpop.f32.mrb[0].mxu0
        %v3088 = vadd.f32 %v2943, %v3087
        %v3089 = vpop.f32.mrb[0].mxu0
        %3090 = vmatprep.mubr.f32.mxu0 %v2656
        %3091 = vmatmul.mubr.f32.gmra.mrb[0].mxu0 %v2655
        %v3092 = vpop.f32.mrb[0].mxu0
        %v3093 = vadd.f32 %v2948, %v3092
        %v3094 = vpop.f32.mrb[0].mxu0
        %3095 = vdwg.mxu0
        %3096 = vmatprep.subr.mxu0 0.0
        %3097 = vmatpush1.msra.mxu0 %v2726
        %3098 = vmatprep.subr.mxu0 0.0
        %3099 = vmatpush1.msra.mxu0 %v2727
        %3100 = vmatprep.subr.mxu0 0.0
        %3101 = vmatpush1.msra.mxu0 %v2728
        %3102 = vmatprep.subr.mxu0 0.0
        %3103 = vmatpush1.msra.mxu0 %v2729
        %3104 = vmatprep.subr.mxu0 0.0
        %3105 = vmatpush1.msra.mxu0 %v2730
        %3106 = vmatprep.subr.mxu0 0.0
        %3107 = vmatpush1.msra.mxu0 %v2731
        %3108 = vmatprep.subr.mxu0 0.0
        %3109 = vmatpush1.msra.mxu0 %v2732
        %3110 = vmatprep.subr.mxu0 0.0
        %3111 = vmatpush1.msra.mxu0 %v2733
        %3112 = vmatprep.subr.mxu0 0.0
        %3113 = vmatpush1.msra.mxu0 %v2734
        %3114 = vmatprep.subr.mxu0 0.0
        %3115 = vmatpush1.msra.mxu0 %v2735
        %3116 = vmatprep.subr.mxu0 0.0
        %3117 = vmatpush1.msra.mxu0 %v2736
        %3118 = vmatprep.subr.mxu0 0.0
        %3119 = vmatpush1.msra.mxu0 %v2737
        %3120 = vmatprep.subr.mxu0 0.0
        %3121 = vmatpush1.msra.mxu0 %v2738
        %3122 = vmatprep.subr.mxu0 0.0
        %3123 = vmatpush1.msra.mxu0 %v2739
        %3124 = vmatprep.subr.mxu0 0.0
        %3125 = vmatpush1.msra.mxu0 %v2740
        %3126 = vmatprep.subr.mxu0 0.0
        %3127 = vmatpush1.msra.mxu0 %v2741
        %3128 = vmatprep.subr.mxu0 0.0
        %3129 = vmatpush1.msra.mxu0 %v2742
        %3130 = vmatprep.subr.mxu0 0.0
        %3131 = vmatpush1.msra.mxu0 %v2743
        %3132 = vmatprep.subr.mxu0 0.0
        %3133 = vmatpush1.msra.mxu0 %v2744
        %3134 = vmatprep.subr.mxu0 0.0
        %3135 = vmatpush1.msra.mxu0 %v2745
        %3136 = vmatprep.subr.mxu0 0.0
        %3137 = vmatpush1.msra.mxu0 %v2746
        %3138 = vmatprep.subr.mxu0 0.0
        %3139 = vmatpush1.msra.mxu0 %v2747
        %3140 = vmatprep.subr.mxu0 0.0
        %3141 = vmatpush1.msra.mxu0 %v2748
        %3142 = vmatprep.subr.mxu0 0.0
        %3143 = vmatpush1.msra.mxu0 %v2749
        %3144 = vmatprep.subr.mxu0 0.0
        %3145 = vmatpush1.msra.mxu0 %v2750
        %3146 = vmatprep.subr.mxu0 0.0
        %3147 = vmatpush1.msra.mxu0 %v2751
        %3148 = vmatprep.subr.mxu0 0.0
        %3149 = vmatpush1.msra.mxu0 %v2752
        %3150 = vmatprep.subr.mxu0 0.0
        %3151 = vmatpush1.msra.mxu0 %v2753
        %3152 = vmatprep.subr.mxu0 0.0
        %3153 = vmatpush1.msra.mxu0 %v2754
        %3154 = vmatprep.subr.mxu0 0.0
        %3155 = vmatpush1.msra.mxu0 %v2755
        %3156 = vmatprep.subr.mxu0 0.0
        %3157 = vmatpush1.msra.mxu0 %v2756
        %3158 = vmatprep.subr.mxu0 0.0
        %3159 = vmatpush1.msra.mxu0 %v2757
        %3160 = vmatprep.mubr.f32.mxu0 %v2523
        %3161 = vmatmul.mubr.f32.gmra.mrb[0].mxu0 %v2522
        %v3162 = vpop.f32.mrb[0].mxu0
        %v3163 = vadd.f32 %v3018, %v3162
        %v3164 = vpop.f32.mrb[0].mxu0
        %3165 = vmatprep.mubr.f32.mxu0 %v2532
        %3166 = vmatmul.mubr.f32.gmra.mrb[0].mxu0 %v2531
        %v3167 = vpop.f32.mrb[0].mxu0
        %v3168 = vadd.f32 %v3023, %v3167
        %v3169 = vpop.f32.mrb[0].mxu0
        %3170 = vmatprep.mubr.f32.mxu0 %v2541
        %3171 = vmatmul.mubr.f32.gmra.mrb[0].mxu0 %v2540
        %v3172 = vpop.f32.mrb[0].mxu0
        %v3173 = vadd.f32 %v3028, %v3172
        %v3174 = vpop.f32.mrb[0].mxu0
        %3175 = vmatprep.mubr.f32.mxu0 %v2550
        %3176 = vmatmul.mubr.f32.gmra.mrb[0].mxu0 %v2549
        %v3177 = vpop.f32.mrb[0].mxu0
        %v3178 = vadd.f32 %v3033, %v3177
        %v3179 = vpop.f32.mrb[0].mxu0
        %3180 = vmatprep.mubr.f32.mxu0 %v2559
        %3181 = vmatmul.mubr.f32.gmra.mrb[0].mxu0 %v2558
        %v3182 = vpop.f32.mrb[0].mxu0
        %v3183 = vadd.f32 %v3038, %v3182
        %v3184 = vpop.f32.mrb[0].mxu0
        %3185 = vmatprep.mubr.f32.mxu0 %v2568
        %3186 = vmatmul.mubr.f32.gmra.mrb[0].mxu0 %v2567
        %v3187 = vpop.f32.mrb[0].mxu0
        %v3188 = vadd.f32 %v3043, %v3187
        %v3189 = vpop.f32.mrb[0].mxu0
        %3190 = vmatprep.mubr.f32.mxu0 %v2577
        %3191 = vmatmul.mubr.f32.gmra.mrb[0].mxu0 %v2576
        %v3192 = vpop.f32.mrb[0].mxu0
        %v3193 = vadd.f32 %v3048, %v3192
        %v3194 = vpop.f32.mrb[0].mxu0
        %3195 = vmatprep.mubr.f32.mxu0 %v2586
        %3196 = vmatmul.mubr.f32.gmra.mrb[0].mxu0 %v2585
        %v3197 = vpop.f32.mrb[0].mxu0
        %v3198 = vadd.f32 %v3053, %v3197
        %v3199 = vpop.f32.mrb[0].mxu0
        %3200 = vmatprep.mubr.f32.mxu0 %v2595
        %3201 = vmatmul.mubr.f32.gmra.mrb[0].mxu0 %v2594
        %v3202 = vpop.f32.mrb[0].mxu0
        %v3203 = vadd.f32 %v3058, %v3202
        %v3204 = vpop.f32.mrb[0].mxu0
        %3205 = vmatprep.mubr.f32.mxu0 %v2604
        %3206 = vmatmul.mubr.f32.gmra.mrb[0].mxu0 %v2603
        %v3207 = vpop.f32.mrb[0].mxu0
        %v3208 = vadd.f32 %v3063, %v3207
        %v3209 = vpop.f32.mrb[0].mxu0
        %3210 = vmatprep.mubr.f32.mxu0 %v2613
        %3211 = vmatmul.mubr.f32.gmra.mrb[0].mxu0 %v2612
        %v3212 = vpop.f32.mrb[0].mxu0
        %v3213 = vadd.f32 %v3068, %v3212
        %v3214 = vpop.f32.mrb[0].mxu0
        %3215 = vmatprep.mubr.f32.mxu0 %v2622
        %3216 = vmatmul.mubr.f32.gmra.mrb[0].mxu0 %v2621
        %v3217 = vpop.f32.mrb[0].mxu0
        %v3218 = vadd.f32 %v3073, %v3217
        %v3219 = vpop.f32.mrb[0].mxu0
        %3220 = vmatprep.mubr.f32.mxu0 %v2631
        %3221 = vmatmul.mubr.f32.gmra.mrb[0].mxu0 %v2630
        %v3222 = vpop.f32.mrb[0].mxu0
        %v3223 = vadd.f32 %v3078, %v3222
        %v3224 = vpop.f32.mrb[0].mxu0
        %3225 = vmatprep.mubr.f32.mxu0 %v2640
        %3226 = vmatmul.mubr.f32.gmra.mrb[0].mxu0 %v2639
        %v3227 = vpop.f32.mrb[0].mxu0
        %v3228 = vadd.f32 %v3083, %v3227
        %v3229 = vpop.f32.mrb[0].mxu0
        %3230 = vmatprep.mubr.f32.mxu0 %v2649
        %3231 = vmatmul.mubr.f32.gmra.mrb[0].mxu0 %v2648
        %v3232 = vpop.f32.mrb[0].mxu0
        %v3233 = vadd.f32 %v3088, %v3232
        %v3234 = vpop.f32.mrb[0].mxu0
        %3235 = vmatprep.mubr.f32.mxu0 %v2658
        %3236 = vmatmul.mubr.f32.gmra.mrb[0].mxu0 %v2657
        %v3237 = vpop.f32.mrb[0].mxu0
        %v3238 = vadd.f32 %v3093, %v3237
        %v3239 = vpop.f32.mrb[0].mxu0
        %3240 = vdwg.mxu0
        %3241 = vmatprep.subr.mxu0 0.0
        %3242 = vmatpush1.msra.mxu0 %v2758
        %3243 = vmatprep.subr.mxu0 0.0
        %3244 = vmatpush1.msra.mxu0 %v2759
        %3245 = vmatprep.subr.mxu0 0.0
        %3246 = vmatpush1.msra.mxu0 %v2760
        %3247 = vmatprep.subr.mxu0 0.0
        %3248 = vmatpush1.msra.mxu0 %v2761
        %3249 = vmatprep.subr.mxu0 0.0
        %3250 = vmatpush1.msra.mxu0 %v2762
        %3251 = vmatprep.subr.mxu0 0.0
        %3252 = vmatpush1.msra.mxu0 %v2763
        %3253 = vmatprep.subr.mxu0 0.0
        %3254 = vmatpush1.msra.mxu0 %v2764
        %3255 = vmatprep.subr.mxu0 0.0
        %3256 = vmatpush1.msra.mxu0 %v2765
        %3257 = vmatprep.subr.mxu0 0.0
        %3258 = vmatpush1.msra.mxu0 %v2766
        %3259 = vmatprep.subr.mxu0 0.0
        %3260 = vmatpush1.msra.mxu0 %v2767
        %3261 = vmatprep.subr.mxu0 0.0
        %3262 = vmatpush1.msra.mxu0 %v2768
        %3263 = vmatprep.subr.mxu0 0.0
        %3264 = vmatpush1.msra.mxu0 %v2769
        %3265 = vmatprep.subr.mxu0 0.0
        %3266 = vmatpush1.msra.mxu0 %v2770
        %3267 = vmatprep.subr.mxu0 0.0
        %3268 = vmatpush1.msra.mxu0 %v2771
        %3269 = vmatprep.subr.mxu0 0.0
        %3270 = vmatpush1.msra.mxu0 %v2772
        %3271 = vmatprep.subr.mxu0 0.0
        %3272 = vmatpush1.msra.mxu0 %v2773
        %3273 = vmatprep.subr.mxu0 0.0
        %3274 = vmatpush1.msra.mxu0 %v2774
        %3275 = vmatprep.subr.mxu0 0.0
        %3276 = vmatpush1.msra.mxu0 %v2775
        %3277 = vmatprep.subr.mxu0 0.0
        %3278 = vmatpush1.msra.mxu0 %v2776
        %3279 = vmatprep.subr.mxu0 0.0
        %3280 = vmatpush1.msra.mxu0 %v2777
        %3281 = vmatprep.subr.mxu0 0.0
        %3282 = vmatpush1.msra.mxu0 %v2778
        %3283 = vmatprep.subr.mxu0 0.0
        %3284 = vmatpush1.msra.mxu0 %v2779
        %3285 = vmatprep.subr.mxu0 0.0
        %3286 = vmatpush1.msra.mxu0 %v2780
        %3287 = vmatprep.subr.mxu0 0.0
        %3288 = vmatpush1.msra.mxu0 %v2781
        %3289 = vmatprep.subr.mxu0 0.0
        %3290 = vmatpush1.msra.mxu0 %v2782
        %3291 = vmatprep.subr.mxu0 0.0
        %3292 = vmatpush1.msra.mxu0 %v2783
        %3293 = vmatprep.subr.mxu0 0.0
        %3294 = vmatpush1.msra.mxu0 %v2784
        %3295 = vmatprep.subr.mxu0 0.0
        %3296 = vmatpush1.msra.mxu0 %v2785
        %3297 = vmatprep.subr.mxu0 0.0
        %3298 = vmatpush1.msra.mxu0 %v2786
        %3299 = vmatprep.subr.mxu0 0.0
        %3300 = vmatpush1.msra.mxu0 %v2787
        %3301 = vmatprep.subr.mxu0 0.0
        %3302 = vmatpush1.msra.mxu0 %v2788
        %3303 = vmatprep.subr.mxu0 0.0
        %3304 = vmatpush1.msra.mxu0 %v2789
        %3305 = vmatprep.mubr.f32.mxu0 %v2525
        %3306 = vmatmul.mubr.f32.gmra.mrb[0].mxu0 %v2524
        %v3307 = vpop.f32.mrb[0].mxu0
        %v3308 = vadd.f32 %v3163, %v3307
        %v3309 = vpop.f32.mrb[0].mxu0
        %3310 = vmatprep.mubr.f32.mxu0 %v2534
        %3311 = vmatmul.mubr.f32.gmra.mrb[0].mxu0 %v2533
        %v3312 = vpop.f32.mrb[0].mxu0
        %v3313 = vadd.f32 %v3168, %v3312
        %v3314 = vpop.f32.mrb[0].mxu0
        %3315 = vmatprep.mubr.f32.mxu0 %v2543
        %3316 = vmatmul.mubr.f32.gmra.mrb[0].mxu0 %v2542
        %v3317 = vpop.f32.mrb[0].mxu0
        %v3318 = vadd.f32 %v3173, %v3317
        %v3319 = vpop.f32.mrb[0].mxu0
        %3320 = vmatprep.mubr.f32.mxu0 %v2552
        %3321 = vmatmul.mubr.f32.gmra.mrb[0].mxu0 %v2551
        %v3322 = vpop.f32.mrb[0].mxu0
        %v3323 = vadd.f32 %v3178, %v3322
        %v3324 = vpop.f32.mrb[0].mxu0
        %3325 = vmatprep.mubr.f32.mxu0 %v2561
        %3326 = vmatmul.mubr.f32.gmra.mrb[0].mxu0 %v2560
        %v3327 = vpop.f32.mrb[0].mxu0
        %v3328 = vadd.f32 %v3183, %v3327
        %v3329 = vpop.f32.mrb[0].mxu0
        %3330 = vmatprep.mubr.f32.mxu0 %v2570
        %3331 = vmatmul.mubr.f32.gmra.mrb[0].mxu0 %v2569
        %v3332 = vpop.f32.mrb[0].mxu0
        %v3333 = vadd.f32 %v3188, %v3332
        %v3334 = vpop.f32.mrb[0].mxu0
        %3335 = vmatprep.mubr.f32.mxu0 %v2579
        %3336 = vmatmul.mubr.f32.gmra.mrb[0].mxu0 %v2578
        %v3337 = vpop.f32.mrb[0].mxu0
        %v3338 = vadd.f32 %v3193, %v3337
        %v3339 = vpop.f32.mrb[0].mxu0
        %3340 = vmatprep.mubr.f32.mxu0 %v2588
        %3341 = vmatmul.mubr.f32.gmra.mrb[0].mxu0 %v2587
        %v3342 = vpop.f32.mrb[0].mxu0
        %v3343 = vadd.f32 %v3198, %v3342
        %v3344 = vpop.f32.mrb[0].mxu0
        %3345 = vmatprep.mubr.f32.mxu0 %v2597
        %3346 = vmatmul.mubr.f32.gmra.mrb[0].mxu0 %v2596
        %v3347 = vpop.f32.mrb[0].mxu0
        %v3348 = vadd.f32 %v3203, %v3347
        %v3349 = vpop.f32.mrb[0].mxu0
        %3350 = vmatprep.mubr.f32.mxu0 %v2606
        %3351 = vmatmul.mubr.f32.gmra.mrb[0].mxu0 %v2605
        %v3352 = vpop.f32.mrb[0].mxu0
        %v3353 = vadd.f32 %v3208, %v3352
        %v3354 = vpop.f32.mrb[0].mxu0
        %3355 = vmatprep.mubr.f32.mxu0 %v2615
        %3356 = vmatmul.mubr.f32.gmra.mrb[0].mxu0 %v2614
        %v3357 = vpop.f32.mrb[0].mxu0
        %v3358 = vadd.f32 %v3213, %v3357
        %v3359 = vpop.f32.mrb[0].mxu0
        %3360 = vmatprep.mubr.f32.mxu0 %v2624
        %3361 = vmatmul.mubr.f32.gmra.mrb[0].mxu0 %v2623
        %v3362 = vpop.f32.mrb[0].mxu0
        %v3363 = vadd.f32 %v3218, %v3362
        %v3364 = vpop.f32.mrb[0].mxu0
        %3365 = vmatprep.mubr.f32.mxu0 %v2633
        %3366 = vmatmul.mubr.f32.gmra.mrb[0].mxu0 %v2632
        %v3367 = vpop.f32.mrb[0].mxu0
        %v3368 = vadd.f32 %v3223, %v3367
        %v3369 = vpop.f32.mrb[0].mxu0
        %3370 = vmatprep.mubr.f32.mxu0 %v2642
        %3371 = vmatmul.mubr.f32.gmra.mrb[0].mxu0 %v2641
        %v3372 = vpop.f32.mrb[0].mxu0
        %v3373 = vadd.f32 %v3228, %v3372
        %v3374 = vpop.f32.mrb[0].mxu0
        %3375 = vmatprep.mubr.f32.mxu0 %v2651
        %3376 = vmatmul.mubr.f32.gmra.mrb[0].mxu0 %v2650
        %v3377 = vpop.f32.mrb[0].mxu0
        %v3378 = vadd.f32 %v3233, %v3377
        %v3379 = vpop.f32.mrb[0].mxu0
        %3380 = vmatprep.mubr.f32.mxu0 %v2660
        %3381 = vmatmul.mubr.f32.gmra.mrb[0].mxu0 %v2659
        %v3382 = vpop.f32.mrb[0].mxu0
        %v3383 = vadd.f32 %v3238, %v3382
        %v3384 = vpop.f32.mrb[0].mxu0
        %3385 = vdwg.mxu0
        %3386 = vmatprep.subr.mxu0 0.0
        %3387 = vmatpush1.msra.mxu0 %v2790
        %3388 = vmatprep.subr.mxu0 0.0
        %3389 = vmatpush1.msra.mxu0 %v2791
        %3390 = vmatprep.subr.mxu0 0.0
        %3391 = vmatpush1.msra.mxu0 %v2792
        %3392 = vmatprep.subr.mxu0 0.0
        %3393 = vmatpush1.msra.mxu0 %v2793
        %3394 = vmatprep.subr.mxu0 0.0
        %3395 = vmatpush1.msra.mxu0 %v2794
        %3396 = vmatprep.subr.mxu0 0.0
        %3397 = vmatpush1.msra.mxu0 %v2795
        %3398 = vmatprep.subr.mxu0 0.0
        %3399 = vmatpush1.msra.mxu0 %v2796
        %3400 = vmatprep.subr.mxu0 0.0
        %3401 = vmatpush1.msra.mxu0 %v2797
        %3402 = vmatprep.subr.mxu0 0.0
        %3403 = vmatpush1.msra.mxu0 %v2798
        %3404 = vmatprep.subr.mxu0 0.0
        %3405 = vmatpush1.msra.mxu0 %v2799
        %3406 = vmatprep.subr.mxu0 0.0
        %3407 = vmatpush1.msra.mxu0 %v2800
        %3408 = vmatprep.subr.mxu0 0.0
        %3409 = vmatpush1.msra.mxu0 %v2801
        %3410 = vmatprep.subr.mxu0 0.0
        %3411 = vmatpush1.msra.mxu0 %v2802
        %3412 = vmatprep.subr.mxu0 0.0
        %3413 = vmatpush1.msra.mxu0 %v2803
        %3414 = vmatprep.subr.mxu0 0.0
        %3415 = vmatpush1.msra.mxu0 %v2804
        %3416 = vmatprep.subr.mxu0 0.0
        %3417 = vmatpush1.msra.mxu0 %v2805
        %3418 = vmatprep.subr.mxu0 0.0
        %3419 = vmatpush1.msra.mxu0 0.0
        %3420 = vmatprep.subr.mxu0 0.0
        %3421 = vmatpush1.msra.mxu0 0.0
        %3422 = vmatprep.subr.mxu0 0.0
        %3423 = vmatpush1.msra.mxu0 0.0
        %3424 = vmatprep.subr.mxu0 0.0
        %3425 = vmatpush1.msra.mxu0 0.0
        %3426 = vmatprep.subr.mxu0 0.0
        %3427 = vmatpush1.msra.mxu0 0.0
        %3428 = vmatprep.subr.mxu0 0.0
        %3429 = vmatpush1.msra.mxu0 0.0
        %3430 = vmatprep.subr.mxu0 0.0
        %3431 = vmatpush1.msra.mxu0 0.0
        %3432 = vmatprep.subr.mxu0 0.0
        %3433 = vmatpush1.msra.mxu0 0.0
        %3434 = vmatprep.subr.mxu0 0.0
        %3435 = vmatpush1.msra.mxu0 0.0
        %3436 = vmatprep.subr.mxu0 0.0
        %3437 = vmatpush1.msra.mxu0 0.0
        %3438 = vmatprep.subr.mxu0 0.0
        %3439 = vmatpush1.msra.mxu0 0.0
        %3440 = vmatprep.subr.mxu0 0.0
        %3441 = vmatpush1.msra.mxu0 0.0
        %3442 = vmatprep.subr.mxu0 0.0
        %3443 = vmatpush1.msra.mxu0 0.0
        %3444 = vmatprep.subr.mxu0 0.0
        %3445 = vmatpush1.msra.mxu0 0.0
        %3446 = vmatprep.subr.mxu0 0.0
        %3447 = vmatpush1.msra.mxu0 0.0
        %3448 = vmatprep.subr.mxu0 0.0
        %3449 = vmatpush1.msra.mxu0 0.0
        %3450 = vmatprep.mubr.f32.mxu0 0.0
        %3451 = vmatmul.mubr.f32.gmra.mrb[0].mxu0 %v2526
        %v3452 = vpop.f32.mrb[0].mxu0
        %v3453 = vadd.f32 %v3308, %v3452
        %v3454 = vpop.f32.mrb[0].mxu0
        %3455 = vmatprep.mubr.f32.mxu0 0.0
        %3456 = vmatmul.mubr.f32.gmra.mrb[0].mxu0 %v2535
        %v3457 = vpop.f32.mrb[0].mxu0
        %v3458 = vadd.f32 %v3313, %v3457
        %v3459 = vpop.f32.mrb[0].mxu0
        %3460 = vmatprep.mubr.f32.mxu0 0.0
        %3461 = vmatmul.mubr.f32.gmra.mrb[0].mxu0 %v2544
        %v3462 = vpop.f32.mrb[0].mxu0
        %v3463 = vadd.f32 %v3318, %v3462
        %v3464 = vpop.f32.mrb[0].mxu0
        %3465 = vmatprep.mubr.f32.mxu0 0.0
        %3466 = vmatmul.mubr.f32.gmra.mrb[0].mxu0 %v2553
        %v3467 = vpop.f32.mrb[0].mxu0
        %v3468 = vadd.f32 %v3323, %v3467
        %v3469 = vpop.f32.mrb[0].mxu0
        %3470 = vmatprep.mubr.f32.mxu0 0.0
        %3471 = vmatmul.mubr.f32.gmra.mrb[0].mxu0 %v2562
        %v3472 = vpop.f32.mrb[0].mxu0
        %v3473 = vadd.f32 %v3328, %v3472
        %v3474 = vpop.f32.mrb[0].mxu0
        %3475 = vmatprep.mubr.f32.mxu0 0.0
        %3476 = vmatmul.mubr.f32.gmra.mrb[0].mxu0 %v2571
        %v3477 = vpop.f32.mrb[0].mxu0
        %v3478 = vadd.f32 %v3333, %v3477
        %v3479 = vpop.f32.mrb[0].mxu0
        %3480 = vmatprep.mubr.f32.mxu0 0.0
        %3481 = vmatmul.mubr.f32.gmra.mrb[0].mxu0 %v2580
        %v3482 = vpop.f32.mrb[0].mxu0
        %v3483 = vadd.f32 %v3338, %v3482
        %v3484 = vpop.f32.mrb[0].mxu0
        %3485 = vmatprep.mubr.f32.mxu0 0.0
        %3486 = vmatmul.mubr.f32.gmra.mrb[0].mxu0 %v2589
        %v3487 = vpop.f32.mrb[0].mxu0
        %v3488 = vadd.f32 %v3343, %v3487
        %v3489 = vpop.f32.mrb[0].mxu0
        %3490 = vmatprep.mubr.f32.mxu0 0.0
        %3491 = vmatmul.mubr.f32.gmra.mrb[0].mxu0 %v2598
        %v3492 = vpop.f32.mrb[0].mxu0
        %v3493 = vadd.f32 %v3348, %v3492
        %v3494 = vpop.f32.mrb[0].mxu0
        %3495 = vmatprep.mubr.f32.mxu0 0.0
        %3496 = vmatmul.mubr.f32.gmra.mrb[0].mxu0 %v2607
        %v3497 = vpop.f32.mrb[0].mxu0
        %v3498 = vadd.f32 %v3353, %v3497
        %v3499 = vpop.f32.mrb[0].mxu0
        %3500 = vmatprep.mubr.f32.mxu0 0.0
        %3501 = vmatmul.mubr.f32.gmra.mrb[0].mxu0 %v2616
        %v3502 = vpop.f32.mrb[0].mxu0
        %v3503 = vadd.f32 %v3358, %v3502
        %v3504 = vpop.f32.mrb[0].mxu0
        %3505 = vmatprep.mubr.f32.mxu0 0.0
        %3506 = vmatmul.mubr.f32.gmra.mrb[0].mxu0 %v2625
        %v3507 = vpop.f32.mrb[0].mxu0
        %v3508 = vadd.f32 %v3363, %v3507
        %v3509 = vpop.f32.mrb[0].mxu0
        %3510 = vmatprep.mubr.f32.mxu0 0.0
        %3511 = vmatmul.mubr.f32.gmra.mrb[0].mxu0 %v2634
        %v3512 = vpop.f32.mrb[0].mxu0
        %v3513 = vadd.f32 %v3368, %v3512
        %v3514 = vpop.f32.mrb[0].mxu0
        %3515 = vmatprep.mubr.f32.mxu0 0.0
        %3516 = vmatmul.mubr.f32.gmra.mrb[0].mxu0 %v2643
        %v3517 = vpop.f32.mrb[0].mxu0
        %v3518 = vadd.f32 %v3373, %v3517
        %v3519 = vpop.f32.mrb[0].mxu0
        %3520 = vmatprep.mubr.f32.mxu0 0.0
        %3521 = vmatmul.mubr.f32.gmra.mrb[0].mxu0 %v2652
        %v3522 = vpop.f32.mrb[0].mxu0
        %v3523 = vadd.f32 %v3378, %v3522
        %v3524 = vpop.f32.mrb[0].mxu0
        %3525 = vmatprep.mubr.f32.mxu0 0.0
        %3526 = vmatmul.mubr.f32.gmra.mrb[0].mxu0 %v2661
        %v3527 = vpop.f32.mrb[0].mxu0
        %v3528 = vadd.f32 %v3383, %v3527
        %v3529 = vpop.f32.mrb[0].mxu0
        %3530 = vdwg.mxu0
        %v3531 = vstv %s284
        %v3532 = vmul.f32 %v3453, %v3531
        %v3533 = vmul.f32 %v3458, %v3531
        %v3534 = vmul.f32 %v3463, %v3531
        %v3535 = vmul.f32 %v3468, %v3531
        %v3536 = vmul.f32 %v3473, %v3531
        %v3537 = vmul.f32 %v3478, %v3531
        %v3538 = vmul.f32 %v3483, %v3531
        %v3539 = vmul.f32 %v3488, %v3531
        %v3540 = vmul.f32 %v3493, %v3531
        %v3541 = vmul.f32 %v3498, %v3531
        %v3542 = vmul.f32 %v3503, %v3531
        %v3543 = vmul.f32 %v3508, %v3531
        %v3544 = vmul.f32 %v3513, %v3531
        %v3545 = vmul.f32 %v3518, %v3531
        %v3546 = vmul.f32 %v3523, %v3531
        %v3547 = vmul.f32 %v3528, %v3531
        %v3548 = vmax.f32 %v3532, -127.0
        %v3549 = vmax.f32 %v3533, -127.0
        %v3550 = vmax.f32 %v3534, -127.0
        %v3551 = vmax.f32 %v3535, -127.0
        %v3552 = vmax.f32 %v3536, -127.0
        %v3553 = vmax.f32 %v3537, -127.0
        %v3554 = vmax.f32 %v3538, -127.0
        %v3555 = vmax.f32 %v3539, -127.0
        %v3556 = vmax.f32 %v3540, -127.0
        %v3557 = vmax.f32 %v3541, -127.0
        %v3558 = vmax.f32 %v3542, -127.0
        %v3559 = vmax.f32 %v3543, -127.0
        %v3560 = vmax.f32 %v3544, -127.0
        %v3561 = vmax.f32 %v3545, -127.0
        %v3562 = vmax.f32 %v3546, -127.0
        %v3563 = vmax.f32 %v3547, -127.0
        %v3564 = vmin.f32 %v3548, 127.0
        %v3565 = vmin.f32 %v3549, 127.0
        %v3566 = vmin.f32 %v3550, 127.0
        %v3567 = vmin.f32 %v3551, 127.0
        %v3568 = vmin.f32 %v3552, 127.0
        %v3569 = vmin.f32 %v3553, 127.0
        %v3570 = vmin.f32 %v3554, 127.0
        %v3571 = vmin.f32 %v3555, 127.0
        %v3572 = vmin.f32 %v3556, 127.0
        %v3573 = vmin.f32 %v3557, 127.0
        %v3574 = vmin.f32 %v3558, 127.0
        %v3575 = vmin.f32 %v3559, 127.0
        %v3576 = vmin.f32 %v3560, 127.0
        %v3577 = vmin.f32 %v3561, 127.0
        %v3578 = vmin.f32 %v3562, 127.0
        %v3579 = vmin.f32 %v3563, 127.0
        %v3580 = vround.ne.pseudo %v3564
        %v3581 = vround.ne.pseudo %v3565
        %v3582 = vround.ne.pseudo %v3566
        %v3583 = vround.ne.pseudo %v3567
        %v3584 = vround.ne.pseudo %v3568
        %v3585 = vround.ne.pseudo %v3569
        %v3586 = vround.ne.pseudo %v3570
        %v3587 = vround.ne.pseudo %v3571
        %v3588 = vround.ne.pseudo %v3572
        %v3589 = vround.ne.pseudo %v3573
        %v3590 = vround.ne.pseudo %v3574
        %v3591 = vround.ne.pseudo %v3575
        %v3592 = vround.ne.pseudo %v3576
        %v3593 = vround.ne.pseudo %v3577
        %v3594 = vround.ne.pseudo %v3578
        %v3595 = vround.ne.pseudo %v3579
        %v3596 = vstv %s285
        %v3597 = vmul.f32 %v3580, %v3596
        %v3598 = vmul.f32 %v3581, %v3596
        %v3599 = vmul.f32 %v3582, %v3596
        %v3600 = vmul.f32 %v3583, %v3596
        %v3601 = vmul.f32 %v3584, %v3596
        %v3602 = vmul.f32 %v3585, %v3596
        %v3603 = vmul.f32 %v3586, %v3596
        %v3604 = vmul.f32 %v3587, %v3596
        %v3605 = vmul.f32 %v3588, %v3596
        %v3606 = vmul.f32 %v3589, %v3596
        %v3607 = vmul.f32 %v3590, %v3596
        %v3608 = vmul.f32 %v3591, %v3596
        %v3609 = vmul.f32 %v3592, %v3596
        %v3610 = vmul.f32 %v3593, %v3596
        %v3611 = vmul.f32 %v3594, %v3596
        %v3612 = vmul.f32 %v3595, %v3596
        %v3613 = vld [vmem:[%s781 + $0x1] sm:$0xff]
        %v3614 = vld [vmem:[%s781 + $0x9] sm:$0xff]
        %v3615 = vld [vmem:[%s781 + $0x19] sm:$0xff]
        %v3616 = vld [vmem:[%s781 + $0x21] sm:$0xff]
        %v3617 = vld [vmem:[%s781 + $0x31] sm:$0xff]
        %v3618 = vld [vmem:[%s781 + $0x39] sm:$0xff]
        %v3619 = vld [vmem:[%s781 + $0x49] sm:$0xff]
        %v3620 = vld [vmem:[%s781 + $0x51] sm:$0xff]
        %v3621 = vld [vmem:[%s781 + $0x61] sm:$0xff]
        %v3622 = vld [vmem:[%s781 + $0x69] sm:$0xff]
        %v3623 = vld [vmem:[%s781 + $0x79] sm:$0xff]
        %v3624 = vld [vmem:[%s781 + $0x81] sm:$0xff]
        %v3625 = vld [vmem:[%s781 + $0x91] sm:$0xff]
        %v3626 = vld [vmem:[%s781 + $0x99] sm:$0xff]
        %v3627 = vld [vmem:[%s781 + $0xa9] sm:$0xff]
        %v3628 = vld [vmem:[%s781 + $0xb1] sm:$0xff]
        %v3629 = vadd.f32 %v3597, %v3613
        %v3630 = vadd.f32 %v3598, %v3614
        %v3631 = vadd.f32 %v3599, %v3615
        %v3632 = vadd.f32 %v3600, %v3616
        %v3633 = vadd.f32 %v3601, %v3617
        %v3634 = vadd.f32 %v3602, %v3618
        %v3635 = vadd.f32 %v3603, %v3619
        %v3636 = vadd.f32 %v3604, %v3620
        %v3637 = vadd.f32 %v3605, %v3621
        %v3638 = vadd.f32 %v3606, %v3622
        %v3639 = vadd.f32 %v3607, %v3623
        %v3640 = vadd.f32 %v3608, %v3624
        %v3641 = vadd.f32 %v3609, %v3625
        %v3642 = vadd.f32 %v3610, %v3626
        %v3643 = vadd.f32 %v3611, %v3627
        %v3644 = vadd.f32 %v3612, %v3628
        %3645 = vst [vmem:[%s276] sm:$0xff] %v3629
        %3646 = vst [vmem:[%s276 + $0x8] sm:$0xff] %v3630
        %3647 = vst [vmem:[%s276 + $0x10] sm:$0xff] %v3631
        %3648 = vst [vmem:[%s276 + $0x18] sm:$0xff] %v3632
        %3649 = vst [vmem:[%s276 + $0x20] sm:$0xff] %v3633
        %3650 = vst [vmem:[%s276 + $0x28] sm:$0xff] %v3634
        %3651 = vst [vmem:[%s276 + $0x30] sm:$0xff] %v3635
        %3652 = vst [vmem:[%s276 + $0x38] sm:$0xff] %v3636
        %3653 = vst [vmem:[%s276 + $0x40] sm:$0xff] %v3637
        %3654 = vst [vmem:[%s276 + $0x48] sm:$0xff] %v3638
        %3655 = vst [vmem:[%s276 + $0x50] sm:$0xff] %v3639
        %3656 = vst [vmem:[%s276 + $0x58] sm:$0xff] %v3640
        %3657 = vst [vmem:[%s276 + $0x60] sm:$0xff] %v3641
        %3658 = vst [vmem:[%s276 + $0x68] sm:$0xff] %v3642
        %3659 = vst [vmem:[%s276 + $0x70] sm:$0xff] %v3643
        %3660 = vst [vmem:[%s276 + $0x78] sm:$0xff] %v3644
        %s3661 = sand.u32 %s138, 1
        %s3662 = scalar_lea.sflag [#allocation7], %s3661
        %s3663 = sand.u32 %s138, 1
        %s3664 = smul.addr %s3663, 128
        %s3665 = scalar_lea.vmem [#allocation13], %s3664
        // Predicated region
        $region61: #{tpu_custom_call.1} parent=35 // pred_check
          %p3666 = pneg %p148
        $region62: #{tpu_custom_call.1} parent=35 // pred_check_branch
          %3668 = sbr.rel (%p3666) target = $region64
        $region63: #{tpu_custom_call.1} parent=35 // pred_region
          %s3669 = smul.u32 8, %s28
          %s3671 = ssub.s32 2048, 2048
          %3672 = vsyncadd %s3662, %s3671
          %s3673 = smul.addr %s3669, 2
          %s3674 = smul.addr %s27, 32
          %s3675 = sadd.s32 %s3673, %s3674
          %s3676 = smul.addr %s3675, 128
          %s3677 = scalar_lea.hbm %s4, %s3676
          %s3678 = sshll.u32 %s3665, 4
          %s3679 = int_to_ptr.vmem [resolvable:$true] %s3678
          %3684 = dma.vmem_to_hbm [thread:$0]  %s3679, 2048, %s3677, %s3662, 128, 128, 8
        $region64: #{tpu_custom_call.1} parent=35 // pred_fallthru
          _
      $region36: #{tpu_custom_call.1} parent=5 // pred_fallthru
        _
      %p3685 = scmp.le.s32.totalorder 2, %s18
      // Predicated region
      $region65: #{tpu_custom_call.1} parent=5 // pred_check
        %p3686 = pneg %p3685
      $region66: #{tpu_custom_call.1} parent=5 // pred_check_branch
        %3688 = sbr.rel (%p3686) target = $region68
      $region67: #{tpu_custom_call.1} parent=5 // pred_region
        %s3689 = ssub.s32 %s18, 2
        // Predicated region
        $region69: #{tpu_custom_call.1} parent=67 // pred_check
          %p3690 = pneg %p154
        $region70: #{tpu_custom_call.1} parent=67 // pred_check_branch
          %3692 = sbr.rel (%p3690) target = $region72
        $region71: #{tpu_custom_call.1} parent=67 // pred_region
          %s3693 = sand.u32 %s139, 1
          %s3694 = scalar_lea.sflag [#allocation7], %s3693
          %s3695 = sand.u32 %s139, 1
          %s3696 = smul.addr %s3695, 128
          %s3697 = scalar_lea.vmem [#allocation13], %s3696
          %3698 = dma.done %s3694, 2048
        $region72: #{tpu_custom_call.1} parent=67 // pred_fallthru
          _
      $region68: #{tpu_custom_call.1} parent=5 // pred_fallthru
        _
    $region6: #{tpu_custom_call.1} parent=1 // loop_footer
      %s22 = sadd.s32 1, %s18
    $region7: #{tpu_custom_call.1} parent=1 // loop_footer_branch
      %17 = sbr.rel target = $region3
    $region8: #{tpu_custom_call.1} parent=1 // loop_exit
      _
    %3699 = vsyncpa [#allocation6], 1
    %s3700 = scalar_lea.sflag [#allocation6], 1
    %3701 = vsyncpa %s3700, 1
    %3702 = vsyncpa [#allocation11], 1
    %3703 = vsyncpa [#allocation7], 1
    %s3704 = scalar_lea.sflag [#allocation7], 1
    %3705 = vsyncpa %s3704, 1
    %3706 = vsyncpa [#allocation8], 1
    %s3707 = scalar_lea.sflag [#allocation8], 1
    %3708 = vsyncpa %s3707, 1

</llo_original>
